<compile_context>
chip_gen: v6e
topology: v6e:2x2x1
jax: 0.10.0
libtpu: 0.0.40
codegen_flags: <defaults>
</compile_context>

<pallas_src>
from functools import partial

import jax
import jax.numpy as jnp
from jax import lax
from jax.experimental import pallas as pl
from jax.experimental.pallas import tpu as pltpu


HALO = 4      # Sobel radius 1 + dilate3 radius 1 + dilate5 radius 2
SIGMA = 0.33


def _round_up(x, m):
    return (x + m - 1) // m * m


# ---------------------------------------------------------------------------
# Kernel 1: BGR -> grayscale * 255 (elementwise, row-tiled)
# ---------------------------------------------------------------------------
def gray_kernel(img_ref, gray_ref):
    b = img_ref[0]
    g = img_ref[1]
    r = img_ref[2]
    gray_ref[...] = (0.114 * b + 0.587 * g + 0.299 * r) * 255.0


# ---------------------------------------------------------------------------
# Kernel 2: Canny-like edges at two thresholds, edge diff, 5x5 dilations, masks.
#   thr_ref  (SMEM, (3,)): [lower, upper, upper * 1.5]
#   gray_hbm (ANY/HBM):    zero-padded gray image (H_out + 2*HALO, W_pad)
#   outputs: three uint8 (tile_h, W_pad) mask tiles
# ---------------------------------------------------------------------------
def edge_kernel(thr_ref, gray_hbm, mask_ref, mask1_ref, mask2_ref,
                gbuf, sem, *, tile_h, halo, h_real, w_real):
    th = tile_h
    hb = th + 2 * halo
    w_pad = gbuf.shape[1]
    i = pl.program_id(0)

    # Overlapping halo'd row window for this tile: HBM -> VMEM manual DMA.
    start = pl.multiple_of(i * th, 8)
    copy = pltpu.make_async_copy(gray_hbm.at[pl.ds(start, hb), :], gbuf, sem)
    copy.start()

    lower = thr_ref[0]
    upper = thr_ref[1]
    upper_hi = thr_ref[2]

    # Hoisted border bookkeeping (built once per tile, overlapped with the DMA).
    cols1 = lax.broadcasted_iota(jnp.int32, (1, w_pad), 1)
    # Lane-shift validity: destination column j reads source column j + dx;
    # zero-border outside the real image width.
    cmask = {dx: (cols1 + dx >= 0) & (cols1 + dx < w_real) for dx in (-2, -1, 1, 2)}
    # Real-image validity of the Sobel-magnitude rows (buffer rows 1 .. hb-2).
    row0 = i * th + 1 - halo
    rows = lax.broadcasted_iota(jnp.int32, (hb - 2, w_pad), 0) + row0
    colsf = lax.broadcasted_iota(jnp.int32, (hb - 2, w_pad), 1)
    valid = (rows >= 0) & (rows < h_real) & (colsf < w_real)

    copy.wait()

    def shift_x(x, dx):
        # result[:, j] = x[:, j + dx], zero outside the real image width.
        return jnp.where(cmask[dx], pltpu.roll(x, (-dx) % w_pad, axis=1), 0.0)

    g = gbuf[...]
    # cv2.convertScaleAbs: round(|x|), saturate to [0, 255]
    g8 = jnp.clip(jnp.round(jnp.abs(g)), 0.0, 255.0)

    # --- separable 3x3 Sobel, L1 magnitude (cv2.Canny default L2gradient=False)
    l1 = shift_x(g8, -1)
    r1 = shift_x(g8, 1)
    sm_x = l1 + 2.0 * g8 + r1          # [1, 2, 1] along x
    dv_x = r1 - l1                     # [-1, 0, 1] along x
    gx = dv_x[0:hb - 2] + 2.0 * dv_x[1:hb - 1] + dv_x[2:hb]   # rows 1 .. hb-2
    gy = sm_x[2:hb] - sm_x[0:hb - 2]
    mag = jnp.abs(gx) + jnp.abs(gy)
    mag = jnp.where(valid, mag, 0.0)   # zero gradients outside the real image

    weak = mag > lower                 # shared by both Canny passes

    # TODO(synk): cv2.Canny's non-maximum suppression and iterative hysteresis
    # have no clean data-parallel Pallas equivalent; approximated with a double
    # threshold + one-step (3x3 neighbour) hysteresis, as before.
    def canny_like(high):
        strong = jnp.where(mag > high, 1.0, 0.0)
        # separable 3x3 dilation of `strong` (hysteresis connectivity)
        sx = jnp.maximum(strong, jnp.maximum(shift_x(strong, -1), shift_x(strong, 1)))
        conn = jnp.maximum(sx[1:th + 5], jnp.maximum(sx[0:th + 4], sx[2:th + 6]))
        return jnp.where(weak[1:th + 5] & (conn > 0.0), 1.0, 0.0)   # rows 2..th+5

    edges_low = canny_like(upper)
    edges_high = canny_like(upper_hi)
    edge_diff = jnp.where(edges_low != edges_high, 1.0, 0.0)

    # --- separable 5x5 dilation, then mask = 1 where dilated == 0 -------------
    def mask_from(e):
        ex = jnp.maximum(e, jnp.maximum(shift_x(e, -1), shift_x(e, 1)))
        ex = jnp.maximum(ex, jnp.maximum(shift_x(e, -2), shift_x(e, 2)))
        d = jnp.maximum(jnp.maximum(ex[0:th], ex[1:th + 1]),
                        jnp.maximum(jnp.maximum(ex[2:th + 2], ex[3:th + 3]),
                                    ex[4:th + 4]))
        return (d == 0.0).astype(jnp.uint8)

    mask_ref[...] = mask_from(edge_diff)
    mask1_ref[...] = mask_from(edges_low)
    mask2_ref[...] = mask_from(edges_high)


# ---------------------------------------------------------------------------
# Wrapper
# ---------------------------------------------------------------------------
@partial(jax.jit, static_argnames=("tile_h",))
def edge_detection(img, *, tile_h=256):
    """img: (3, H, W) float32 BGR planes in [0, 1].
    Returns (mask, lower, upper, mask1, mask2)."""
    C, H, W = img.shape
    assert C == 3
    tile_h = min(tile_h, _round_up(H, 32))
    assert tile_h % 32 == 0
    H_out = _round_up(H, tile_h)
    W_pad = _round_up(W, 128)
    n_tiles = H_out // tile_h

    cparams = pltpu.CompilerParams(
        dimension_semantics=("parallel",),
        vmem_limit_bytes=48 * 1024 * 1024,
    )

    # Pad to lane-dense (W multiple of 128) and row-tileable shape; pad is zero,
    # consistent with the zero-border handling used for the stencils.
    img_p = jnp.pad(img, ((0, 0), (0, H_out - H), (0, W_pad - W)))

    gray = pl.pallas_call(
        gray_kernel,
        out_shape=jax.ShapeDtypeStruct((H_out, W_pad), jnp.float32),
        grid=(n_tiles,),
        in_specs=[pl.BlockSpec((3, tile_h, W_pad), lambda i: (0, i, 0))],
        out_specs=pl.BlockSpec((tile_h, W_pad), lambda i: (i, 0)),
        compiler_params=cparams,
    )(img_p)

    # Histogram median (one streaming pass) instead of a sort-based median.
    # TODO(synk): median of the uint8-quantized gray (what cv2.Canny sees); the
    # reference takes np.median of the float gray, which can differ by <= 0.5.
    bins = jnp.clip(jnp.round(gray[:H, :W]), 0.0, 255.0).astype(jnp.int32)
    hist = jnp.bincount(bins.ravel(), length=256)
    csum = jnp.cumsum(hist)
    n = H * W
    v_lo = jnp.argmax(csum > ((n - 1) // 2))
    v_hi = jnp.argmax(csum > (n // 2))
    v = 0.5 * (v_lo + v_hi).astype(jnp.float32)
    lower = jnp.maximum(0.0, (1.0 - SIGMA) * v)
    upper = jnp.minimum(255.0, (1.0 + SIGMA) * v)
    thr = jnp.stack([lower, upper, upper * 1.5]).astype(jnp.float32)

    # Zero halo rows top/bottom so every tile's halo'd window is in bounds.
    gray_halo = jnp.pad(gray, ((HALO, HALO), (0, 0)))

    kern = partial(edge_kernel, tile_h=tile_h, halo=HALO, h_real=H, w_real=W)
    mask, mask1, mask2 = pl.pallas_call(
        kern,
        out_shape=(
            jax.ShapeDtypeStruct((H_out, W_pad), jnp.uint8),
            jax.ShapeDtypeStruct((H_out, W_pad), jnp.uint8),
            jax.ShapeDtypeStruct((H_out, W_pad), jnp.uint8),
        ),
        grid=(n_tiles,),
        in_specs=[
            pl.BlockSpec(memory_space=pltpu.MemorySpace.SMEM),   # thr (3,)
            pl.BlockSpec(memory_space=pl.ANY),                   # gray_halo (HBM)
        ],
        out_specs=(
            pl.BlockSpec((tile_h, W_pad), lambda i: (i, 0)),
            pl.BlockSpec((tile_h, W_pad), lambda i: (i, 0)),
            pl.BlockSpec((tile_h, W_pad), lambda i: (i, 0)),
        ),
        scratch_shapes=[
            pltpu.VMEM((tile_h + 2 * HALO, W_pad), jnp.float32),
            pltpu.SemaphoreType.DMA,
        ],
        compiler_params=cparams,
    )(thr, gray_halo)

    return (mask[:H, :W], lower, upper, mask1[:H, :W], mask2[:H, :W])


if __name__ == "__main__":
    key = jax.random.PRNGKey(0)
    H = W = 256
    # deterministic BGR image in [0, 1], channel-first layout (3, H, W)
    img = jax.random.uniform(key, (3, H, W), dtype=jnp.float32)

    # tile_h=64 -> 4 row tiles with 4-row halos, exercises the tiled path.
    mask, lower, upper, mask1, mask2 = edge_detection(img, tile_h=64)
    jax.block_until_ready((mask, lower, upper, mask1, mask2))

    assert mask.shape == (H, W) and mask.dtype == jnp.uint8
    assert mask1.shape == (H, W) and mask1.dtype == jnp.uint8
    assert mask2.shape == (H, W) and mask2.dtype == jnp.uint8
    print("KERNEL_OK")
</pallas_src>

<mosaic_0001>
module attributes {stable_mosaic.version = 11 : i64} {
  func.func private @main(%arg0: i32) attributes {dimension_semantics = [#tpu.dimension_semantics<core_parallel>], iteration_bounds = array<i64: 2>, tpu.core_type = #tpu.core_type<sc_scalar_subcore>, window_params = []} {
    return
  }
}

module attributes {stable_mosaic.version = 11 : i64} {
  func.func private @main(%arg0: i32) attributes {dimension_semantics = [#tpu.dimension_semantics<core_parallel>], iteration_bounds = array<i64: 2>, tpu.core_type = #tpu.core_type<sc_scalar_subcore>, window_params = []} {
    return
  }
}

module attributes {stable_mosaic.version = 11 : i64} {
  func.func @gray_kernel(%arg0: i32, %arg1: memref<3x64x256xf32, #tpu.memory_space<vmem>>, %arg2: memref<64x256xf32, #tpu.memory_space<vmem>>) attributes {dimension_semantics = [#tpu.dimension_semantics<parallel>], iteration_bounds = array<i64: 4>, scalar_prefetch = 0 : i64, scratch_operands = 0 : i64, tpu.core_type = #tpu.core_type<tc>, window_params = [{transform_indices = @transform_0, window_bounds = array<i64: 3, 64, 256>}, {transform_indices = @transform_1, window_bounds = array<i64: 64, 256>}]} {
    %c0 = arith.constant 0 : index
    %c0_0 = arith.constant 0 : index
    %c0_1 = arith.constant 0 : index
    %0 = vector.load %arg1[%c0, %c0_0, %c0_1] : memref<3x64x256xf32, #tpu.memory_space<vmem>>, vector<1x64x256xf32>
    %1 = vector.shape_cast %0 : vector<1x64x256xf32> to vector<64x256xf32>
    %c1 = arith.constant 1 : index
    %c0_2 = arith.constant 0 : index
    %c0_3 = arith.constant 0 : index
    %2 = vector.load %arg1[%c1, %c0_2, %c0_3] : memref<3x64x256xf32, #tpu.memory_space<vmem>>, vector<1x64x256xf32>
    %3 = vector.shape_cast %2 : vector<1x64x256xf32> to vector<64x256xf32>
    %c2 = arith.constant 2 : index
    %c0_4 = arith.constant 0 : index
    %c0_5 = arith.constant 0 : index
    %4 = vector.load %arg1[%c2, %c0_4, %c0_5] : memref<3x64x256xf32, #tpu.memory_space<vmem>>, vector<1x64x256xf32>
    %5 = vector.shape_cast %4 : vector<1x64x256xf32> to vector<64x256xf32>
    %cst = arith.constant 1.140000e-01 : f32
    %6 = vector.broadcast %cst : f32 to vector<64x256xf32>
    %7 = arith.mulf %6, %1 : vector<64x256xf32>
    %cst_6 = arith.constant 5.870000e-01 : f32
    %8 = vector.broadcast %cst_6 : f32 to vector<64x256xf32>
    %9 = arith.mulf %8, %3 : vector<64x256xf32>
    %10 = arith.addf %7, %9 : vector<64x256xf32>
    %cst_7 = arith.constant 2.990000e-01 : f32
    %11 = vector.broadcast %cst_7 : f32 to vector<64x256xf32>
    %12 = arith.mulf %11, %5 : vector<64x256xf32>
    %13 = arith.addf %10, %12 : vector<64x256xf32>
    %cst_8 = arith.constant 2.550000e+02 : f32
    %14 = vector.broadcast %cst_8 : f32 to vector<64x256xf32>
    %15 = arith.mulf %13, %14 : vector<64x256xf32>
    %c0_9 = arith.constant 0 : index
    %c0_10 = arith.constant 0 : index
    %16 = vector.load %arg2[%c0_9, %c0_10] : memref<64x256xf32, #tpu.memory_space<vmem>>, vector<64x256xf32>
    tpu.vector_store %arg2[%c0_9, %c0_10], %15 {strides = array<i32>} : memref<64x256xf32, #tpu.memory_space<vmem>>, vector<64x256xf32>,
    return
  }
  func.func @transform_0(%arg0: i32) -> (i32, i32, i32) {
    %c0_i32 = arith.constant 0 : i32
    %c0_i32_0 = arith.constant 0 : i32
    %c0_i32_1 = arith.constant 0 : i32
    return %c0_i32, %arg0, %c0_i32_0 : i32, i32, i32
  }
  func.func @transform_1(%arg0: i32) -> (i32, i32) {
    %c0_i32 = arith.constant 0 : i32
    %c0_i32_0 = arith.constant 0 : i32
    return %arg0, %c0_i32 : i32, i32
  }
}

module attributes {stable_mosaic.version = 11 : i64} {
  func.func @edge_kernel(%arg0: i32, %arg1: memref<3xf32, #tpu.memory_space<smem>>, %arg2: memref<264x256xf32, #tpu.memory_space<any>>, %arg3: memref<64x256xi8, #tpu.memory_space<vmem>>, %arg4: memref<64x256xi8, #tpu.memory_space<vmem>>, %arg5: memref<64x256xi8, #tpu.memory_space<vmem>>, %arg6: memref<72x256xf32, #tpu.memory_space<vmem>>, %arg7: memref<!tpu.dma_semaphore, #tpu.memory_space<semaphore_mem>>) attributes {dimension_semantics = [#tpu.dimension_semantics<parallel>], iteration_bounds = array<i64: 4>, scalar_prefetch = 0 : i64, scratch_operands = 2 : i64, tpu.core_type = #tpu.core_type<tc>, window_params = [{transform_indices = @transform_0, window_bounds = array<i64: 3>}, {}, {transform_indices = @transform_2, window_bounds = array<i64: 64, 256>}, {transform_indices = @transform_3, window_bounds = array<i64: 64, 256>}, {transform_indices = @transform_4, window_bounds = array<i64: 64, 256>}]} {
    %c64_i32 = arith.constant 64 : i32
    %0 = arith.muli %arg0, %c64_i32 : i32
    %1 = tpu.assume_multiple %0, 8 : i32
    %c0_i32 = arith.constant 0 : i32
    %2 = tpu.memref_slice %arg2[%1, %c0_i32] : memref<264x256xf32, #tpu.memory_space<any>> -> memref<72x256xf32, #tpu.memory_space<any>>
    tpu.enqueue_dma source(%2 : memref<72x256xf32, #tpu.memory_space<any>>) target(%arg6 : memref<72x256xf32, #tpu.memory_space<vmem>>) target_semaphore(%arg7 : memref<!tpu.dma_semaphore, #tpu.memory_space<semaphore_mem>>)
    %c0 = arith.constant 0 : index
    %3 = memref.load %arg1[%c0] : memref<3xf32, #tpu.memory_space<smem>>
    %c1 = arith.constant 1 : index
    %4 = memref.load %arg1[%c1] : memref<3xf32, #tpu.memory_space<smem>>
    %c2 = arith.constant 2 : index
    %5 = memref.load %arg1[%c2] : memref<3xf32, #tpu.memory_space<smem>>
    %6 = tpu.iota {dimensions = array<i32: 1>} : vector<1x256xi32>
    %c-2_i32 = arith.constant -2 : i32
    %7 = vector.broadcast %c-2_i32 : i32 to vector<1x256xi32>
    %8 = arith.addi %6, %7 : vector<1x256xi32>
    %c0_i32_0 = arith.constant 0 : i32
    %9 = vector.broadcast %c0_i32_0 : i32 to vector<1x256xi32>
    %10 = arith.cmpi sge, %8, %9 : vector<1x256xi32>
    %c-2_i32_1 = arith.constant -2 : i32
    %11 = vector.broadcast %c-2_i32_1 : i32 to vector<1x256xi32>
    %12 = arith.addi %6, %11 : vector<1x256xi32>
    %c256_i32 = arith.constant 256 : i32
    %13 = vector.broadcast %c256_i32 : i32 to vector<1x256xi32>
    %14 = arith.cmpi slt, %12, %13 : vector<1x256xi32>
    %15 = arith.andi %10, %14 : vector<1x256xi1>
    %c-1_i32 = arith.constant -1 : i32
    %16 = vector.broadcast %c-1_i32 : i32 to vector<1x256xi32>
    %17 = arith.addi %6, %16 : vector<1x256xi32>
    %c0_i32_2 = arith.constant 0 : i32
    %18 = vector.broadcast %c0_i32_2 : i32 to vector<1x256xi32>
    %19 = arith.cmpi sge, %17, %18 : vector<1x256xi32>
    %c-1_i32_3 = arith.constant -1 : i32
    %20 = vector.broadcast %c-1_i32_3 : i32 to vector<1x256xi32>
    %21 = arith.addi %6, %20 : vector<1x256xi32>
    %c256_i32_4 = arith.constant 256 : i32
    %22 = vector.broadcast %c256_i32_4 : i32 to vector<1x256xi32>
    %23 = arith.cmpi slt, %21, %22 : vector<1x256xi32>
    %24 = arith.andi %19, %23 : vector<1x256xi1>
    %c1_i32 = arith.constant 1 : i32
    %25 = vector.broadcast %c1_i32 : i32 to vector<1x256xi32>
    %26 = arith.addi %6, %25 : vector<1x256xi32>
    %c0_i32_5 = arith.constant 0 : i32
    %27 = vector.broadcast %c0_i32_5 : i32 to vector<1x256xi32>
    %28 = arith.cmpi sge, %26, %27 : vector<1x256xi32>
    %c1_i32_6 = arith.constant 1 : i32
    %29 = vector.broadcast %c1_i32_6 : i32 to vector<1x256xi32>
    %30 = arith.addi %6, %29 : vector<1x256xi32>
    %c256_i32_7 = arith.constant 256 : i32
    %31 = vector.broadcast %c256_i32_7 : i32 to vector<1x256xi32>
    %32 = arith.cmpi slt, %30, %31 : vector<1x256xi32>
    %33 = arith.andi %28, %32 : vector<1x256xi1>
    %c2_i32 = arith.constant 2 : i32
    %34 = vector.broadcast %c2_i32 : i32 to vector<1x256xi32>
    %35 = arith.addi %6, %34 : vector<1x256xi32>
    %c0_i32_8 = arith.constant 0 : i32
    %36 = vector.broadcast %c0_i32_8 : i32 to vector<1x256xi32>
    %37 = arith.cmpi sge, %35, %36 : vector<1x256xi32>
    %c2_i32_9 = arith.constant 2 : i32
    %38 = vector.broadcast %c2_i32_9 : i32 to vector<1x256xi32>
    %39 = arith.addi %6, %38 : vector<1x256xi32>
    %c256_i32_10 = arith.constant 256 : i32
    %40 = vector.broadcast %c256_i32_10 : i32 to vector<1x256xi32>
    %41 = arith.cmpi slt, %39, %40 : vector<1x256xi32>
    %42 = arith.andi %37, %41 : vector<1x256xi1>
    %c64_i32_11 = arith.constant 64 : i32
    %43 = arith.muli %arg0, %c64_i32_11 : i32
    %c1_i32_12 = arith.constant 1 : i32
    %44 = arith.addi %43, %c1_i32_12 : i32
    %c4_i32 = arith.constant 4 : i32
    %45 = arith.subi %44, %c4_i32 : i32
    %46 = tpu.iota {dimensions = array<i32: 0>} : vector<70x256xi32>
    %47 = vector.broadcast %45 : i32 to vector<70x256xi32>
    %48 = arith.addi %46, %47 : vector<70x256xi32>
    %49 = tpu.iota {dimensions = array<i32: 1>} : vector<70x256xi32>
    %c0_i32_13 = arith.constant 0 : i32
    %50 = vector.broadcast %c0_i32_13 : i32 to vector<70x256xi32>
    %51 = arith.cmpi sge, %48, %50 : vector<70x256xi32>
    %c256_i32_14 = arith.constant 256 : i32
    %52 = vector.broadcast %c256_i32_14 : i32 to vector<70x256xi32>
    %53 = arith.cmpi slt, %48, %52 : vector<70x256xi32>
    %54 = arith.andi %51, %53 : vector<70x256xi1>
    %c256_i32_15 = arith.constant 256 : i32
    %55 = vector.broadcast %c256_i32_15 : i32 to vector<70x256xi32>
    %56 = arith.cmpi slt, %49, %55 : vector<70x256xi32>
    %57 = arith.andi %54, %56 : vector<70x256xi1>
    %c0_i32_16 = arith.constant 0 : i32
    %58 = tpu.memref_slice %arg2[%1, %c0_i32_16] : memref<264x256xf32, #tpu.memory_space<any>> -> memref<72x256xf32, #tpu.memory_space<any>>
    tpu.wait_dma2 semaphore(%arg7 : memref<!tpu.dma_semaphore, #tpu.memory_space<semaphore_mem>>) src(%58 : memref<72x256xf32, #tpu.memory_space<any>>) dst(%arg6 : memref<72x256xf32, #tpu.memory_space<vmem>>)
    %c0_17 = arith.constant 0 : index
    %c0_18 = arith.constant 0 : index
    %59 = vector.load %arg6[%c0_17, %c0_18] : memref<72x256xf32, #tpu.memory_space<vmem>>, vector<72x256xf32>
    %60 = math.absf %59 : vector<72x256xf32>
    %61 = math.roundeven %60 : vector<72x256xf32>
    %cst = arith.constant 0.000000e+00 : f32
    %cst_19 = arith.constant 2.550000e+02 : f32
    %62 = vector.broadcast %cst : f32 to vector<72x256xf32>
    %63 = arith.maximumf %62, %61 : vector<72x256xf32>
    %64 = vector.broadcast %cst_19 : f32 to vector<72x256xf32>
    %65 = arith.minimumf %64, %63 : vector<72x256xf32>
    %c1_i32_20 = arith.constant 1 : i32
    %66 = tpu.dynamic_rotate %65 by %c1_i32_20 dim 1 : vector<72x256xf32>, i32 -> vector<72x256xf32>
    %cst_21 = arith.constant 0.000000e+00 : f32
    %67 = vector.shape_cast %24 : vector<1x256xi1> to vector<1x256xi1>
    %68 = vector.broadcast %67 : vector<1x256xi1> to vector<72x256xi1>
    %69 = vector.broadcast %cst_21 : f32 to vector<72x256xf32>
    %70 = arith.select %68, %66, %69 : vector<72x256xi1>, vector<72x256xf32>
    %c255_i32 = arith.constant 255 : i32
    %71 = tpu.dynamic_rotate %65 by %c255_i32 dim 1 : vector<72x256xf32>, i32 -> vector<72x256xf32>
    %cst_22 = arith.constant 0.000000e+00 : f32
    %72 = vector.shape_cast %33 : vector<1x256xi1> to vector<1x256xi1>
    %73 = vector.broadcast %72 : vector<1x256xi1> to vector<72x256xi1>
    %74 = vector.broadcast %cst_22 : f32 to vector<72x256xf32>
    %75 = arith.select %73, %71, %74 : vector<72x256xi1>, vector<72x256xf32>
    %cst_23 = arith.constant 2.000000e+00 : f32
    %76 = vector.broadcast %cst_23 : f32 to vector<72x256xf32>
    %77 = arith.mulf %76, %65 : vector<72x256xf32>
    %78 = arith.addf %70, %77 : vector<72x256xf32>
    %79 = arith.addf %78, %75 : vector<72x256xf32>
    %80 = arith.subf %75, %70 : vector<72x256xf32>
    %81 = vector.extract_strided_slice %80 {offsets = [0, 0], sizes = [70, 256], strides = [1, 1]} : vector<72x256xf32> to vector<70x256xf32>
    %82 = vector.extract_strided_slice %80 {offsets = [1, 0], sizes = [70, 256], strides = [1, 1]} : vector<72x256xf32> to vector<70x256xf32>
    %cst_24 = arith.constant 2.000000e+00 : f32
    %83 = vector.broadcast %cst_24 : f32 to vector<70x256xf32>
    %84 = arith.mulf %83, %82 : vector<70x256xf32>
    %85 = arith.addf %81, %84 : vector<70x256xf32>
    %86 = vector.extract_strided_slice %80 {offsets = [2, 0], sizes = [70, 256], strides = [1, 1]} : vector<72x256xf32> to vector<70x256xf32>
    %87 = arith.addf %85, %86 : vector<70x256xf32>
    %88 = vector.extract_strided_slice %79 {offsets = [2, 0], sizes = [70, 256], strides = [1, 1]} : vector<72x256xf32> to vector<70x256xf32>
    %89 = vector.extract_strided_slice %79 {offsets = [0, 0], sizes = [70, 256], strides = [1, 1]} : vector<72x256xf32> to vector<70x256xf32>
    %90 = arith.subf %88, %89 : vector<70x256xf32>
    %91 = math.absf %87 : vector<70x256xf32>
    %92 = math.absf %90 : vector<70x256xf32>
    %93 = arith.addf %91, %92 : vector<70x256xf32>
    %cst_25 = arith.constant 0.000000e+00 : f32
    %94 = vector.broadcast %cst_25 : f32 to vector<70x256xf32>
    %95 = arith.select %57, %93, %94 : vector<70x256xi1>, vector<70x256xf32>
    %96 = vector.broadcast %3 : f32 to vector<70x256xf32>
    %97 = arith.cmpf ogt, %95, %96 : vector<70x256xf32>
    %98 = vector.broadcast %4 : f32 to vector<70x256xf32>
    %99 = arith.cmpf ogt, %95, %98 : vector<70x256xf32>
    %cst_26 = arith.constant 1.000000e+00 : f32
    %cst_27 = arith.constant 0.000000e+00 : f32
    %100 = vector.broadcast %cst_26 : f32 to vector<70x256xf32>
    %101 = vector.broadcast %cst_27 : f32 to vector<70x256xf32>
    %102 = arith.select %99, %100, %101 : vector<70x256xi1>, vector<70x256xf32>
    %c1_i32_28 = arith.constant 1 : i32
    %103 = tpu.dynamic_rotate %102 by %c1_i32_28 dim 1 : vector<70x256xf32>, i32 -> vector<70x256xf32>
    %cst_29 = arith.constant 0.000000e+00 : f32
    %104 = vector.shape_cast %24 : vector<1x256xi1> to vector<1x256xi1>
    %105 = vector.broadcast %104 : vector<1x256xi1> to vector<70x256xi1>
    %106 = vector.broadcast %cst_29 : f32 to vector<70x256xf32>
    %107 = arith.select %105, %103, %106 : vector<70x256xi1>, vector<70x256xf32>
    %c255_i32_30 = arith.constant 255 : i32
    %108 = tpu.dynamic_rotate %102 by %c255_i32_30 dim 1 : vector<70x256xf32>, i32 -> vector<70x256xf32>
    %cst_31 = arith.constant 0.000000e+00 : f32
    %109 = vector.shape_cast %33 : vector<1x256xi1> to vector<1x256xi1>
    %110 = vector.broadcast %109 : vector<1x256xi1> to vector<70x256xi1>
    %111 = vector.broadcast %cst_31 : f32 to vector<70x256xf32>
    %112 = arith.select %110, %108, %111 : vector<70x256xi1>, vector<70x256xf32>
    %113 = arith.maximumf %107, %112 : vector<70x256xf32>
    %114 = arith.maximumf %102, %113 : vector<70x256xf32>
    %115 = vector.extract_strided_slice %114 {offsets = [1, 0], sizes = [68, 256], strides = [1, 1]} : vector<70x256xf32> to vector<68x256xf32>
    %116 = vector.extract_strided_slice %114 {offsets = [0, 0], sizes = [68, 256], strides = [1, 1]} : vector<70x256xf32> to vector<68x256xf32>
    %117 = vector.extract_strided_slice %114 {offsets = [2, 0], sizes = [68, 256], strides = [1, 1]} : vector<70x256xf32> to vector<68x256xf32>
    %118 = arith.maximumf %116, %117 : vector<68x256xf32>
    %119 = arith.maximumf %115, %118 : vector<68x256xf32>
    %120 = vector.extract_strided_slice %97 {offsets = [1, 0], sizes = [68, 256], strides = [1, 1]} : vector<70x256xi1> to vector<68x256xi1>
    %cst_32 = arith.constant 0.000000e+00 : f32
    %121 = vector.broadcast %cst_32 : f32 to vector<68x256xf32>
    %122 = arith.cmpf ogt, %119, %121 : vector<68x256xf32>
    %123 = arith.andi %120, %122 : vector<68x256xi1>
    %cst_33 = arith.constant 1.000000e+00 : f32
    %cst_34 = arith.constant 0.000000e+00 : f32
    %124 = vector.broadcast %cst_33 : f32 to vector<68x256xf32>
    %125 = vector.broadcast %cst_34 : f32 to vector<68x256xf32>
    %126 = arith.select %123, %124, %125 : vector<68x256xi1>, vector<68x256xf32>
    %127 = vector.broadcast %5 : f32 to vector<70x256xf32>
    %128 = arith.cmpf ogt, %95, %127 : vector<70x256xf32>
    %cst_35 = arith.constant 1.000000e+00 : f32
    %cst_36 = arith.constant 0.000000e+00 : f32
    %129 = vector.broadcast %cst_35 : f32 to vector<70x256xf32>
    %130 = vector.broadcast %cst_36 : f32 to vector<70x256xf32>
    %131 = arith.select %128, %129, %130 : vector<70x256xi1>, vector<70x256xf32>
    %c1_i32_37 = arith.constant 1 : i32
    %132 = tpu.dynamic_rotate %131 by %c1_i32_37 dim 1 : vector<70x256xf32>, i32 -> vector<70x256xf32>
    %cst_38 = arith.constant 0.000000e+00 : f32
    %133 = vector.shape_cast %24 : vector<1x256xi1> to vector<1x256xi1>
    %134 = vector.broadcast %133 : vector<1x256xi1> to vector<70x256xi1>
    %135 = vector.broadcast %cst_38 : f32 to vector<70x256xf32>
    %136 = arith.select %134, %132, %135 : vector<70x256xi1>, vector<70x256xf32>
    %c255_i32_39 = arith.constant 255 : i32
    %137 = tpu.dynamic_rotate %131 by %c255_i32_39 dim 1 : vector<70x256xf32>, i32 -> vector<70x256xf32>
    %cst_40 = arith.constant 0.000000e+00 : f32
    %138 = vector.shape_cast %33 : vector<1x256xi1> to vector<1x256xi1>
    %139 = vector.broadcast %138 : vector<1x256xi1> to vector<70x256xi1>
    %140 = vector.broadcast %cst_40 : f32 to vector<70x256xf32>
    %141 = arith.select %139, %137, %140 : vector<70x256xi1>, vector<70x256xf32>
    %142 = arith.maximumf %136, %141 : vector<70x256xf32>
    %143 = arith.maximumf %131, %142 : vector<70x256xf32>
    %144 = vector.extract_strided_slice %143 {offsets = [1, 0], sizes = [68, 256], strides = [1, 1]} : vector<70x256xf32> to vector<68x256xf32>
    %145 = vector.extract_strided_slice %143 {offsets = [0, 0], sizes = [68, 256], strides = [1, 1]} : vector<70x256xf32> to vector<68x256xf32>
    %146 = vector.extract_strided_slice %143 {offsets = [2, 0], sizes = [68, 256], strides = [1, 1]} : vector<70x256xf32> to vector<68x256xf32>
    %147 = arith.maximumf %145, %146 : vector<68x256xf32>
    %148 = arith.maximumf %144, %147 : vector<68x256xf32>
    %149 = vector.extract_strided_slice %97 {offsets = [1, 0], sizes = [68, 256], strides = [1, 1]} : vector<70x256xi1> to vector<68x256xi1>
    %cst_41 = arith.constant 0.000000e+00 : f32
    %150 = vector.broadcast %cst_41 : f32 to vector<68x256xf32>
    %151 = arith.cmpf ogt, %148, %150 : vector<68x256xf32>
    %152 = arith.andi %149, %151 : vector<68x256xi1>
    %cst_42 = arith.constant 1.000000e+00 : f32
    %cst_43 = arith.constant 0.000000e+00 : f32
    %153 = vector.broadcast %cst_42 : f32 to vector<68x256xf32>
    %154 = vector.broadcast %cst_43 : f32 to vector<68x256xf32>
    %155 = arith.select %152, %153, %154 : vector<68x256xi1>, vector<68x256xf32>
    %156 = arith.cmpf one, %126, %155 : vector<68x256xf32>
    %cst_44 = arith.constant 1.000000e+00 : f32
    %cst_45 = arith.constant 0.000000e+00 : f32
    %157 = vector.broadcast %cst_44 : f32 to vector<68x256xf32>
    %158 = vector.broadcast %cst_45 : f32 to vector<68x256xf32>
    %159 = arith.select %156, %157, %158 : vector<68x256xi1>, vector<68x256xf32>
    %c1_i32_46 = arith.constant 1 : i32
    %160 = tpu.dynamic_rotate %159 by %c1_i32_46 dim 1 : vector<68x256xf32>, i32 -> vector<68x256xf32>
    %cst_47 = arith.constant 0.000000e+00 : f32
    %161 = vector.shape_cast %24 : vector<1x256xi1> to vector<1x256xi1>
    %162 = vector.broadcast %161 : vector<1x256xi1> to vector<68x256xi1>
    %163 = vector.broadcast %cst_47 : f32 to vector<68x256xf32>
    %164 = arith.select %162, %160, %163 : vector<68x256xi1>, vector<68x256xf32>
    %c255_i32_48 = arith.constant 255 : i32
    %165 = tpu.dynamic_rotate %159 by %c255_i32_48 dim 1 : vector<68x256xf32>, i32 -> vector<68x256xf32>
    %cst_49 = arith.constant 0.000000e+00 : f32
    %166 = vector.shape_cast %33 : vector<1x256xi1> to vector<1x256xi1>
    %167 = vector.broadcast %166 : vector<1x256xi1> to vector<68x256xi1>
    %168 = vector.broadcast %cst_49 : f32 to vector<68x256xf32>
    %169 = arith.select %167, %165, %168 : vector<68x256xi1>, vector<68x256xf32>
    %170 = arith.maximumf %164, %169 : vector<68x256xf32>
    %171 = arith.maximumf %159, %170 : vector<68x256xf32>
    %c2_i32_50 = arith.constant 2 : i32
    %172 = tpu.dynamic_rotate %159 by %c2_i32_50 dim 1 : vector<68x256xf32>, i32 -> vector<68x256xf32>
    %cst_51 = arith.constant 0.000000e+00 : f32
    %173 = vector.shape_cast %15 : vector<1x256xi1> to vector<1x256xi1>
    %174 = vector.broadcast %173 : vector<1x256xi1> to vector<68x256xi1>
    %175 = vector.broadcast %cst_51 : f32 to vector<68x256xf32>
    %176 = arith.select %174, %172, %175 : vector<68x256xi1>, vector<68x256xf32>
    %c254_i32 = arith.constant 254 : i32
    %177 = tpu.dynamic_rotate %159 by %c254_i32 dim 1 : vector<68x256xf32>, i32 -> vector<68x256xf32>
    %cst_52 = arith.constant 0.000000e+00 : f32
    %178 = vector.shape_cast %42 : vector<1x256xi1> to vector<1x256xi1>
    %179 = vector.broadcast %178 : vector<1x256xi1> to vector<68x256xi1>
    %180 = vector.broadcast %cst_52 : f32 to vector<68x256xf32>
    %181 = arith.select %179, %177, %180 : vector<68x256xi1>, vector<68x256xf32>
    %182 = arith.maximumf %176, %181 : vector<68x256xf32>
    %183 = arith.maximumf %171, %182 : vector<68x256xf32>
    %184 = vector.extract_strided_slice %183 {offsets = [0, 0], sizes = [64, 256], strides = [1, 1]} : vector<68x256xf32> to vector<64x256xf32>
    %185 = vector.extract_strided_slice %183 {offsets = [1, 0], sizes = [64, 256], strides = [1, 1]} : vector<68x256xf32> to vector<64x256xf32>
    %186 = arith.maximumf %184, %185 : vector<64x256xf32>
    %187 = vector.extract_strided_slice %183 {offsets = [2, 0], sizes = [64, 256], strides = [1, 1]} : vector<68x256xf32> to vector<64x256xf32>
    %188 = vector.extract_strided_slice %183 {offsets = [3, 0], sizes = [64, 256], strides = [1, 1]} : vector<68x256xf32> to vector<64x256xf32>
    %189 = arith.maximumf %187, %188 : vector<64x256xf32>
    %190 = vector.extract_strided_slice %183 {offsets = [4, 0], sizes = [64, 256], strides = [1, 1]} : vector<68x256xf32> to vector<64x256xf32>
    %191 = arith.maximumf %189, %190 : vector<64x256xf32>
    %192 = arith.maximumf %186, %191 : vector<64x256xf32>
    %cst_53 = arith.constant 0.000000e+00 : f32
    %193 = vector.broadcast %cst_53 : f32 to vector<64x256xf32>
    %194 = arith.cmpf oeq, %192, %193 : vector<64x256xf32>
    %195 = arith.extui %194 : vector<64x256xi1> to vector<64x256xi8>
    %c0_54 = arith.constant 0 : index
    %c0_55 = arith.constant 0 : index
    %196 = vector.load %arg3[%c0_54, %c0_55] : memref<64x256xi8, #tpu.memory_space<vmem>>, vector<64x256xi8>
    tpu.vector_store %arg3[%c0_54, %c0_55], %195 {strides = array<i32>} : memref<64x256xi8, #tpu.memory_space<vmem>>, vector<64x256xi8>,
    %c1_i32_56 = arith.constant 1 : i32
    %197 = tpu.dynamic_rotate %126 by %c1_i32_56 dim 1 : vector<68x256xf32>, i32 -> vector<68x256xf32>
    %cst_57 = arith.constant 0.000000e+00 : f32
    %198 = vector.shape_cast %24 : vector<1x256xi1> to vector<1x256xi1>
    %199 = vector.broadcast %198 : vector<1x256xi1> to vector<68x256xi1>
    %200 = vector.broadcast %cst_57 : f32 to vector<68x256xf32>
    %201 = arith.select %199, %197, %200 : vector<68x256xi1>, vector<68x256xf32>
    %c255_i32_58 = arith.constant 255 : i32
    %202 = tpu.dynamic_rotate %126 by %c255_i32_58 dim 1 : vector<68x256xf32>, i32 -> vector<68x256xf32>
    %cst_59 = arith.constant 0.000000e+00 : f32
    %203 = vector.shape_cast %33 : vector<1x256xi1> to vector<1x256xi1>
    %204 = vector.broadcast %203 : vector<1x256xi1> to vector<68x256xi1>
    %205 = vector.broadcast %cst_59 : f32 to vector<68x256xf32>
    %206 = arith.select %204, %202, %205 : vector<68x256xi1>, vector<68x256xf32>
    %207 = arith.maximumf %201, %206 : vector<68x256xf32>
    %208 = arith.maximumf %126, %207 : vector<68x256xf32>
    %c2_i32_60 = arith.constant 2 : i32
    %209 = tpu.dynamic_rotate %126 by %c2_i32_60 dim 1 : vector<68x256xf32>, i32 -> vector<68x256xf32>
    %cst_61 = arith.constant 0.000000e+00 : f32
    %210 = vector.shape_cast %15 : vector<1x256xi1> to vector<1x256xi1>
    %211 = vector.broadcast %210 : vector<1x256xi1> to vector<68x256xi1>
    %212 = vector.broadcast %cst_61 : f32 to vector<68x256xf32>
    %213 = arith.select %211, %209, %212 : vector<68x256xi1>, vector<68x256xf32>
    %c254_i32_62 = arith.constant 254 : i32
    %214 = tpu.dynamic_rotate %126 by %c254_i32_62 dim 1 : vector<68x256xf32>, i32 -> vector<68x256xf32>
    %cst_63 = arith.constant 0.000000e+00 : f32
    %215 = vector.shape_cast %42 : vector<1x256xi1> to vector<1x256xi1>
    %216 = vector.broadcast %215 : vector<1x256xi1> to vector<68x256xi1>
    %217 = vector.broadcast %cst_63 : f32 to vector<68x256xf32>
    %218 = arith.select %216, %214, %217 : vector<68x256xi1>, vector<68x256xf32>
    %219 = arith.maximumf %213, %218 : vector<68x256xf32>
    %220 = arith.maximumf %208, %219 : vector<68x256xf32>
    %221 = vector.extract_strided_slice %220 {offsets = [0, 0], sizes = [64, 256], strides = [1, 1]} : vector<68x256xf32> to vector<64x256xf32>
    %222 = vector.extract_strided_slice %220 {offsets = [1, 0], sizes = [64, 256], strides = [1, 1]} : vector<68x256xf32> to vector<64x256xf32>
    %223 = arith.maximumf %221, %222 : vector<64x256xf32>
    %224 = vector.extract_strided_slice %220 {offsets = [2, 0], sizes = [64, 256], strides = [1, 1]} : vector<68x256xf32> to vector<64x256xf32>
    %225 = vector.extract_strided_slice %220 {offsets = [3, 0], sizes = [64, 256], strides = [1, 1]} : vector<68x256xf32> to vector<64x256xf32>
    %226 = arith.maximumf %224, %225 : vector<64x256xf32>
    %227 = vector.extract_strided_slice %220 {offsets = [4, 0], sizes = [64, 256], strides = [1, 1]} : vector<68x256xf32> to vector<64x256xf32>
    %228 = arith.maximumf %226, %227 : vector<64x256xf32>
    %229 = arith.maximumf %223, %228 : vector<64x256xf32>
    %cst_64 = arith.constant 0.000000e+00 : f32
    %230 = vector.broadcast %cst_64 : f32 to vector<64x256xf32>
    %231 = arith.cmpf oeq, %229, %230 : vector<64x256xf32>
    %232 = arith.extui %231 : vector<64x256xi1> to vector<64x256xi8>
    %c0_65 = arith.constant 0 : index
    %c0_66 = arith.constant 0 : index
    %233 = vector.load %arg4[%c0_65, %c0_66] : memref<64x256xi8, #tpu.memory_space<vmem>>, vector<64x256xi8>
    tpu.vector_store %arg4[%c0_65, %c0_66], %232 {strides = array<i32>} : memref<64x256xi8, #tpu.memory_space<vmem>>, vector<64x256xi8>,
    %c1_i32_67 = arith.constant 1 : i32
    %234 = tpu.dynamic_rotate %155 by %c1_i32_67 dim 1 : vector<68x256xf32>, i32 -> vector<68x256xf32>
    %cst_68 = arith.constant 0.000000e+00 : f32
    %235 = vector.shape_cast %24 : vector<1x256xi1> to vector<1x256xi1>
    %236 = vector.broadcast %235 : vector<1x256xi1> to vector<68x256xi1>
    %237 = vector.broadcast %cst_68 : f32 to vector<68x256xf32>
    %238 = arith.select %236, %234, %237 : vector<68x256xi1>, vector<68x256xf32>
    %c255_i32_69 = arith.constant 255 : i32
    %239 = tpu.dynamic_rotate %155 by %c255_i32_69 dim 1 : vector<68x256xf32>, i32 -> vector<68x256xf32>
    %cst_70 = arith.constant 0.000000e+00 : f32
    %240 = vector.shape_cast %33 : vector<1x256xi1> to vector<1x256xi1>
    %241 = vector.broadcast %240 : vector<1x256xi1> to vector<68x256xi1>
    %242 = vector.broadcast %cst_70 : f32 to vector<68x256xf32>
    %243 = arith.select %241, %239, %242 : vector<68x256xi1>, vector<68x256xf32>
    %244 = arith.maximumf %238, %243 : vector<68x256xf32>
    %245 = arith.maximumf %155, %244 : vector<68x256xf32>
    %c2_i32_71 = arith.constant 2 : i32
    %246 = tpu.dynamic_rotate %155 by %c2_i32_71 dim 1 : vector<68x256xf32>, i32 -> vector<68x256xf32>
    %cst_72 = arith.constant 0.000000e+00 : f32
    %247 = vector.shape_cast %15 : vector<1x256xi1> to vector<1x256xi1>
    %248 = vector.broadcast %247 : vector<1x256xi1> to vector<68x256xi1>
    %249 = vector.broadcast %cst_72 : f32 to vector<68x256xf32>
    %250 = arith.select %248, %246, %249 : vector<68x256xi1>, vector<68x256xf32>
    %c254_i32_73 = arith.constant 254 : i32
    %251 = tpu.dynamic_rotate %155 by %c254_i32_73 dim 1 : vector<68x256xf32>, i32 -> vector<68x256xf32>
    %cst_74 = arith.constant 0.000000e+00 : f32
    %252 = vector.shape_cast %42 : vector<1x256xi1> to vector<1x256xi1>
    %253 = vector.broadcast %252 : vector<1x256xi1> to vector<68x256xi1>
    %254 = vector.broadcast %cst_74 : f32 to vector<68x256xf32>
    %255 = arith.select %253, %251, %254 : vector<68x256xi1>, vector<68x256xf32>
    %256 = arith.maximumf %250, %255 : vector<68x256xf32>
    %257 = arith.maximumf %245, %256 : vector<68x256xf32>
    %258 = vector.extract_strided_slice %257 {offsets = [0, 0], sizes = [64, 256], strides = [1, 1]} : vector<68x256xf32> to vector<64x256xf32>
    %259 = vector.extract_strided_slice %257 {offsets = [1, 0], sizes = [64, 256], strides = [1, 1]} : vector<68x256xf32> to vector<64x256xf32>
    %260 = arith.maximumf %258, %259 : vector<64x256xf32>
    %261 = vector.extract_strided_slice %257 {offsets = [2, 0], sizes = [64, 256], strides = [1, 1]} : vector<68x256xf32> to vector<64x256xf32>
    %262 = vector.extract_strided_slice %257 {offsets = [3, 0], sizes = [64, 256], strides = [1, 1]} : vector<68x256xf32> to vector<64x256xf32>
    %263 = arith.maximumf %261, %262 : vector<64x256xf32>
    %264 = vector.extract_strided_slice %257 {offsets = [4, 0], sizes = [64, 256], strides = [1, 1]} : vector<68x256xf32> to vector<64x256xf32>
    %265 = arith.maximumf %263, %264 : vector<64x256xf32>
    %266 = arith.maximumf %260, %265 : vector<64x256xf32>
    %cst_75 = arith.constant 0.000000e+00 : f32
    %267 = vector.broadcast %cst_75 : f32 to vector<64x256xf32>
    %268 = arith.cmpf oeq, %266, %267 : vector<64x256xf32>
    %269 = arith.extui %268 : vector<64x256xi1> to vector<64x256xi8>
    %c0_76 = arith.constant 0 : index
    %c0_77 = arith.constant 0 : index
    %270 = vector.load %arg5[%c0_76, %c0_77] : memref<64x256xi8, #tpu.memory_space<vmem>>, vector<64x256xi8>
    tpu.vector_store %arg5[%c0_76, %c0_77], %269 {strides = array<i32>} : memref<64x256xi8, #tpu.memory_space<vmem>>, vector<64x256xi8>,
    return
  }
  func.func @transform_0(%arg0: i32) -> i32 {
    %c0_i32 = arith.constant 0 : i32
    %c0_i32_0 = arith.constant 0 : i32
    return %c0_i32 : i32
  }
  func.func @transform_2(%arg0: i32) -> (i32, i32) {
    %c0_i32 = arith.constant 0 : i32
    %c0_i32_0 = arith.constant 0 : i32
    return %arg0, %c0_i32 : i32, i32
  }
  func.func @transform_3(%arg0: i32) -> (i32, i32) {
    %c0_i32 = arith.constant 0 : i32
    %c0_i32_0 = arith.constant 0 : i32
    return %arg0, %c0_i32 : i32, i32
  }
  func.func @transform_4(%arg0: i32) -> (i32, i32) {
    %c0_i32 = arith.constant 0 : i32
    %c0_i32_0 = arith.constant 0 : i32
    return %arg0, %c0_i32 : i32, i32
  }
}

</mosaic_0001>

<llo_original>
// kernel: edge_detection.2
$region0: #{edge_detection.2}
  #allocation0 [shape = 'u32[]', space=smem, size = 0x4, offset = 0x4, fixed_abs, tag = 'smem constant byte address 0x4 - core index']
  #allocation1 [shape = 'u32[144,128]{1,0:T(1,128)}', space=vmem, size = 0x12000, scoped, tag = 'internal scratch']
  #allocation4 [shape = 's32[]', space=sflag, size = 0x4, offset = 0, fixed_abs, tag = 'sflag constant byte address 0x0 - dummy sync flag']
  %s0 = inlined_call_operand.hbm [shape: f32[3,256,256], index: 0, kind: input, shape index: {}]
  %s1 = inlined_call_operand.vmem [shape: f32[256,256], index: 1, kind: output, shape index: {}]
  %s2 = sld [smem:[#allocation0]]
  $region41: #{edge_detection.2} parent=0
    _
  %s4 = ssub.s32 1, %s2
  %s5 = scalar_select 0, %s4, %s2
  $region1: #{edge_detection.2} parent=0
    #allocation2 [shape = 'u8[393216]{0}', space=vmem, size = 0x60000, scoped, tag = 'input window, operand 0']
    #allocation3 [shape = 's32[2]{0}', space=sflag, size = 0x8, scoped, tag = 'scoped memory for edge_detection.2']
    %6 = vsyncpa [#allocation3], 0
    %s7 = scalar_lea.sflag [#allocation3], 1
    %8 = vsyncpa %s7, 0
    loop: start=0, step=1, limit=6
    $region2: #{edge_detection.2} parent=1 // loop_pre_header
      _
    $region3: #{edge_detection.2} parent=1 // loop_header
      %s10 = sphi 0, %s14
      %p11 = scmp.ge.s32.totalorder %s10, 6
      %s20 = sphi 0, %s22
      %s23 = sphi 0, %s20
      %s24 = sphi 0, %s23
      %s40 = sphi 0, %s24
      %s46 = sphi 0, %s48
      %s49 = sphi 0, %s46
      %s50 = sphi 0, %s49
      %s66 = sphi 0, %s50
    $region4: #{edge_detection.2} parent=1 // loop_header_branch
      %13 = sbr.rel (%p11) target = $region8
    $region5: #{edge_detection.2} parent=1 // loop_body
      %s15 = ssub.s32 %s10, 1
      %s16 = ssub.s32 %s10, 2
      %s17 = sadd.s32 %s10, 1
      %s18 = ssub.s32 %s10, %s17
      %p19 = scmp.eq.s32.totalorder %s18, 0
      %s21 = sadd.s32 %s20, 1
      %s22 = scalar_select %p19, %s20, %s21
      %p25 = pneg %p19
      %p26 = scmp.eq.s32.totalorder %s10, 3
      %p27 = por %p25, %p26
      %p28 = scmp.ne.s32.totalorder %s20, %s23
      %p29 = scmp.eq.s32.totalorder %s10, 0
      %p30 = por %p28, %p29
      %p31 = scmp.ne.s32.totalorder %s20, %s23
      %p32 = scmp.eq.s32.totalorder %s15, 3
      %p33 = por %p31, %p32
      %p34 = scmp.ne.s32.totalorder %s23, %s24
      %p35 = scmp.eq.s32.totalorder %s15, 0
      %p36 = por %p34, %p35
      %p37 = scmp.ne.s32.totalorder %s23, %s24
      %p38 = scmp.eq.s32.totalorder %s16, 3
      %p39 = por %p37, %p38
      %p41 = scmp.ne.s32.totalorder %s24, %s40
      %p42 = scmp.eq.s32.totalorder %s16, 0
      %p43 = por %p41, %p42
      %s44 = ssub.s32 %s10, %s17
      %p45 = scmp.eq.s32.totalorder %s44, 0
      %s47 = sadd.s32 %s46, 1
      %s48 = scalar_select %p45, %s46, %s47
      %p51 = pneg %p45
      %p52 = scmp.eq.s32.totalorder %s10, 3
      %p53 = por %p51, %p52
      %p54 = scmp.ne.s32.totalorder %s46, %s49
      %p55 = scmp.eq.s32.totalorder %s10, 0
      %p56 = por %p54, %p55
      %p57 = scmp.ne.s32.totalorder %s46, %s49
      %p58 = scmp.eq.s32.totalorder %s15, 3
      %p59 = por %p57, %p58
      %p60 = scmp.ne.s32.totalorder %s49, %s50
      %p61 = scmp.eq.s32.totalorder %s15, 0
      %p62 = por %p60, %p61
      %p63 = scmp.ne.s32.totalorder %s49, %s50
      %p64 = scmp.eq.s32.totalorder %s16, 3
      %p65 = por %p63, %p64
      %p67 = scmp.ne.s32.totalorder %s50, %s66
      %p68 = scmp.eq.s32.totalorder %s16, 0
      %p69 = por %p67, %p68
      %p70 = scmp.le.s32.totalorder 1, %s10
      %p71 = scmp.lt.s32.totalorder %s10, 5
      %p72 = pnand %p70, %p71
      %p73 = pneg %p72
      // Predicated region
      $region9: #{edge_detection.2} parent=5 // pred_check
        _
      $region10: #{edge_detection.2} parent=5 // pred_check_branch
        %75 = sbr.rel (%p72) target = $region12
      $region11: #{edge_detection.2} parent=5 // pred_region
        %s76 = ssub.s32 %s10, 1
      $region12: #{edge_detection.2} parent=5 // pred_fallthru
        _
      %p77 = scmp.lt.s32.totalorder %s10, 4
      // Predicated region
      $region13: #{edge_detection.2} parent=5 // pred_check
        %p78 = pneg %p77
      $region14: #{edge_detection.2} parent=5 // pred_check_branch
        %80 = sbr.rel (%p78) target = $region16
      $region15: #{edge_detection.2} parent=5 // pred_region
        // Predicated region
        $region17: #{edge_detection.2} parent=15 // pred_check
          %p81 = pneg %p30
        $region18: #{edge_detection.2} parent=15 // pred_check_branch
          %83 = sbr.rel (%p81) target = $region20
        $region19: #{edge_detection.2} parent=15 // pred_region
          #allocation5 [shape = 'u32[6]{0}', space=smem, size = 0x18, scoped, tag = 'DMA stride descriptor']
          %s84 = sand.u32 %s20, 1
          %s85 = scalar_lea.sflag [#allocation3], %s84
          %s86 = sand.u32 %s20, 1
          %s87 = smul.addr %s86, 384
          %s88 = scalar_lea.vmem [#allocation2], %s87
          %s89 = smul.u32 8, %s10
          %s91 = ssub.s32 6144, 6144
          %92 = vsyncadd %s85, %s91
          %s93 = smul.addr %s89, 2
          %s94 = smul.addr %s93, 128
          %s95 = scalar_lea.hbm %s0, %s94
          %s97 = sshll.u32 1, 14
          %s98 = sxor.u32 4294967295, %s97
          %s100 = sld [smem:[#allocation0]]
          %s101 = sadd.s32 2, %s100
          %s103 = sshll.u32 7, 26
          %s104 = sxor.u32 4294967295, %s103
          %s105 = sand.u32 0, %s104
          %s106 = sshll.u32 %s101, 26
          %s107 = sor.u32 %s105, %s106
          %s108 = sshll.u32 %s88, 4
          %s109 = int_to_ptr.vmem [resolvable:$true] %s108
          %115 = sst [smem:[#allocation5]] 8192
          %s116 = scalar_lea.smem [#allocation5], 1
          %117 = sst [smem:[%s116]] 2048
          %s118 = scalar_lea.smem [#allocation5], 2
          %119 = sst [smem:[%s118]] 8
          %s120 = scalar_lea.smem [#allocation5], 3
          %121 = sst [smem:[%s120]] 256
          %s122 = scalar_lea.smem [#allocation5], 4
          %123 = sst [smem:[%s122]] 256
          %s124 = scalar_lea.smem [#allocation5], 5
          %125 = sst [smem:[%s124]] 16
          %127 = dma.general %s95, 6144, %s109, %s85, 131072, [#allocation5], %s107, 0
        $region20: #{edge_detection.2} parent=15 // pred_fallthru
          _
      $region16: #{edge_detection.2} parent=5 // pred_fallthru
        _
      %p128 = scmp.le.s32.totalorder 1, %s10
      %p129 = scmp.lt.s32.totalorder %s10, 5
      %p130 = pnand %p128, %p129
      %p131 = pneg %p130
      // Predicated region
      $region21: #{edge_detection.2} parent=5 // pred_check
        _
      $region22: #{edge_detection.2} parent=5 // pred_check_branch
        %133 = sbr.rel (%p130) target = $region24
      $region23: #{edge_detection.2} parent=5 // pred_region
        %s134 = ssub.s32 %s10, 1
        %s135 = sand.u32 %s23, 1
        %s136 = scalar_lea.sflag [#allocation3], %s135
        %s137 = sand.u32 %s23, 1
        %s138 = smul.addr %s137, 384
        %s139 = scalar_lea.vmem [#allocation2], %s138
        // Predicated region
        $region25: #{edge_detection.2} parent=23 // pred_check
          %p140 = pneg %p36
        $region26: #{edge_detection.2} parent=23 // pred_check_branch
          %142 = sbr.rel (%p140) target = $region28
        $region27: #{edge_detection.2} parent=23 // pred_region
          %143 = dma.done %s136, 6144
        $region28: #{edge_detection.2} parent=23 // pred_fallthru
          _
        %s144 = sand.u32 %s23, 1
        %s145 = scalar_lea.sflag [#allocation3], %s144
        %s146 = sand.u32 %s23, 1
        %s147 = smul.addr %s146, 384
        %s148 = scalar_lea.vmem [#allocation2], %s147
        %p149 = pneg %p36
        %p150 = pneg %p33
        %p151 = pneg %p62
        %p152 = pneg %p59
        %s153 = smul.u32 8, %s15
        %p154 = scmp.lt.s32.totalorder %s153, 31
        %s155 = scalar_select %p154, %s153, 31
        %s156 = smul.addr %s155, 2
        %s157 = smul.addr %s156, 8
        %s158 = scalar_lea.vmem %s1, %s157
        %s159 = smul.u32 8, %s15
        %s160 = smul.u32 8, %s15
        %p161 = scmp.lt.s32.totalorder %s160, 31
        %s162 = scalar_select %p161, %s160, 31
        %s163 = smul.addr %s162, 2
        %s164 = smul.addr %s163, 8
        %s165 = scalar_lea.vmem %s1, %s164
        %s166 = smul.u32 8, %s15
        %v167 = vld [vmem:[%s139] sm:$0xff]
        %v168 = vld [vmem:[%s139 + $0x8] sm:$0xff]
        %v169 = vld [vmem:[%s139 + $0x10] sm:$0xff]
        %v170 = vld [vmem:[%s139 + $0x18] sm:$0xff]
        %v171 = vld [vmem:[%s139 + $0x20] sm:$0xff]
        %v172 = vld [vmem:[%s139 + $0x28] sm:$0xff]
        %v173 = vld [vmem:[%s139 + $0x30] sm:$0xff]
        %v174 = vld [vmem:[%s139 + $0x38] sm:$0xff]
        %v175 = vld [vmem:[%s139 + $0x40] sm:$0xff]
        %v176 = vld [vmem:[%s139 + $0x48] sm:$0xff]
        %v177 = vld [vmem:[%s139 + $0x50] sm:$0xff]
        %v178 = vld [vmem:[%s139 + $0x58] sm:$0xff]
        %v179 = vld [vmem:[%s139 + $0x60] sm:$0xff]
        %v180 = vld [vmem:[%s139 + $0x68] sm:$0xff]
        %v181 = vld [vmem:[%s139 + $0x70] sm:$0xff]
        %v182 = vld [vmem:[%s139 + $0x78] sm:$0xff]
        %s183 = scalar_lea.vmem %s139, 128 [#allocation2]
        %v184 = vld [vmem:[%s183] sm:$0xff]
        %v185 = vld [vmem:[%s183 + $0x8] sm:$0xff]
        %v186 = vld [vmem:[%s183 + $0x10] sm:$0xff]
        %v187 = vld [vmem:[%s183 + $0x18] sm:$0xff]
        %v188 = vld [vmem:[%s183 + $0x20] sm:$0xff]
        %v189 = vld [vmem:[%s183 + $0x28] sm:$0xff]
        %v190 = vld [vmem:[%s183 + $0x30] sm:$0xff]
        %v191 = vld [vmem:[%s183 + $0x38] sm:$0xff]
        %v192 = vld [vmem:[%s183 + $0x40] sm:$0xff]
        %v193 = vld [vmem:[%s183 + $0x48] sm:$0xff]
        %v194 = vld [vmem:[%s183 + $0x50] sm:$0xff]
        %v195 = vld [vmem:[%s183 + $0x58] sm:$0xff]
        %v196 = vld [vmem:[%s183 + $0x60] sm:$0xff]
        %v197 = vld [vmem:[%s183 + $0x68] sm:$0xff]
        %v198 = vld [vmem:[%s183 + $0x70] sm:$0xff]
        %v199 = vld [vmem:[%s183 + $0x78] sm:$0xff]
        %s200 = scalar_lea.vmem %s139, 256 [#allocation2]
        %v201 = vld [vmem:[%s200] sm:$0xff]
        %v202 = vld [vmem:[%s200 + $0x8] sm:$0xff]
        %v203 = vld [vmem:[%s200 + $0x10] sm:$0xff]
        %v204 = vld [vmem:[%s200 + $0x18] sm:$0xff]
        %v205 = vld [vmem:[%s200 + $0x20] sm:$0xff]
        %v206 = vld [vmem:[%s200 + $0x28] sm:$0xff]
        %v207 = vld [vmem:[%s200 + $0x30] sm:$0xff]
        %v208 = vld [vmem:[%s200 + $0x38] sm:$0xff]
        %v209 = vld [vmem:[%s200 + $0x40] sm:$0xff]
        %v210 = vld [vmem:[%s200 + $0x48] sm:$0xff]
        %v211 = vld [vmem:[%s200 + $0x50] sm:$0xff]
        %v212 = vld [vmem:[%s200 + $0x58] sm:$0xff]
        %v213 = vld [vmem:[%s200 + $0x60] sm:$0xff]
        %v214 = vld [vmem:[%s200 + $0x68] sm:$0xff]
        %v215 = vld [vmem:[%s200 + $0x70] sm:$0xff]
        %v216 = vld [vmem:[%s200 + $0x78] sm:$0xff]
        %v217 = vmul.f32 %v167, 0.114
        %v218 = vmul.f32 %v168, 0.114
        %v219 = vmul.f32 %v169, 0.114
        %v220 = vmul.f32 %v170, 0.114
        %v221 = vmul.f32 %v171, 0.114
        %v222 = vmul.f32 %v172, 0.114
        %v223 = vmul.f32 %v173, 0.114
        %v224 = vmul.f32 %v174, 0.114
        %v225 = vmul.f32 %v175, 0.114
        %v226 = vmul.f32 %v176, 0.114
        %v227 = vmul.f32 %v177, 0.114
        %v228 = vmul.f32 %v178, 0.114
        %v229 = vmul.f32 %v179, 0.114
        %v230 = vmul.f32 %v180, 0.114
        %v231 = vmul.f32 %v181, 0.114
        %v232 = vmul.f32 %v182, 0.114
        %v233 = vmul.f32 %v184, 0.587
        %v234 = vmul.f32 %v185, 0.587
        %v235 = vmul.f32 %v186, 0.587
        %v236 = vmul.f32 %v187, 0.587
        %v237 = vmul.f32 %v188, 0.587
        %v238 = vmul.f32 %v189, 0.587
        %v239 = vmul.f32 %v190, 0.587
        %v240 = vmul.f32 %v191, 0.587
        %v241 = vmul.f32 %v192, 0.587
        %v242 = vmul.f32 %v193, 0.587
        %v243 = vmul.f32 %v194, 0.587
        %v244 = vmul.f32 %v195, 0.587
        %v245 = vmul.f32 %v196, 0.587
        %v246 = vmul.f32 %v197, 0.587
        %v247 = vmul.f32 %v198, 0.587
        %v248 = vmul.f32 %v199, 0.587
        %v249 = vadd.f32 %v217, %v233
        %v250 = vadd.f32 %v218, %v234
        %v251 = vadd.f32 %v219, %v235
        %v252 = vadd.f32 %v220, %v236
        %v253 = vadd.f32 %v221, %v237
        %v254 = vadd.f32 %v222, %v238
        %v255 = vadd.f32 %v223, %v239
        %v256 = vadd.f32 %v224, %v240
        %v257 = vadd.f32 %v225, %v241
        %v258 = vadd.f32 %v226, %v242
        %v259 = vadd.f32 %v227, %v243
        %v260 = vadd.f32 %v228, %v244
        %v261 = vadd.f32 %v229, %v245
        %v262 = vadd.f32 %v230, %v246
        %v263 = vadd.f32 %v231, %v247
        %v264 = vadd.f32 %v232, %v248
        %v265 = vmul.f32 %v201, 0.299
        %v266 = vmul.f32 %v202, 0.299
        %v267 = vmul.f32 %v203, 0.299
        %v268 = vmul.f32 %v204, 0.299
        %v269 = vmul.f32 %v205, 0.299
        %v270 = vmul.f32 %v206, 0.299
        %v271 = vmul.f32 %v207, 0.299
        %v272 = vmul.f32 %v208, 0.299
        %v273 = vmul.f32 %v209, 0.299
        %v274 = vmul.f32 %v210, 0.299
        %v275 = vmul.f32 %v211, 0.299
        %v276 = vmul.f32 %v212, 0.299
        %v277 = vmul.f32 %v213, 0.299
        %v278 = vmul.f32 %v214, 0.299
        %v279 = vmul.f32 %v215, 0.299
        %v280 = vmul.f32 %v216, 0.299
        %v281 = vadd.f32 %v249, %v265
        %v282 = vadd.f32 %v250, %v266
        %v283 = vadd.f32 %v251, %v267
        %v284 = vadd.f32 %v252, %v268
        %v285 = vadd.f32 %v253, %v269
        %v286 = vadd.f32 %v254, %v270
        %v287 = vadd.f32 %v255, %v271
        %v288 = vadd.f32 %v256, %v272
        %v289 = vadd.f32 %v257, %v273
        %v290 = vadd.f32 %v258, %v274
        %v291 = vadd.f32 %v259, %v275
        %v292 = vadd.f32 %v260, %v276
        %v293 = vadd.f32 %v261, %v277
        %v294 = vadd.f32 %v262, %v278
        %v295 = vadd.f32 %v263, %v279
        %v296 = vadd.f32 %v264, %v280
        %v297 = vmul.f32 %v281, 255.0
        %v298 = vmul.f32 %v282, 255.0
        %v299 = vmul.f32 %v283, 255.0
        %v300 = vmul.f32 %v284, 255.0
        %v301 = vmul.f32 %v285, 255.0
        %v302 = vmul.f32 %v286, 255.0
        %v303 = vmul.f32 %v287, 255.0
        %v304 = vmul.f32 %v288, 255.0
        %v305 = vmul.f32 %v289, 255.0
        %v306 = vmul.f32 %v290, 255.0
        %v307 = vmul.f32 %v291, 255.0
        %v308 = vmul.f32 %v292, 255.0
        %v309 = vmul.f32 %v293, 255.0
        %v310 = vmul.f32 %v294, 255.0
        %v311 = vmul.f32 %v295, 255.0
        %v312 = vmul.f32 %v296, 255.0
        %313 = vst [vmem:[%s165] sm:$0xff] %v297
        %314 = vst [vmem:[%s165 + $0x8] sm:$0xff] %v298
        %315 = vst [vmem:[%s165 + $0x10] sm:$0xff] %v299
        %316 = vst [vmem:[%s165 + $0x18] sm:$0xff] %v300
        %317 = vst [vmem:[%s165 + $0x20] sm:$0xff] %v301
        %318 = vst [vmem:[%s165 + $0x28] sm:$0xff] %v302
        %319 = vst [vmem:[%s165 + $0x30] sm:$0xff] %v303
        %320 = vst [vmem:[%s165 + $0x38] sm:$0xff] %v304
        %321 = vst [vmem:[%s165 + $0x40] sm:$0xff] %v305
        %322 = vst [vmem:[%s165 + $0x48] sm:$0xff] %v306
        %323 = vst [vmem:[%s165 + $0x50] sm:$0xff] %v307
        %324 = vst [vmem:[%s165 + $0x58] sm:$0xff] %v308
        %325 = vst [vmem:[%s165 + $0x60] sm:$0xff] %v309
        %326 = vst [vmem:[%s165 + $0x68] sm:$0xff] %v310
        %327 = vst [vmem:[%s165 + $0x70] sm:$0xff] %v311
        %328 = vst [vmem:[%s165 + $0x78] sm:$0xff] %v312
        %s329 = smul.u32 8, %s15
        %p330 = scmp.lt.s32.totalorder %s329, 31
        %s331 = scalar_select %p330, %s329, 31
        %s332 = smul.addr %s331, 2
        %s333 = smul.addr %s332, 8
        %s334 = scalar_lea.vmem %s1, %s333
        // Predicated region
        $region29: #{edge_detection.2} parent=23 // pred_check
          %p335 = pneg %p59
        $region30: #{edge_detection.2} parent=23 // pred_check_branch
          %337 = sbr.rel (%p335) target = $region32
        $region31: #{edge_detection.2} parent=23 // pred_region
          %s338 = smul.u32 8, %s15
        $region32: #{edge_detection.2} parent=23 // pred_fallthru
          _
      $region24: #{edge_detection.2} parent=5 // pred_fallthru
        _
      %p339 = scmp.le.s32.totalorder 2, %s10
      // Predicated region
      $region33: #{edge_detection.2} parent=5 // pred_check
        %p340 = pneg %p339
      $region34: #{edge_detection.2} parent=5 // pred_check_branch
        %342 = sbr.rel (%p340) target = $region36
      $region35: #{edge_detection.2} parent=5 // pred_region
        %s343 = ssub.s32 %s10, 2
        // Predicated region
        $region37: #{edge_detection.2} parent=35 // pred_check
          %p344 = pneg %p65
        $region38: #{edge_detection.2} parent=35 // pred_check_branch
          %346 = sbr.rel (%p344) target = $region40
        $region39: #{edge_detection.2} parent=35 // pred_region
          %s347 = smul.u32 8, %s16
          %p348 = scmp.lt.s32.totalorder %s347, 31
          %s349 = scalar_select %p348, %s347, 31
          %s350 = smul.addr %s349, 2
          %s351 = smul.addr %s350, 8
          %s352 = scalar_lea.vmem %s1, %s351
        $region40: #{edge_detection.2} parent=35 // pred_fallthru
          _
      $region36: #{edge_detection.2} parent=5 // pred_fallthru
        _
    $region6: #{edge_detection.2} parent=1 // loop_footer
      %s14 = sadd.s32 1, %s10
    $region7: #{edge_detection.2} parent=1 // loop_footer_branch
      %9 = sbr.rel target = $region3
    $region8: #{edge_detection.2} parent=1 // loop_exit
      _
    %353 = vsyncpa [#allocation3], 1
    %s354 = scalar_lea.sflag [#allocation3], 1
    %355 = vsyncpa %s354, 1

// kernel: edge_detection.3
$region0: #{edge_detection.3}
  #allocation0 [shape = 'u32[]', space=smem, size = 0x4, offset = 0x4, fixed_abs, tag = 'smem constant byte address 0x4 - core index']
  #allocation1 [shape = 'u32[144,128]{1,0:T(1,128)}', space=vmem, size = 0x12000, scoped, tag = 'internal scratch']
  #allocation2 [shape = 'f32[72,256]{1,0:T(8,128)}', space=vmem, size = 0x12000, scoped, tag = 'scratch operand']
  #allocation3 [shape = 's32[1]{0}', space=sflag, size = 0x4, scoped, tag = 'scratch operand']
  #allocation11 [shape = 's32[]', space=sflag, size = 0x4, offset = 0, fixed_abs, tag = 'sflag constant byte address 0x0 - dummy sync flag']
  %s0 = inlined_call_operand.vmem [shape: f32[3], index: 0, kind: input, shape index: {}]
  %s1 = inlined_call_operand.vmem [shape: f32[264,256], index: 1, kind: input, shape index: {}]
  %s2 = inlined_call_operand.hbm [shape: u8[256,256], index: 2, kind: output, shape index: {0}]
  %s3 = inlined_call_operand.hbm [shape: u8[256,256], index: 3, kind: output, shape index: {1}]
  %s4 = inlined_call_operand.hbm [shape: u8[256,256], index: 4, kind: output, shape index: {2}]
  %5 = xla_tuple %s2, %s3, %s4
  %s6 = sld [smem:[#allocation0]]
  $region91: #{edge_detection.3} parent=0
    _
  %s8 = ssub.s32 1, %s6
  %s9 = scalar_select 0, %s8, %s6
  $region1: #{edge_detection.3} parent=0
    #allocation4 [shape = 'u8[512]{0}', space=smem, size = 0x200, scoped, tag = 'input window, operand 0, single buffered']
    #allocation5 [shape = 's32[2]{0}', space=sflag, size = 0x8, scoped, tag = 'scoped memory for edge_detection.3']
    #allocation6 [shape = 's32[2]{0}', space=sflag, size = 0x8, scoped, tag = 'scoped memory for edge_detection.3']
    #allocation7 [shape = 'u8[32768]{0}', space=vmem, size = 0x8000, scoped, tag = 'output window, operand 0']
    #allocation8 [shape = 'u8[32768]{0}', space=vmem, size = 0x8000, scoped, tag = 'output window, operand 1']
    #allocation9 [shape = 's32[2]{0}', space=sflag, size = 0x8, scoped, tag = 'scoped memory for edge_detection.3']
    #allocation10 [shape = 'u8[32768]{0}', space=vmem, size = 0x8000, scoped, tag = 'output window, operand 2']
    %10 = vsyncpa [#allocation6], 0
    %11 = vsyncpa [#allocation5], 0
    %s12 = scalar_lea.sflag [#allocation5], 1
    %13 = vsyncpa %s12, 0
    %14 = vsyncpa [#allocation9], 0
    %s15 = scalar_lea.sflag [#allocation9], 1
    %16 = vsyncpa %s15, 0
    loop: start=0, step=1, limit=6
    $region2: #{edge_detection.3} parent=1 // loop_pre_header
      _
    $region3: #{edge_detection.3} parent=1 // loop_header
      %s18 = sphi 0, %s22
      %p19 = scmp.ge.s32.totalorder %s18, 6
      %s26 = sphi 0, %s26
      %s28 = sphi 0, %s26
      %s29 = sphi 0, %s28
      %s43 = sphi 0, %s29
      %s49 = sphi 0, %s51
      %s52 = sphi 0, %s49
      %s53 = sphi 0, %s52
      %s69 = sphi 0, %s53
      %s75 = sphi 0, %s77
      %s78 = sphi 0, %s75
      %s79 = sphi 0, %s78
      %s95 = sphi 0, %s79
      %s101 = sphi 0, %s103
      %s104 = sphi 0, %s101
      %s105 = sphi 0, %s104
      %s121 = sphi 0, %s105
    $region4: #{edge_detection.3} parent=1 // loop_header_branch
      %21 = sbr.rel (%p19) target = $region8
    $region5: #{edge_detection.3} parent=1 // loop_body
      %s23 = ssub.s32 %s18, 1
      %s24 = ssub.s32 %s18, 2
      %s25 = sadd.s32 %s18, 1
      %s27 = sadd.s32 %s26, 1
      %p30 = scmp.eq.s32.totalorder %s18, 3
      %p31 = scmp.ne.s32.totalorder %s26, %s28
      %p32 = scmp.eq.s32.totalorder %s18, 0
      %p33 = por %p31, %p32
      %p34 = scmp.ne.s32.totalorder %s26, %s28
      %p35 = scmp.eq.s32.totalorder %s23, 3
      %p36 = por %p34, %p35
      %p37 = scmp.ne.s32.totalorder %s28, %s29
      %p38 = scmp.eq.s32.totalorder %s23, 0
      %p39 = por %p37, %p38
      %p40 = scmp.ne.s32.totalorder %s28, %s29
      %p41 = scmp.eq.s32.totalorder %s24, 3
      %p42 = por %p40, %p41
      %p44 = scmp.ne.s32.totalorder %s29, %s43
      %p45 = scmp.eq.s32.totalorder %s24, 0
      %p46 = por %p44, %p45
      %s47 = ssub.s32 %s18, %s25
      %p48 = scmp.eq.s32.totalorder %s47, 0
      %s50 = sadd.s32 %s49, 1
      %s51 = scalar_select %p48, %s49, %s50
      %p54 = pneg %p48
      %p55 = scmp.eq.s32.totalorder %s18, 3
      %p56 = por %p54, %p55
      %p57 = scmp.ne.s32.totalorder %s49, %s52
      %p58 = scmp.eq.s32.totalorder %s18, 0
      %p59 = por %p57, %p58
      %p60 = scmp.ne.s32.totalorder %s49, %s52
      %p61 = scmp.eq.s32.totalorder %s23, 3
      %p62 = por %p60, %p61
      %p63 = scmp.ne.s32.totalorder %s52, %s53
      %p64 = scmp.eq.s32.totalorder %s23, 0
      %p65 = por %p63, %p64
      %p66 = scmp.ne.s32.totalorder %s52, %s53
      %p67 = scmp.eq.s32.totalorder %s24, 3
      %p68 = por %p66, %p67
      %p70 = scmp.ne.s32.totalorder %s53, %s69
      %p71 = scmp.eq.s32.totalorder %s24, 0
      %p72 = por %p70, %p71
      %s73 = ssub.s32 %s18, %s25
      %p74 = scmp.eq.s32.totalorder %s73, 0
      %s76 = sadd.s32 %s75, 1
      %s77 = scalar_select %p74, %s75, %s76
      %p80 = pneg %p74
      %p81 = scmp.eq.s32.totalorder %s18, 3
      %p82 = por %p80, %p81
      %p83 = scmp.ne.s32.totalorder %s75, %s78
      %p84 = scmp.eq.s32.totalorder %s18, 0
      %p85 = por %p83, %p84
      %p86 = scmp.ne.s32.totalorder %s75, %s78
      %p87 = scmp.eq.s32.totalorder %s23, 3
      %p88 = por %p86, %p87
      %p89 = scmp.ne.s32.totalorder %s78, %s79
      %p90 = scmp.eq.s32.totalorder %s23, 0
      %p91 = por %p89, %p90
      %p92 = scmp.ne.s32.totalorder %s78, %s79
      %p93 = scmp.eq.s32.totalorder %s24, 3
      %p94 = por %p92, %p93
      %p96 = scmp.ne.s32.totalorder %s79, %s95
      %p97 = scmp.eq.s32.totalorder %s24, 0
      %p98 = por %p96, %p97
      %s99 = ssub.s32 %s18, %s25
      %p100 = scmp.eq.s32.totalorder %s99, 0
      %s102 = sadd.s32 %s101, 1
      %s103 = scalar_select %p100, %s101, %s102
      %p106 = pneg %p100
      %p107 = scmp.eq.s32.totalorder %s18, 3
      %p108 = por %p106, %p107
      %p109 = scmp.ne.s32.totalorder %s101, %s104
      %p110 = scmp.eq.s32.totalorder %s18, 0
      %p111 = por %p109, %p110
      %p112 = scmp.ne.s32.totalorder %s101, %s104
      %p113 = scmp.eq.s32.totalorder %s23, 3
      %p114 = por %p112, %p113
      %p115 = scmp.ne.s32.totalorder %s104, %s105
      %p116 = scmp.eq.s32.totalorder %s23, 0
      %p117 = por %p115, %p116
      %p118 = scmp.ne.s32.totalorder %s104, %s105
      %p119 = scmp.eq.s32.totalorder %s24, 3
      %p120 = por %p118, %p119
      %p122 = scmp.ne.s32.totalorder %s105, %s121
      %p123 = scmp.eq.s32.totalorder %s24, 0
      %p124 = por %p122, %p123
      %p125 = scmp.le.s32.totalorder 1, %s18
      %p126 = scmp.lt.s32.totalorder %s18, 5
      %p127 = pnand %p125, %p126
      %p128 = pneg %p127
      // Predicated region
      $region9: #{edge_detection.3} parent=5 // pred_check
        _
      $region10: #{edge_detection.3} parent=5 // pred_check_branch
        %130 = sbr.rel (%p127) target = $region12
      $region11: #{edge_detection.3} parent=5 // pred_region
        %s131 = ssub.s32 %s18, 1
        // Predicated region
        $region13: #{edge_detection.3} parent=11 // pred_check
          %p132 = pneg %p39
        $region14: #{edge_detection.3} parent=11 // pred_check_branch
          %134 = sbr.rel (%p132) target = $region16
        $region15: #{edge_detection.3} parent=11 // pred_region
          %s136 = ssub.s32 16, 16
          %137 = vsyncadd [#allocation6], %s136
          %s139 = sshll.u32 %s0, 4
          %s140 = int_to_ptr.vmem [resolvable:$true] %s139
          %142 = dma.vmem_to_smem %s140, 16, [#allocation4], [#allocation6]
        $region16: #{edge_detection.3} parent=11 // pred_fallthru
          _
      $region12: #{edge_detection.3} parent=5 // pred_fallthru
        _
      %p143 = scmp.lt.s32.totalorder %s18, 4
      // Predicated region
      $region17: #{edge_detection.3} parent=5 // pred_check
        %p144 = pneg %p143
      $region18: #{edge_detection.3} parent=5 // pred_check_branch
        %146 = sbr.rel (%p144) target = $region20
      $region19: #{edge_detection.3} parent=5 // pred_region
        _
      $region20: #{edge_detection.3} parent=5 // pred_fallthru
        _
      %p147 = scmp.le.s32.totalorder 1, %s18
      %p148 = scmp.lt.s32.totalorder %s18, 5
      %p149 = pnand %p147, %p148
      %p150 = pneg %p149
      // Predicated region
      $region21: #{edge_detection.3} parent=5 // pred_check
        _
      $region22: #{edge_detection.3} parent=5 // pred_check_branch
        %152 = sbr.rel (%p149) target = $region24
      $region23: #{edge_detection.3} parent=5 // pred_region
        %s153 = ssub.s32 %s18, 1
        // Predicated region
        $region25: #{edge_detection.3} parent=23 // pred_check
          %p154 = pneg %p39
        $region26: #{edge_detection.3} parent=23 // pred_check_branch
          %156 = sbr.rel (%p154) target = $region28
        $region27: #{edge_detection.3} parent=23 // pred_region
          %157 = dma.done [#allocation6], 16
        $region28: #{edge_detection.3} parent=23 // pred_fallthru
          _
        %158 = sfence
        %p159 = pneg %p39
        %p160 = pneg %p36
        %p161 = pneg %p65
        %p162 = pneg %p62
        %s163 = sand.u32 %s52, 1
        %s164 = scalar_lea.sflag [#allocation5], %s163
        %s165 = sand.u32 %s52, 1
        %s166 = smul.addr %s165, 32
        %s167 = scalar_lea.vmem [#allocation7], %s166
        %p168 = pneg %p91
        %p169 = pneg %p88
        %s170 = sand.u32 %s23, 1
        %s171 = scalar_lea.sflag [#allocation9], %s170
        %s172 = sand.u32 %s78, 1
        %s173 = smul.addr %s172, 32
        %s174 = scalar_lea.vmem [#allocation8], %s173
        %p175 = pneg %p117
        %p176 = pneg %p114
        %s177 = sand.u32 %s23, 1
        %s178 = scalar_lea.sflag [#allocation9], %s177
        %s179 = sand.u32 %s104, 1
        %s180 = smul.addr %s179, 32
        %s181 = scalar_lea.vmem [#allocation10], %s180
        %s182 = smul.u32 2, %s23
        %s183 = smul.u32 2, %s23
        %s184 = smul.u32 2, %s23
        %s187 = smul.u32 %s23, 64
        %s188 = sshra.s32 %s187, 3
        %s189 = sand.u32 %s187, 7
        %s190 = smul.u32 %s188, 2
        %s191 = smul.addr %s190, 8
        %s192 = scalar_lea.vmem %s1, %s191
        %p194 = scmp.lt.u32.totalorder 144, 8
        %p195 = pneg %p194
        // Predicated region
        $region29: #{edge_detection.3} parent=23 // pred_check
          _
        $region30: #{edge_detection.3} parent=23 // pred_check_branch
          %197 = sbr.rel (%p194) target = $region32
        $region31: #{edge_detection.3} parent=23 // pred_region
          %s213 = sand.u32 144, 7
          %p214 = scmp.eq.s32.totalorder %s213, 0
          // Predicated region
          $region44: #{edge_detection.3} parent=31 // pred_check
            %p215 = pneg %p214
          $region45: #{edge_detection.3} parent=31 // pred_check_branch
            %217 = sbr.rel (%p215) target = $region47
          $region46: #{edge_detection.3} parent=31 // pred_region
            loop: start=0, step=1, limit=1
            $region48: #{edge_detection.3} parent=46 // loop_pre_header
              _
            $region49: #{edge_detection.3} parent=46 // loop_header
              %s219 = sphi 0, %s223
              %p220 = scmp.ge.s32.totalorder %s219, 1
              %s224 = sphi %s192, %s192
              %s225 = sphi [#allocation2], [#allocation2]
            $region50: #{edge_detection.3} parent=46 // loop_header_branch
              %222 = sbr.rel (%p220) target = $region54
            $region51: #{edge_detection.3} parent=46 // loop_body
              %v226 = vld [vmem:[%s224] sm:$0xff]
              %227 = vst [vmem:[%s225] sm:$0xff] %v226
              %v228 = vld [vmem:[%s224 + $0x8] sm:$0xff]
              %229 = vst [vmem:[%s225 + $0x8] sm:$0xff] %v228
              %v230 = vld [vmem:[%s224 + $0x10] sm:$0xff]
              %231 = vst [vmem:[%s225 + $0x10] sm:$0xff] %v230
              %v232 = vld [vmem:[%s224 + $0x18] sm:$0xff]
              %233 = vst [vmem:[%s225 + $0x18] sm:$0xff] %v232
              %v234 = vld [vmem:[%s224 + $0x20] sm:$0xff]
              %235 = vst [vmem:[%s225 + $0x20] sm:$0xff] %v234
              %v236 = vld [vmem:[%s224 + $0x28] sm:$0xff]
              %237 = vst [vmem:[%s225 + $0x28] sm:$0xff] %v236
              %v238 = vld [vmem:[%s224 + $0x30] sm:$0xff]
              %239 = vst [vmem:[%s225 + $0x30] sm:$0xff] %v238
              %v240 = vld [vmem:[%s224 + $0x38] sm:$0xff]
              %241 = vst [vmem:[%s225 + $0x38] sm:$0xff] %v240
              %v242 = vld [vmem:[%s224 + $0x40] sm:$0xff]
              %243 = vst [vmem:[%s225 + $0x40] sm:$0xff] %v242
              %v244 = vld [vmem:[%s224 + $0x48] sm:$0xff]
              %245 = vst [vmem:[%s225 + $0x48] sm:$0xff] %v244
              %v246 = vld [vmem:[%s224 + $0x50] sm:$0xff]
              %247 = vst [vmem:[%s225 + $0x50] sm:$0xff] %v246
              %v248 = vld [vmem:[%s224 + $0x58] sm:$0xff]
              %249 = vst [vmem:[%s225 + $0x58] sm:$0xff] %v248
              %v250 = vld [vmem:[%s224 + $0x60] sm:$0xff]
              %251 = vst [vmem:[%s225 + $0x60] sm:$0xff] %v250
              %v252 = vld [vmem:[%s224 + $0x68] sm:$0xff]
              %253 = vst [vmem:[%s225 + $0x68] sm:$0xff] %v252
              %v254 = vld [vmem:[%s224 + $0x70] sm:$0xff]
              %255 = vst [vmem:[%s225 + $0x70] sm:$0xff] %v254
              %v256 = vld [vmem:[%s224 + $0x78] sm:$0xff]
              %257 = vst [vmem:[%s225 + $0x78] sm:$0xff] %v256
              %v258 = vld [vmem:[%s224 + $0x80] sm:$0xff]
              %259 = vst [vmem:[%s225 + $0x80] sm:$0xff] %v258
              %v260 = vld [vmem:[%s224 + $0x88] sm:$0xff]
              %261 = vst [vmem:[%s225 + $0x88] sm:$0xff] %v260
            $region52: #{edge_detection.3} parent=46 // loop_footer
              %s223 = sadd.s32 1, %s219
            $region53: #{edge_detection.3} parent=46 // loop_footer_branch
              %218 = sbr.rel target = $region49
            $region54: #{edge_detection.3} parent=46 // loop_exit
              _
          $region47: #{edge_detection.3} parent=31 // pred_fallthru
            _
          %p262 = pneg %p214
          // Predicated region
          $region55: #{edge_detection.3} parent=31 // pred_check
            _
          $region56: #{edge_detection.3} parent=31 // pred_check_branch
            %264 = sbr.rel (%p214) target = $region58
          $region57: #{edge_detection.3} parent=31 // pred_region
            %s265 = sand.u32 144, 7
          $region58: #{edge_detection.3} parent=31 // pred_fallthru
            _
        $region32: #{edge_detection.3} parent=23 // pred_fallthru
          _
        // Predicated region
        $region33: #{edge_detection.3} parent=23 // pred_check
          %p198 = pneg %p194
        $region34: #{edge_detection.3} parent=23 // pred_check_branch
          %200 = sbr.rel (%p198) target = $region36
        $region35: #{edge_detection.3} parent=23 // pred_region
          %s201 = sshll.u32 1, 144
          %s202 = ssub.s32 %s201, 1
          loop: start=0, step=1, limit=1
          $region37: #{edge_detection.3} parent=35 // loop_pre_header
            _
          $region38: #{edge_detection.3} parent=35 // loop_header
            %s204 = sphi 0, %s208
            %p205 = scmp.ge.s32.totalorder %s204, 1
            %s209 = sphi %s192, %s192
            %s210 = sphi [#allocation2], [#allocation2]
          $region39: #{edge_detection.3} parent=35 // loop_header_branch
            %207 = sbr.rel (%p205) target = $region43
          $region40: #{edge_detection.3} parent=35 // loop_body
            %v211 = vld [vmem:[%s209] sm:%s202]
            %212 = vst [vmem:[%s210] sm:%s202] %v211
          $region41: #{edge_detection.3} parent=35 // loop_footer
            %s208 = sadd.s32 1, %s204
          $region42: #{edge_detection.3} parent=35 // loop_footer_branch
            %203 = sbr.rel target = $region38
          $region43: #{edge_detection.3} parent=35 // loop_exit
            _
        $region36: #{edge_detection.3} parent=23 // pred_fallthru
          _
        // Predicated region
        $region59: #{edge_detection.3} parent=23 // pred_check
          _
        $region60: #{edge_detection.3} parent=23 // pred_check_branch
          %268 = sbr.rel (0) target = $region62
        $region61: #{edge_detection.3} parent=23 // pred_region
          %269 = vsyncadd [#allocation3], 2304
        $region62: #{edge_detection.3} parent=23 // pred_fallthru
          _
        %s270 = sld [smem:[#allocation4]]
        %s271 = sld [smem:[#allocation4 + $0x1]]
        %s272 = sld [smem:[#allocation4 + $0x2]]
        %v273 = vlaneseq
        %v274 = vand.u32 %v273, 127
        %v275 = vadd.s32 %v274, 128
        %v276 = vadd.s32 %v274, 4294967294
        %v277 = vadd.s32 %v275, 4294967294
        %vm278 = vcmp.ge.s32.totalorder %v276, 0
        %vm279 = vcmp.ge.s32.totalorder %v277, 0
        %vm280 = vcmp.lt.s32.totalorder %v276, 256
        %vm281 = vcmp.lt.s32.totalorder %v277, 256
        %vm282 = vmand %vm278, %vm280
        %vm283 = vmand %vm279, %vm281
        %v284 = vadd.s32 %v274, 4294967295
        %v285 = vadd.s32 %v275, 4294967295
        %vm286 = vcmp.ge.s32.totalorder %v284, 0
        %vm287 = vcmp.ge.s32.totalorder %v285, 0
        %vm288 = vcmp.lt.s32.totalorder %v284, 256
        %vm289 = vcmp.lt.s32.totalorder %v285, 256
        %vm290 = vmand %vm286, %vm288
        %vm291 = vmand %vm287, %vm289
        %v292 = vadd.s32 %v274, 1
        %v293 = vadd.s32 %v275, 1
        %vm294 = vcmp.ge.s32.totalorder %v292, 0
        %vm295 = vcmp.ge.s32.totalorder %v293, 0
        %vm296 = vcmp.lt.s32.totalorder %v292, 256
        %vm297 = vcmp.lt.s32.totalorder %v293, 256
        %vm298 = vmand %vm294, %vm296
        %vm299 = vmand %vm295, %vm297
        %v300 = vadd.s32 %v274, 2
        %v301 = vadd.s32 %v275, 2
        %vm302 = vcmp.ge.s32.totalorder %v300, 0
        %vm303 = vcmp.ge.s32.totalorder %v301, 0
        %vm304 = vcmp.lt.s32.totalorder %v300, 256
        %vm305 = vcmp.lt.s32.totalorder %v301, 256
        %vm306 = vmand %vm302, %vm304
        %vm307 = vmand %vm303, %vm305
        %s308 = sadd.s32 %s187, 4294967293
        %v309 = vlaneseq
        %v310 = vshrl.u32 %v309, 7
        %v311 = vadd.s32 %v310, 8
        %v312 = vadd.s32 %v310, 16
        %v313 = vadd.s32 %v310, 24
        %v314 = vadd.s32 %v310, 32
        %v315 = vadd.s32 %v310, 40
        %v316 = vadd.s32 %v310, 48
        %v317 = vadd.s32 %v310, 56
        %v318 = vadd.s32 %v310, 64
        %v319 = vstv %s308
        %v320 = vadd.s32 %v310, %v319
        %v321 = vadd.s32 %v311, %v319
        %v322 = vadd.s32 %v312, %v319
        %v323 = vadd.s32 %v313, %v319
        %v324 = vadd.s32 %v314, %v319
        %v325 = vadd.s32 %v315, %v319
        %v326 = vadd.s32 %v316, %v319
        %v327 = vadd.s32 %v317, %v319
        %v328 = vadd.s32 %v318, %v319
        %vm329 = vcmp.ge.s32.totalorder %v320, 0
        %vm330 = vcmp.ge.s32.totalorder %v321, 0
        %vm331 = vcmp.ge.s32.totalorder %v322, 0
        %vm332 = vcmp.ge.s32.totalorder %v323, 0
        %vm333 = vcmp.ge.s32.totalorder %v324, 0
        %vm334 = vcmp.ge.s32.totalorder %v325, 0
        %vm335 = vcmp.ge.s32.totalorder %v326, 0
        %vm336 = vcmp.ge.s32.totalorder %v327, 0
        %vm337 = vcmp.ge.s32.totalorder %v328, 0
        %vm338 = vcmp.lt.s32.totalorder %v320, 256
        %vm339 = vcmp.lt.s32.totalorder %v321, 256
        %vm340 = vcmp.lt.s32.totalorder %v322, 256
        %vm341 = vcmp.lt.s32.totalorder %v323, 256
        %vm342 = vcmp.lt.s32.totalorder %v324, 256
        %vm343 = vcmp.lt.s32.totalorder %v325, 256
        %vm344 = vcmp.lt.s32.totalorder %v326, 256
        %vm345 = vcmp.lt.s32.totalorder %v327, 256
        %vm346 = vcmp.lt.s32.totalorder %v328, 256
        %vm347 = vmand %vm329, %vm338
        %vm348 = vmand %vm330, %vm339
        %vm349 = vmand %vm331, %vm340
        %vm350 = vmand %vm332, %vm341
        %vm351 = vmand %vm333, %vm342
        %vm352 = vmand %vm334, %vm343
        %vm353 = vmand %vm335, %vm344
        %vm354 = vmand %vm336, %vm345
        %vm355 = vmand %vm337, %vm346
        %vm356 = vcmp.lt.s32.totalorder %v274, 256
        %vm357 = vcmp.lt.s32.totalorder %v275, 256
        %vm358 = vmand %vm347, %vm356
        %vm359 = vmand %vm347, %vm357
        %vm360 = vmand %vm348, %vm356
        %vm361 = vmand %vm348, %vm357
        %vm362 = vmand %vm349, %vm356
        %vm363 = vmand %vm349, %vm357
        %vm364 = vmand %vm350, %vm356
        %vm365 = vmand %vm350, %vm357
        %vm366 = vmand %vm351, %vm356
        %vm367 = vmand %vm351, %vm357
        %vm368 = vmand %vm352, %vm356
        %vm369 = vmand %vm352, %vm357
        %vm370 = vmand %vm353, %vm356
        %vm371 = vmand %vm353, %vm357
        %vm372 = vmand %vm354, %vm356
        %vm373 = vmand %vm354, %vm357
        %vm374 = vmand %vm355, %vm356
        %vm375 = vmand %vm355, %vm357
        %s376 = smul.u32 8, 9
        %s377 = smul.u32 %s376, 2
        %s378 = sshll.u32 %s377, 4
        %379 = dma.done [#allocation3], %s378
        %v380 = vld [vmem:[#allocation2] sm:$0xff]
        %v381 = vld [vmem:[#allocation2 + $0x8] sm:$0xff]
        %v382 = vld [vmem:[#allocation2 + $0x10] sm:$0xff]
        %v383 = vld [vmem:[#allocation2 + $0x18] sm:$0xff]
        %v384 = vld [vmem:[#allocation2 + $0x20] sm:$0xff]
        %v385 = vld [vmem:[#allocation2 + $0x28] sm:$0xff]
        %v386 = vld [vmem:[#allocation2 + $0x30] sm:$0xff]
        %v387 = vld [vmem:[#allocation2 + $0x38] sm:$0xff]
        %v388 = vld [vmem:[#allocation2 + $0x40] sm:$0xff]
        %v389 = vld [vmem:[#allocation2 + $0x48] sm:$0xff]
        %v390 = vld [vmem:[#allocation2 + $0x50] sm:$0xff]
        %v391 = vld [vmem:[#allocation2 + $0x58] sm:$0xff]
        %v392 = vld [vmem:[#allocation2 + $0x60] sm:$0xff]
        %v393 = vld [vmem:[#allocation2 + $0x68] sm:$0xff]
        %v394 = vld [vmem:[#allocation2 + $0x70] sm:$0xff]
        %v395 = vld [vmem:[#allocation2 + $0x78] sm:$0xff]
        %v396 = vld [vmem:[#allocation2 + $0x80] sm:$0xff]
        %v397 = vld [vmem:[#allocation2 + $0x88] sm:$0xff]
        %v398 = vand.u32 2147483647, %v380
        %v399 = vand.u32 2147483647, %v381
        %v400 = vand.u32 2147483647, %v382
        %v401 = vand.u32 2147483647, %v383
        %v402 = vand.u32 2147483647, %v384
        %v403 = vand.u32 2147483647, %v385
        %v404 = vand.u32 2147483647, %v386
        %v405 = vand.u32 2147483647, %v387
        %v406 = vand.u32 2147483647, %v388
        %v407 = vand.u32 2147483647, %v389
        %v408 = vand.u32 2147483647, %v390
        %v409 = vand.u32 2147483647, %v391
        %v410 = vand.u32 2147483647, %v392
        %v411 = vand.u32 2147483647, %v393
        %v412 = vand.u32 2147483647, %v394
        %v413 = vand.u32 2147483647, %v395
        %v414 = vand.u32 2147483647, %v396
        %v415 = vand.u32 2147483647, %v397
        %v416 = vround.ne.pseudo %v398
        %v417 = vround.ne.pseudo %v399
        %v418 = vround.ne.pseudo %v400
        %v419 = vround.ne.pseudo %v401
        %v420 = vround.ne.pseudo %v402
        %v421 = vround.ne.pseudo %v403
        %v422 = vround.ne.pseudo %v404
        %v423 = vround.ne.pseudo %v405
        %v424 = vround.ne.pseudo %v406
        %v425 = vround.ne.pseudo %v407
        %v426 = vround.ne.pseudo %v408
        %v427 = vround.ne.pseudo %v409
        %v428 = vround.ne.pseudo %v410
        %v429 = vround.ne.pseudo %v411
        %v430 = vround.ne.pseudo %v412
        %v431 = vround.ne.pseudo %v413
        %v432 = vround.ne.pseudo %v414
        %v433 = vround.ne.pseudo %v415
        %v434 = vmax.f32 %v416, 0.0
        %v435 = vmax.f32 %v417, 0.0
        %v436 = vmax.f32 %v418, 0.0
        %v437 = vmax.f32 %v419, 0.0
        %v438 = vmax.f32 %v420, 0.0
        %v439 = vmax.f32 %v421, 0.0
        %v440 = vmax.f32 %v422, 0.0
        %v441 = vmax.f32 %v423, 0.0
        %v442 = vmax.f32 %v424, 0.0
        %v443 = vmax.f32 %v425, 0.0
        %v444 = vmax.f32 %v426, 0.0
        %v445 = vmax.f32 %v427, 0.0
        %v446 = vmax.f32 %v428, 0.0
        %v447 = vmax.f32 %v429, 0.0
        %v448 = vmax.f32 %v430, 0.0
        %v449 = vmax.f32 %v431, 0.0
        %v450 = vmax.f32 %v432, 0.0
        %v451 = vmax.f32 %v433, 0.0
        %v452 = vmin.f32 %v434, 255.0
        %v453 = vmin.f32 %v435, 255.0
        %v454 = vmin.f32 %v436, 255.0
        %v455 = vmin.f32 %v437, 255.0
        %v456 = vmin.f32 %v438, 255.0
        %v457 = vmin.f32 %v439, 255.0
        %v458 = vmin.f32 %v440, 255.0
        %v459 = vmin.f32 %v441, 255.0
        %v460 = vmin.f32 %v442, 255.0
        %v461 = vmin.f32 %v443, 255.0
        %v462 = vmin.f32 %v444, 255.0
        %v463 = vmin.f32 %v445, 255.0
        %v464 = vmin.f32 %v446, 255.0
        %v465 = vmin.f32 %v447, 255.0
        %v466 = vmin.f32 %v448, 255.0
        %v467 = vmin.f32 %v449, 255.0
        %v468 = vmin.f32 %v450, 255.0
        %v469 = vmin.f32 %v451, 255.0
        %470 = vrot.lane.b32.xlu0 %v452, 1
        %v471 = vpop.permute.xlu0 %470
        %472 = vrot.lane.b32.xlu0 %v454, 1
        %v473 = vpop.permute.xlu0 %472
        %474 = vrot.lane.b32.xlu0 %v456, 1
        %v475 = vpop.permute.xlu0 %474
        %476 = vrot.lane.b32.xlu0 %v458, 1
        %v477 = vpop.permute.xlu0 %476
        %478 = vrot.lane.b32.xlu0 %v460, 1
        %v479 = vpop.permute.xlu0 %478
        %480 = vrot.lane.b32.xlu0 %v462, 1
        %v481 = vpop.permute.xlu0 %480
        %482 = vrot.lane.b32.xlu0 %v464, 1
        %v483 = vpop.permute.xlu0 %482
        %484 = vrot.lane.b32.xlu0 %v466, 1
        %v485 = vpop.permute.xlu0 %484
        %486 = vrot.lane.b32.xlu0 %v468, 1
        %v487 = vpop.permute.xlu0 %486
        %488 = vrot.lane.b32.xlu0 %v453, 1
        %v489 = vpop.permute.xlu0 %488
        %490 = vrot.lane.b32.xlu0 %v455, 1
        %v491 = vpop.permute.xlu0 %490
        %492 = vrot.lane.b32.xlu0 %v457, 1
        %v493 = vpop.permute.xlu0 %492
        %494 = vrot.lane.b32.xlu0 %v459, 1
        %v495 = vpop.permute.xlu0 %494
        %496 = vrot.lane.b32.xlu0 %v461, 1
        %v497 = vpop.permute.xlu0 %496
        %498 = vrot.lane.b32.xlu0 %v463, 1
        %v499 = vpop.permute.xlu0 %498
        %500 = vrot.lane.b32.xlu0 %v465, 1
        %v501 = vpop.permute.xlu0 %500
        %502 = vrot.lane.b32.xlu0 %v467, 1
        %v503 = vpop.permute.xlu0 %502
        %504 = vrot.lane.b32.xlu0 %v469, 1
        %v505 = vpop.permute.xlu0 %504
        %vm506 = vcmp.lt.s32.totalorder %v274, 1
        %v507 = vsel %vm506, %v471, %v489
        %v508 = vsel %vm506, %v473, %v491
        %v509 = vsel %vm506, %v475, %v493
        %v510 = vsel %vm506, %v477, %v495
        %v511 = vsel %vm506, %v479, %v497
        %v512 = vsel %vm506, %v481, %v499
        %v513 = vsel %vm506, %v483, %v501
        %v514 = vsel %vm506, %v485, %v503
        %v515 = vsel %vm506, %v487, %v505
        %v516 = vsel %vm506, %v489, %v471
        %v517 = vsel %vm506, %v491, %v473
        %v518 = vsel %vm506, %v493, %v475
        %v519 = vsel %vm506, %v495, %v477
        %v520 = vsel %vm506, %v497, %v479
        %v521 = vsel %vm506, %v499, %v481
        %v522 = vsel %vm506, %v501, %v483
        %v523 = vsel %vm506, %v503, %v485
        %v524 = vsel %vm506, %v505, %v487
        %v525 = vsel %vm290, 1, 0
        %v526 = vsel %vm291, 1, 0
        %vm527 = vcmp.eq.s32.totalorder %v525, 1
        %vm528 = vcmp.eq.s32.totalorder %v526, 1
        %v529 = vsel %vm527, %v516, 0.0
        %v530 = vsel %vm528, %v507, 0.0
        %v531 = vsel %vm527, %v517, 0.0
        %v532 = vsel %vm528, %v508, 0.0
        %v533 = vsel %vm527, %v518, 0.0
        %v534 = vsel %vm528, %v509, 0.0
        %v535 = vsel %vm527, %v519, 0.0
        %v536 = vsel %vm528, %v510, 0.0
        %v537 = vsel %vm527, %v520, 0.0
        %v538 = vsel %vm528, %v511, 0.0
        %v539 = vsel %vm527, %v521, 0.0
        %v540 = vsel %vm528, %v512, 0.0
        %v541 = vsel %vm527, %v522, 0.0
        %v542 = vsel %vm528, %v513, 0.0
        %v543 = vsel %vm527, %v523, 0.0
        %v544 = vsel %vm528, %v514, 0.0
        %v545 = vsel %vm527, %v524, 0.0
        %v546 = vsel %vm528, %v515, 0.0
        %547 = vrot.lane.b32.xlu0 %v452, 127
        %v548 = vpop.permute.xlu0 %547
        %549 = vrot.lane.b32.xlu0 %v454, 127
        %v550 = vpop.permute.xlu0 %549
        %551 = vrot.lane.b32.xlu0 %v456, 127
        %v552 = vpop.permute.xlu0 %551
        %553 = vrot.lane.b32.xlu0 %v458, 127
        %v554 = vpop.permute.xlu0 %553
        %555 = vrot.lane.b32.xlu0 %v460, 127
        %v556 = vpop.permute.xlu0 %555
        %557 = vrot.lane.b32.xlu0 %v462, 127
        %v558 = vpop.permute.xlu0 %557
        %559 = vrot.lane.b32.xlu0 %v464, 127
        %v560 = vpop.permute.xlu0 %559
        %561 = vrot.lane.b32.xlu0 %v466, 127
        %v562 = vpop.permute.xlu0 %561
        %563 = vrot.lane.b32.xlu0 %v468, 127
        %v564 = vpop.permute.xlu0 %563
        %565 = vrot.lane.b32.xlu0 %v453, 127
        %v566 = vpop.permute.xlu0 %565
        %567 = vrot.lane.b32.xlu0 %v455, 127
        %v568 = vpop.permute.xlu0 %567
        %569 = vrot.lane.b32.xlu0 %v457, 127
        %v570 = vpop.permute.xlu0 %569
        %571 = vrot.lane.b32.xlu0 %v459, 127
        %v572 = vpop.permute.xlu0 %571
        %573 = vrot.lane.b32.xlu0 %v461, 127
        %v574 = vpop.permute.xlu0 %573
        %575 = vrot.lane.b32.xlu0 %v463, 127
        %v576 = vpop.permute.xlu0 %575
        %577 = vrot.lane.b32.xlu0 %v465, 127
        %v578 = vpop.permute.xlu0 %577
        %579 = vrot.lane.b32.xlu0 %v467, 127
        %v580 = vpop.permute.xlu0 %579
        %581 = vrot.lane.b32.xlu0 %v469, 127
        %v582 = vpop.permute.xlu0 %581
        %vm583 = vcmp.lt.s32.totalorder %v274, 127
        %v584 = vsel %vm583, %v548, %v566
        %v585 = vsel %vm583, %v550, %v568
        %v586 = vsel %vm583, %v552, %v570
        %v587 = vsel %vm583, %v554, %v572
        %v588 = vsel %vm583, %v556, %v574
        %v589 = vsel %vm583, %v558, %v576
        %v590 = vsel %vm583, %v560, %v578
        %v591 = vsel %vm583, %v562, %v580
        %v592 = vsel %vm583, %v564, %v582
        %v593 = vsel %vm583, %v566, %v548
        %v594 = vsel %vm583, %v568, %v550
        %v595 = vsel %vm583, %v570, %v552
        %v596 = vsel %vm583, %v572, %v554
        %v597 = vsel %vm583, %v574, %v556
        %v598 = vsel %vm583, %v576, %v558
        %v599 = vsel %vm583, %v578, %v560
        %v600 = vsel %vm583, %v580, %v562
        %v601 = vsel %vm583, %v582, %v564
        %v602 = vsel %vm298, 1, 0
        %v603 = vsel %vm299, 1, 0
        %vm604 = vcmp.eq.s32.totalorder %v602, 1
        %vm605 = vcmp.eq.s32.totalorder %v603, 1
        %v606 = vsel %vm604, %v584, 0.0
        %v607 = vsel %vm605, %v593, 0.0
        %v608 = vsel %vm604, %v585, 0.0
        %v609 = vsel %vm605, %v594, 0.0
        %v610 = vsel %vm604, %v586, 0.0
        %v611 = vsel %vm605, %v595, 0.0
        %v612 = vsel %vm604, %v587, 0.0
        %v613 = vsel %vm605, %v596, 0.0
        %v614 = vsel %vm604, %v588, 0.0
        %v615 = vsel %vm605, %v597, 0.0
        %v616 = vsel %vm604, %v589, 0.0
        %v617 = vsel %vm605, %v598, 0.0
        %v618 = vsel %vm604, %v590, 0.0
        %v619 = vsel %vm605, %v599, 0.0
        %v620 = vsel %vm604, %v591, 0.0
        %v621 = vsel %vm605, %v600, 0.0
        %v622 = vsel %vm604, %v592, 0.0
        %v623 = vsel %vm605, %v601, 0.0
        %v624 = vmul.f32 %v452, 2.0
        %v625 = vmul.f32 %v453, 2.0
        %v626 = vmul.f32 %v454, 2.0
        %v627 = vmul.f32 %v455, 2.0
        %v628 = vmul.f32 %v456, 2.0
        %v629 = vmul.f32 %v457, 2.0
        %v630 = vmul.f32 %v458, 2.0
        %v631 = vmul.f32 %v459, 2.0
        %v632 = vmul.f32 %v460, 2.0
        %v633 = vmul.f32 %v461, 2.0
        %v634 = vmul.f32 %v462, 2.0
        %v635 = vmul.f32 %v463, 2.0
        %v636 = vmul.f32 %v464, 2.0
        %v637 = vmul.f32 %v465, 2.0
        %v638 = vmul.f32 %v466, 2.0
        %v639 = vmul.f32 %v467, 2.0
        %v640 = vmul.f32 %v468, 2.0
        %v641 = vmul.f32 %v469, 2.0
        %v642 = vadd.f32 %v529, %v624
        %v643 = vadd.f32 %v530, %v625
        %v644 = vadd.f32 %v531, %v626
        %v645 = vadd.f32 %v532, %v627
        %v646 = vadd.f32 %v533, %v628
        %v647 = vadd.f32 %v534, %v629
        %v648 = vadd.f32 %v535, %v630
        %v649 = vadd.f32 %v536, %v631
        %v650 = vadd.f32 %v537, %v632
        %v651 = vadd.f32 %v538, %v633
        %v652 = vadd.f32 %v539, %v634
        %v653 = vadd.f32 %v540, %v635
        %v654 = vadd.f32 %v541, %v636
        %v655 = vadd.f32 %v542, %v637
        %v656 = vadd.f32 %v543, %v638
        %v657 = vadd.f32 %v544, %v639
        %v658 = vadd.f32 %v545, %v640
        %v659 = vadd.f32 %v546, %v641
        %v660 = vadd.f32 %v642, %v606
        %v661 = vadd.f32 %v643, %v607
        %v662 = vadd.f32 %v644, %v608
        %v663 = vadd.f32 %v645, %v609
        %v664 = vadd.f32 %v646, %v610
        %v665 = vadd.f32 %v647, %v611
        %v666 = vadd.f32 %v648, %v612
        %v667 = vadd.f32 %v649, %v613
        %v668 = vadd.f32 %v650, %v614
        %v669 = vadd.f32 %v651, %v615
        %v670 = vadd.f32 %v652, %v616
        %v671 = vadd.f32 %v653, %v617
        %v672 = vadd.f32 %v654, %v618
        %v673 = vadd.f32 %v655, %v619
        %v674 = vadd.f32 %v656, %v620
        %v675 = vadd.f32 %v657, %v621
        %v676 = vadd.f32 %v658, %v622
        %v677 = vadd.f32 %v659, %v623
        %v678 = vsub.f32 %v606, %v529
        %v679 = vsub.f32 %v607, %v530
        %v680 = vsub.f32 %v608, %v531
        %v681 = vsub.f32 %v609, %v532
        %v682 = vsub.f32 %v610, %v533
        %v683 = vsub.f32 %v611, %v534
        %v684 = vsub.f32 %v612, %v535
        %v685 = vsub.f32 %v613, %v536
        %v686 = vsub.f32 %v614, %v537
        %v687 = vsub.f32 %v615, %v538
        %v688 = vsub.f32 %v616, %v539
        %v689 = vsub.f32 %v617, %v540
        %v690 = vsub.f32 %v618, %v541
        %v691 = vsub.f32 %v619, %v542
        %v692 = vsub.f32 %v620, %v543
        %v693 = vsub.f32 %v621, %v544
        %v694 = vsub.f32 %v622, %v545
        %v695 = vsub.f32 %v623, %v546
        %v696 = vmul.f32 %v678, 2.0
        %v697 = vmul.f32 %v679, 2.0
        %v698 = vmul.f32 %v680, 2.0
        %v699 = vmul.f32 %v681, 2.0
        %v700 = vmul.f32 %v682, 2.0
        %v701 = vmul.f32 %v683, 2.0
        %v702 = vmul.f32 %v684, 2.0
        %v703 = vmul.f32 %v685, 2.0
        %v704 = vmul.f32 %v686, 2.0
        %v705 = vmul.f32 %v687, 2.0
        %v706 = vmul.f32 %v688, 2.0
        %v707 = vmul.f32 %v689, 2.0
        %v708 = vmul.f32 %v690, 2.0
        %v709 = vmul.f32 %v691, 2.0
        %v710 = vmul.f32 %v692, 2.0
        %v711 = vmul.f32 %v693, 2.0
        %v712 = vmul.f32 %v694, 2.0
        %v713 = vmul.f32 %v695, 2.0
        %vm732 = vcmask 1046528
        %v733 = vrot.slane %v696, 1
        %v734 = vrot.slane %v698, 1
        %v735 = vsel %vm732, %v733, %v734
        %v736 = vrot.slane %v697, 1
        %v737 = vrot.slane %v699, 1
        %v738 = vsel %vm732, %v736, %v737
        %v739 = vrot.slane %v700, 1
        %v740 = vsel %vm732, %v734, %v739
        %v741 = vrot.slane %v701, 1
        %v742 = vsel %vm732, %v737, %v741
        %v743 = vrot.slane %v702, 1
        %v744 = vsel %vm732, %v739, %v743
        %v745 = vrot.slane %v703, 1
        %v746 = vsel %vm732, %v741, %v745
        %v747 = vrot.slane %v704, 1
        %v748 = vsel %vm732, %v743, %v747
        %v749 = vrot.slane %v705, 1
        %v750 = vsel %vm732, %v745, %v749
        %v751 = vrot.slane %v706, 1
        %v752 = vsel %vm732, %v747, %v751
        %v753 = vrot.slane %v707, 1
        %v754 = vsel %vm732, %v749, %v753
        %v755 = vrot.slane %v708, 1
        %v756 = vsel %vm732, %v751, %v755
        %v757 = vrot.slane %v709, 1
        %v758 = vsel %vm732, %v753, %v757
        %v759 = vrot.slane %v710, 1
        %v760 = vsel %vm732, %v755, %v759
        %v761 = vrot.slane %v711, 1
        %v762 = vsel %vm732, %v757, %v761
        %v763 = vrot.slane %v712, 1
        %v764 = vsel %vm732, %v759, %v763
        %v765 = vrot.slane %v713, 1
        %v766 = vsel %vm732, %v761, %v765
        %v785 = vadd.f32 %v678, %v735
        %v786 = vadd.f32 %v679, %v738
        %v787 = vadd.f32 %v680, %v740
        %v788 = vadd.f32 %v681, %v742
        %v789 = vadd.f32 %v682, %v744
        %v790 = vadd.f32 %v683, %v746
        %v791 = vadd.f32 %v684, %v748
        %v792 = vadd.f32 %v685, %v750
        %v793 = vadd.f32 %v686, %v752
        %v794 = vadd.f32 %v687, %v754
        %v795 = vadd.f32 %v688, %v756
        %v796 = vadd.f32 %v689, %v758
        %v797 = vadd.f32 %v690, %v760
        %v798 = vadd.f32 %v691, %v762
        %v799 = vadd.f32 %v692, %v764
        %v800 = vadd.f32 %v693, %v766
        %v801 = vadd.f32 %v694, %v763
        %v802 = vadd.f32 %v695, %v765
        %vm821 = vcmask 1045504
        %v822 = vrot.slane %v678, 2
        %v823 = vrot.slane %v680, 2
        %v824 = vsel %vm821, %v822, %v823
        %v825 = vrot.slane %v679, 2
        %v826 = vrot.slane %v681, 2
        %v827 = vsel %vm821, %v825, %v826
        %v828 = vrot.slane %v682, 2
        %v829 = vsel %vm821, %v823, %v828
        %v830 = vrot.slane %v683, 2
        %v831 = vsel %vm821, %v826, %v830
        %v832 = vrot.slane %v684, 2
        %v833 = vsel %vm821, %v828, %v832
        %v834 = vrot.slane %v685, 2
        %v835 = vsel %vm821, %v830, %v834
        %v836 = vrot.slane %v686, 2
        %v837 = vsel %vm821, %v832, %v836
        %v838 = vrot.slane %v687, 2
        %v839 = vsel %vm821, %v834, %v838
        %v840 = vrot.slane %v688, 2
        %v841 = vsel %vm821, %v836, %v840
        %v842 = vrot.slane %v689, 2
        %v843 = vsel %vm821, %v838, %v842
        %v844 = vrot.slane %v690, 2
        %v845 = vsel %vm821, %v840, %v844
        %v846 = vrot.slane %v691, 2
        %v847 = vsel %vm821, %v842, %v846
        %v848 = vrot.slane %v692, 2
        %v849 = vsel %vm821, %v844, %v848
        %v850 = vrot.slane %v693, 2
        %v851 = vsel %vm821, %v846, %v850
        %v852 = vrot.slane %v694, 2
        %v853 = vsel %vm821, %v848, %v852
        %v854 = vrot.slane %v695, 2
        %v855 = vsel %vm821, %v850, %v854
        %v874 = vadd.f32 %v785, %v824
        %v875 = vadd.f32 %v786, %v827
        %v876 = vadd.f32 %v787, %v829
        %v877 = vadd.f32 %v788, %v831
        %v878 = vadd.f32 %v789, %v833
        %v879 = vadd.f32 %v790, %v835
        %v880 = vadd.f32 %v791, %v837
        %v881 = vadd.f32 %v792, %v839
        %v882 = vadd.f32 %v793, %v841
        %v883 = vadd.f32 %v794, %v843
        %v884 = vadd.f32 %v795, %v845
        %v885 = vadd.f32 %v796, %v847
        %v886 = vadd.f32 %v797, %v849
        %v887 = vadd.f32 %v798, %v851
        %v888 = vadd.f32 %v799, %v853
        %v889 = vadd.f32 %v800, %v855
        %v890 = vadd.f32 %v801, %v852
        %v891 = vadd.f32 %v802, %v854
        %vm910 = vcmask 1041408
        %v911 = vrot.slane %v660, 6
        %v912 = vrot.slane %v661, 6
        %v913 = vrot.slane %v662, 6
        %v914 = vsel %vm910, %v911, %v913
        %v915 = vrot.slane %v663, 6
        %v916 = vsel %vm910, %v912, %v915
        %v917 = vrot.slane %v664, 6
        %v918 = vsel %vm910, %v913, %v917
        %v919 = vrot.slane %v665, 6
        %v920 = vsel %vm910, %v915, %v919
        %v921 = vrot.slane %v666, 6
        %v922 = vsel %vm910, %v917, %v921
        %v923 = vrot.slane %v667, 6
        %v924 = vsel %vm910, %v919, %v923
        %v925 = vrot.slane %v668, 6
        %v926 = vsel %vm910, %v921, %v925
        %v927 = vrot.slane %v669, 6
        %v928 = vsel %vm910, %v923, %v927
        %v929 = vrot.slane %v670, 6
        %v930 = vsel %vm910, %v925, %v929
        %v931 = vrot.slane %v671, 6
        %v932 = vsel %vm910, %v927, %v931
        %v933 = vrot.slane %v672, 6
        %v934 = vsel %vm910, %v929, %v933
        %v935 = vrot.slane %v673, 6
        %v936 = vsel %vm910, %v931, %v935
        %v937 = vrot.slane %v674, 6
        %v938 = vsel %vm910, %v933, %v937
        %v939 = vrot.slane %v675, 6
        %v940 = vsel %vm910, %v935, %v939
        %v941 = vrot.slane %v676, 6
        %v942 = vsel %vm910, %v937, %v941
        %v943 = vrot.slane %v677, 6
        %v944 = vsel %vm910, %v939, %v943
        %v963 = vsub.f32 %v660, %v911
        %v964 = vsub.f32 %v661, %v912
        %v965 = vsub.f32 %v662, %v914
        %v966 = vsub.f32 %v663, %v916
        %v967 = vsub.f32 %v664, %v918
        %v968 = vsub.f32 %v665, %v920
        %v969 = vsub.f32 %v666, %v922
        %v970 = vsub.f32 %v667, %v924
        %v971 = vsub.f32 %v668, %v926
        %v972 = vsub.f32 %v669, %v928
        %v973 = vsub.f32 %v670, %v930
        %v974 = vsub.f32 %v671, %v932
        %v975 = vsub.f32 %v672, %v934
        %v976 = vsub.f32 %v673, %v936
        %v977 = vsub.f32 %v674, %v938
        %v978 = vsub.f32 %v675, %v940
        %v979 = vsub.f32 %v676, %v942
        %v980 = vsub.f32 %v677, %v944
        %v981 = vand.u32 2147483647, %v874
        %v982 = vand.u32 2147483647, %v875
        %v983 = vand.u32 2147483647, %v876
        %v984 = vand.u32 2147483647, %v877
        %v985 = vand.u32 2147483647, %v878
        %v986 = vand.u32 2147483647, %v879
        %v987 = vand.u32 2147483647, %v880
        %v988 = vand.u32 2147483647, %v881
        %v989 = vand.u32 2147483647, %v882
        %v990 = vand.u32 2147483647, %v883
        %v991 = vand.u32 2147483647, %v884
        %v992 = vand.u32 2147483647, %v885
        %v993 = vand.u32 2147483647, %v886
        %v994 = vand.u32 2147483647, %v887
        %v995 = vand.u32 2147483647, %v888
        %v996 = vand.u32 2147483647, %v889
        %v997 = vand.u32 2147483647, %v890
        %v998 = vand.u32 2147483647, %v891
        %v999 = vand.u32 2147483647, %v963
        %v1000 = vand.u32 2147483647, %v964
        %v1001 = vand.u32 2147483647, %v965
        %v1002 = vand.u32 2147483647, %v966
        %v1003 = vand.u32 2147483647, %v967
        %v1004 = vand.u32 2147483647, %v968
        %v1005 = vand.u32 2147483647, %v969
        %v1006 = vand.u32 2147483647, %v970
        %v1007 = vand.u32 2147483647, %v971
        %v1008 = vand.u32 2147483647, %v972
        %v1009 = vand.u32 2147483647, %v973
        %v1010 = vand.u32 2147483647, %v974
        %v1011 = vand.u32 2147483647, %v975
        %v1012 = vand.u32 2147483647, %v976
        %v1013 = vand.u32 2147483647, %v977
        %v1014 = vand.u32 2147483647, %v978
        %v1015 = vand.u32 2147483647, %v979
        %v1016 = vand.u32 2147483647, %v980
        %v1035 = vrot.slane %v999, 2
        %v1036 = vrot.slane %v1001, 2
        %v1037 = vsel %vm821, %v1035, %v1036
        %v1038 = vrot.slane %v1000, 2
        %v1039 = vrot.slane %v1002, 2
        %v1040 = vsel %vm821, %v1038, %v1039
        %v1041 = vrot.slane %v1003, 2
        %v1042 = vsel %vm821, %v1036, %v1041
        %v1043 = vrot.slane %v1004, 2
        %v1044 = vsel %vm821, %v1039, %v1043
        %v1045 = vrot.slane %v1005, 2
        %v1046 = vsel %vm821, %v1041, %v1045
        %v1047 = vrot.slane %v1006, 2
        %v1048 = vsel %vm821, %v1043, %v1047
        %v1049 = vrot.slane %v1007, 2
        %v1050 = vsel %vm821, %v1045, %v1049
        %v1051 = vrot.slane %v1008, 2
        %v1052 = vsel %vm821, %v1047, %v1051
        %v1053 = vrot.slane %v1009, 2
        %v1054 = vsel %vm821, %v1049, %v1053
        %v1055 = vrot.slane %v1010, 2
        %v1056 = vsel %vm821, %v1051, %v1055
        %v1057 = vrot.slane %v1011, 2
        %v1058 = vsel %vm821, %v1053, %v1057
        %v1059 = vrot.slane %v1012, 2
        %v1060 = vsel %vm821, %v1055, %v1059
        %v1061 = vrot.slane %v1013, 2
        %v1062 = vsel %vm821, %v1057, %v1061
        %v1063 = vrot.slane %v1014, 2
        %v1064 = vsel %vm821, %v1059, %v1063
        %v1065 = vrot.slane %v1015, 2
        %v1066 = vsel %vm821, %v1061, %v1065
        %v1067 = vrot.slane %v1016, 2
        %v1068 = vsel %vm821, %v1063, %v1067
        %v1087 = vadd.f32 %v981, %v1037
        %v1088 = vadd.f32 %v982, %v1040
        %v1089 = vadd.f32 %v983, %v1042
        %v1090 = vadd.f32 %v984, %v1044
        %v1091 = vadd.f32 %v985, %v1046
        %v1092 = vadd.f32 %v986, %v1048
        %v1093 = vadd.f32 %v987, %v1050
        %v1094 = vadd.f32 %v988, %v1052
        %v1095 = vadd.f32 %v989, %v1054
        %v1096 = vadd.f32 %v990, %v1056
        %v1097 = vadd.f32 %v991, %v1058
        %v1098 = vadd.f32 %v992, %v1060
        %v1099 = vadd.f32 %v993, %v1062
        %v1100 = vadd.f32 %v994, %v1064
        %v1101 = vadd.f32 %v995, %v1066
        %v1102 = vadd.f32 %v996, %v1068
        %v1103 = vadd.f32 %v997, %v1065
        %v1104 = vadd.f32 %v998, %v1067
        %v1105 = vsel %vm358, %v1087, 0.0
        %v1106 = vsel %vm359, %v1088, 0.0
        %v1107 = vsel %vm360, %v1089, 0.0
        %v1108 = vsel %vm361, %v1090, 0.0
        %v1109 = vsel %vm362, %v1091, 0.0
        %v1110 = vsel %vm363, %v1092, 0.0
        %v1111 = vsel %vm364, %v1093, 0.0
        %v1112 = vsel %vm365, %v1094, 0.0
        %v1113 = vsel %vm366, %v1095, 0.0
        %v1114 = vsel %vm367, %v1096, 0.0
        %v1115 = vsel %vm368, %v1097, 0.0
        %v1116 = vsel %vm369, %v1098, 0.0
        %v1117 = vsel %vm370, %v1099, 0.0
        %v1118 = vsel %vm371, %v1100, 0.0
        %v1119 = vsel %vm372, %v1101, 0.0
        %v1120 = vsel %vm373, %v1102, 0.0
        %v1121 = vsel %vm374, %v1103, 0.0
        %v1122 = vsel %vm375, %v1104, 0.0
        %v1123 = vstv %s270
        %vm1124 = vcmp.gt.f32.partialorder %v1105, %v1123
        %vm1125 = vcmp.gt.f32.partialorder %v1106, %v1123
        %vm1126 = vcmp.gt.f32.partialorder %v1107, %v1123
        %vm1127 = vcmp.gt.f32.partialorder %v1108, %v1123
        %vm1128 = vcmp.gt.f32.partialorder %v1109, %v1123
        %vm1129 = vcmp.gt.f32.partialorder %v1110, %v1123
        %vm1130 = vcmp.gt.f32.partialorder %v1111, %v1123
        %vm1131 = vcmp.gt.f32.partialorder %v1112, %v1123
        %vm1132 = vcmp.gt.f32.partialorder %v1113, %v1123
        %vm1133 = vcmp.gt.f32.partialorder %v1114, %v1123
        %vm1134 = vcmp.gt.f32.partialorder %v1115, %v1123
        %vm1135 = vcmp.gt.f32.partialorder %v1116, %v1123
        %vm1136 = vcmp.gt.f32.partialorder %v1117, %v1123
        %vm1137 = vcmp.gt.f32.partialorder %v1118, %v1123
        %vm1138 = vcmp.gt.f32.partialorder %v1119, %v1123
        %vm1139 = vcmp.gt.f32.partialorder %v1120, %v1123
        %vm1140 = vcmp.gt.f32.partialorder %v1121, %v1123
        %vm1141 = vcmp.gt.f32.partialorder %v1122, %v1123
        %v1142 = vstv %s271
        %vm1143 = vcmp.gt.f32.partialorder %v1105, %v1142
        %vm1144 = vcmp.gt.f32.partialorder %v1106, %v1142
        %vm1145 = vcmp.gt.f32.partialorder %v1107, %v1142
        %vm1146 = vcmp.gt.f32.partialorder %v1108, %v1142
        %vm1147 = vcmp.gt.f32.partialorder %v1109, %v1142
        %vm1148 = vcmp.gt.f32.partialorder %v1110, %v1142
        %vm1149 = vcmp.gt.f32.partialorder %v1111, %v1142
        %vm1150 = vcmp.gt.f32.partialorder %v1112, %v1142
        %vm1151 = vcmp.gt.f32.partialorder %v1113, %v1142
        %vm1152 = vcmp.gt.f32.partialorder %v1114, %v1142
        %vm1153 = vcmp.gt.f32.partialorder %v1115, %v1142
        %vm1154 = vcmp.gt.f32.partialorder %v1116, %v1142
        %vm1155 = vcmp.gt.f32.partialorder %v1117, %v1142
        %vm1156 = vcmp.gt.f32.partialorder %v1118, %v1142
        %vm1157 = vcmp.gt.f32.partialorder %v1119, %v1142
        %vm1158 = vcmp.gt.f32.partialorder %v1120, %v1142
        %vm1159 = vcmp.gt.f32.partialorder %v1121, %v1142
        %vm1160 = vcmp.gt.f32.partialorder %v1122, %v1142
        %v1161 = vsel %vm1143, 1.0, 0.0
        %v1162 = vsel %vm1144, 1.0, 0.0
        %v1163 = vsel %vm1145, 1.0, 0.0
        %v1164 = vsel %vm1146, 1.0, 0.0
        %v1165 = vsel %vm1147, 1.0, 0.0
        %v1166 = vsel %vm1148, 1.0, 0.0
        %v1167 = vsel %vm1149, 1.0, 0.0
        %v1168 = vsel %vm1150, 1.0, 0.0
        %v1169 = vsel %vm1151, 1.0, 0.0
        %v1170 = vsel %vm1152, 1.0, 0.0
        %v1171 = vsel %vm1153, 1.0, 0.0
        %v1172 = vsel %vm1154, 1.0, 0.0
        %v1173 = vsel %vm1155, 1.0, 0.0
        %v1174 = vsel %vm1156, 1.0, 0.0
        %v1175 = vsel %vm1157, 1.0, 0.0
        %v1176 = vsel %vm1158, 1.0, 0.0
        %v1177 = vsel %vm1159, 1.0, 0.0
        %v1178 = vsel %vm1160, 1.0, 0.0
        %1179 = vrot.lane.b32.xlu0 %v1161, 1
        %v1180 = vpop.permute.xlu0 %1179
        %1181 = vrot.lane.b32.xlu0 %v1163, 1
        %v1182 = vpop.permute.xlu0 %1181
        %1183 = vrot.lane.b32.xlu0 %v1165, 1
        %v1184 = vpop.permute.xlu0 %1183
        %1185 = vrot.lane.b32.xlu0 %v1167, 1
        %v1186 = vpop.permute.xlu0 %1185
        %1187 = vrot.lane.b32.xlu0 %v1169, 1
        %v1188 = vpop.permute.xlu0 %1187
        %1189 = vrot.lane.b32.xlu0 %v1171, 1
        %v1190 = vpop.permute.xlu0 %1189
        %1191 = vrot.lane.b32.xlu0 %v1173, 1
        %v1192 = vpop.permute.xlu0 %1191
        %1193 = vrot.lane.b32.xlu0 %v1175, 1
        %v1194 = vpop.permute.xlu0 %1193
        %1195 = vrot.lane.b32.xlu0 %v1177, 1
        %v1196 = vpop.permute.xlu0 %1195
        %1197 = vrot.lane.b32.xlu0 %v1162, 1
        %v1198 = vpop.permute.xlu0 %1197
        %1199 = vrot.lane.b32.xlu0 %v1164, 1
        %v1200 = vpop.permute.xlu0 %1199
        %1201 = vrot.lane.b32.xlu0 %v1166, 1
        %v1202 = vpop.permute.xlu0 %1201
        %1203 = vrot.lane.b32.xlu0 %v1168, 1
        %v1204 = vpop.permute.xlu0 %1203
        %1205 = vrot.lane.b32.xlu0 %v1170, 1
        %v1206 = vpop.permute.xlu0 %1205
        %1207 = vrot.lane.b32.xlu0 %v1172, 1
        %v1208 = vpop.permute.xlu0 %1207
        %1209 = vrot.lane.b32.xlu0 %v1174, 1
        %v1210 = vpop.permute.xlu0 %1209
        %1211 = vrot.lane.b32.xlu0 %v1176, 1
        %v1212 = vpop.permute.xlu0 %1211
        %1213 = vrot.lane.b32.xlu0 %v1178, 1
        %v1214 = vpop.permute.xlu0 %1213
        %v1215 = vsel %vm506, %v1180, %v1198
        %v1216 = vsel %vm506, %v1182, %v1200
        %v1217 = vsel %vm506, %v1184, %v1202
        %v1218 = vsel %vm506, %v1186, %v1204
        %v1219 = vsel %vm506, %v1188, %v1206
        %v1220 = vsel %vm506, %v1190, %v1208
        %v1221 = vsel %vm506, %v1192, %v1210
        %v1222 = vsel %vm506, %v1194, %v1212
        %v1223 = vsel %vm506, %v1196, %v1214
        %v1224 = vsel %vm506, %v1198, %v1180
        %v1225 = vsel %vm506, %v1200, %v1182
        %v1226 = vsel %vm506, %v1202, %v1184
        %v1227 = vsel %vm506, %v1204, %v1186
        %v1228 = vsel %vm506, %v1206, %v1188
        %v1229 = vsel %vm506, %v1208, %v1190
        %v1230 = vsel %vm506, %v1210, %v1192
        %v1231 = vsel %vm506, %v1212, %v1194
        %v1232 = vsel %vm506, %v1214, %v1196
        %v1233 = vsel %vm527, %v1224, 0.0
        %v1234 = vsel %vm528, %v1215, 0.0
        %v1235 = vsel %vm527, %v1225, 0.0
        %v1236 = vsel %vm528, %v1216, 0.0
        %v1237 = vsel %vm527, %v1226, 0.0
        %v1238 = vsel %vm528, %v1217, 0.0
        %v1239 = vsel %vm527, %v1227, 0.0
        %v1240 = vsel %vm528, %v1218, 0.0
        %v1241 = vsel %vm527, %v1228, 0.0
        %v1242 = vsel %vm528, %v1219, 0.0
        %v1243 = vsel %vm527, %v1229, 0.0
        %v1244 = vsel %vm528, %v1220, 0.0
        %v1245 = vsel %vm527, %v1230, 0.0
        %v1246 = vsel %vm528, %v1221, 0.0
        %v1247 = vsel %vm527, %v1231, 0.0
        %v1248 = vsel %vm528, %v1222, 0.0
        %v1249 = vsel %vm527, %v1232, 0.0
        %v1250 = vsel %vm528, %v1223, 0.0
        %1251 = vrot.lane.b32.xlu0 %v1161, 127
        %v1252 = vpop.permute.xlu0 %1251
        %1253 = vrot.lane.b32.xlu0 %v1163, 127
        %v1254 = vpop.permute.xlu0 %1253
        %1255 = vrot.lane.b32.xlu0 %v1165, 127
        %v1256 = vpop.permute.xlu0 %1255
        %1257 = vrot.lane.b32.xlu0 %v1167, 127
        %v1258 = vpop.permute.xlu0 %1257
        %1259 = vrot.lane.b32.xlu0 %v1169, 127
        %v1260 = vpop.permute.xlu0 %1259
        %1261 = vrot.lane.b32.xlu0 %v1171, 127
        %v1262 = vpop.permute.xlu0 %1261
        %1263 = vrot.lane.b32.xlu0 %v1173, 127
        %v1264 = vpop.permute.xlu0 %1263
        %1265 = vrot.lane.b32.xlu0 %v1175, 127
        %v1266 = vpop.permute.xlu0 %1265
        %1267 = vrot.lane.b32.xlu0 %v1177, 127
        %v1268 = vpop.permute.xlu0 %1267
        %1269 = vrot.lane.b32.xlu0 %v1162, 127
        %v1270 = vpop.permute.xlu0 %1269
        %1271 = vrot.lane.b32.xlu0 %v1164, 127
        %v1272 = vpop.permute.xlu0 %1271
        %1273 = vrot.lane.b32.xlu0 %v1166, 127
        %v1274 = vpop.permute.xlu0 %1273
        %1275 = vrot.lane.b32.xlu0 %v1168, 127
        %v1276 = vpop.permute.xlu0 %1275
        %1277 = vrot.lane.b32.xlu0 %v1170, 127
        %v1278 = vpop.permute.xlu0 %1277
        %1279 = vrot.lane.b32.xlu0 %v1172, 127
        %v1280 = vpop.permute.xlu0 %1279
        %1281 = vrot.lane.b32.xlu0 %v1174, 127
        %v1282 = vpop.permute.xlu0 %1281
        %1283 = vrot.lane.b32.xlu0 %v1176, 127
        %v1284 = vpop.permute.xlu0 %1283
        %1285 = vrot.lane.b32.xlu0 %v1178, 127
        %v1286 = vpop.permute.xlu0 %1285
        %v1287 = vsel %vm583, %v1252, %v1270
        %v1288 = vsel %vm583, %v1254, %v1272
        %v1289 = vsel %vm583, %v1256, %v1274
        %v1290 = vsel %vm583, %v1258, %v1276
        %v1291 = vsel %vm583, %v1260, %v1278
        %v1292 = vsel %vm583, %v1262, %v1280
        %v1293 = vsel %vm583, %v1264, %v1282
        %v1294 = vsel %vm583, %v1266, %v1284
        %v1295 = vsel %vm583, %v1268, %v1286
        %v1296 = vsel %vm583, %v1270, %v1252
        %v1297 = vsel %vm583, %v1272, %v1254
        %v1298 = vsel %vm583, %v1274, %v1256
        %v1299 = vsel %vm583, %v1276, %v1258
        %v1300 = vsel %vm583, %v1278, %v1260
        %v1301 = vsel %vm583, %v1280, %v1262
        %v1302 = vsel %vm583, %v1282, %v1264
        %v1303 = vsel %vm583, %v1284, %v1266
        %v1304 = vsel %vm583, %v1286, %v1268
        %v1305 = vsel %vm604, %v1287, 0.0
        %v1306 = vsel %vm605, %v1296, 0.0
        %v1307 = vsel %vm604, %v1288, 0.0
        %v1308 = vsel %vm605, %v1297, 0.0
        %v1309 = vsel %vm604, %v1289, 0.0
        %v1310 = vsel %vm605, %v1298, 0.0
        %v1311 = vsel %vm604, %v1290, 0.0
        %v1312 = vsel %vm605, %v1299, 0.0
        %v1313 = vsel %vm604, %v1291, 0.0
        %v1314 = vsel %vm605, %v1300, 0.0
        %v1315 = vsel %vm604, %v1292, 0.0
        %v1316 = vsel %vm605, %v1301, 0.0
        %v1317 = vsel %vm604, %v1293, 0.0
        %v1318 = vsel %vm605, %v1302, 0.0
        %v1319 = vsel %vm604, %v1294, 0.0
        %v1320 = vsel %vm605, %v1303, 0.0
        %v1321 = vsel %vm604, %v1295, 0.0
        %v1322 = vsel %vm605, %v1304, 0.0
        %v1323 = vmax.f32 %v1233, %v1305
        %v1324 = vmax.f32 %v1234, %v1306
        %v1325 = vmax.f32 %v1235, %v1307
        %v1326 = vmax.f32 %v1236, %v1308
        %v1327 = vmax.f32 %v1237, %v1309
        %v1328 = vmax.f32 %v1238, %v1310
        %v1329 = vmax.f32 %v1239, %v1311
        %v1330 = vmax.f32 %v1240, %v1312
        %v1331 = vmax.f32 %v1241, %v1313
        %v1332 = vmax.f32 %v1242, %v1314
        %v1333 = vmax.f32 %v1243, %v1315
        %v1334 = vmax.f32 %v1244, %v1316
        %v1335 = vmax.f32 %v1245, %v1317
        %v1336 = vmax.f32 %v1246, %v1318
        %v1337 = vmax.f32 %v1247, %v1319
        %v1338 = vmax.f32 %v1248, %v1320
        %v1339 = vmax.f32 %v1249, %v1321
        %v1340 = vmax.f32 %v1250, %v1322
        %v1341 = vmax.f32 %v1161, %v1323
        %v1342 = vmax.f32 %v1162, %v1324
        %v1343 = vmax.f32 %v1163, %v1325
        %v1344 = vmax.f32 %v1164, %v1326
        %v1345 = vmax.f32 %v1165, %v1327
        %v1346 = vmax.f32 %v1166, %v1328
        %v1347 = vmax.f32 %v1167, %v1329
        %v1348 = vmax.f32 %v1168, %v1330
        %v1349 = vmax.f32 %v1169, %v1331
        %v1350 = vmax.f32 %v1170, %v1332
        %v1351 = vmax.f32 %v1171, %v1333
        %v1352 = vmax.f32 %v1172, %v1334
        %v1353 = vmax.f32 %v1173, %v1335
        %v1354 = vmax.f32 %v1174, %v1336
        %v1355 = vmax.f32 %v1175, %v1337
        %v1356 = vmax.f32 %v1176, %v1338
        %v1357 = vmax.f32 %v1177, %v1339
        %v1358 = vmax.f32 %v1178, %v1340
        %v1377 = vrot.slane %v1341, 2
        %v1378 = vrot.slane %v1343, 2
        %v1379 = vsel %vm821, %v1377, %v1378
        %v1380 = vrot.slane %v1342, 2
        %v1381 = vrot.slane %v1344, 2
        %v1382 = vsel %vm821, %v1380, %v1381
        %v1383 = vrot.slane %v1345, 2
        %v1384 = vsel %vm821, %v1378, %v1383
        %v1385 = vrot.slane %v1346, 2
        %v1386 = vsel %vm821, %v1381, %v1385
        %v1387 = vrot.slane %v1347, 2
        %v1388 = vsel %vm821, %v1383, %v1387
        %v1389 = vrot.slane %v1348, 2
        %v1390 = vsel %vm821, %v1385, %v1389
        %v1391 = vrot.slane %v1349, 2
        %v1392 = vsel %vm821, %v1387, %v1391
        %v1393 = vrot.slane %v1350, 2
        %v1394 = vsel %vm821, %v1389, %v1393
        %v1395 = vrot.slane %v1351, 2
        %v1396 = vsel %vm821, %v1391, %v1395
        %v1397 = vrot.slane %v1352, 2
        %v1398 = vsel %vm821, %v1393, %v1397
        %v1399 = vrot.slane %v1353, 2
        %v1400 = vsel %vm821, %v1395, %v1399
        %v1401 = vrot.slane %v1354, 2
        %v1402 = vsel %vm821, %v1397, %v1401
        %v1403 = vrot.slane %v1355, 2
        %v1404 = vsel %vm821, %v1399, %v1403
        %v1405 = vrot.slane %v1356, 2
        %v1406 = vsel %vm821, %v1401, %v1405
        %v1407 = vrot.slane %v1357, 2
        %v1408 = vsel %vm821, %v1403, %v1407
        %v1409 = vrot.slane %v1358, 2
        %v1410 = vsel %vm821, %v1405, %v1409
        %v1429 = vmax.f32 %v1341, %v1379
        %v1430 = vmax.f32 %v1342, %v1382
        %v1431 = vmax.f32 %v1343, %v1384
        %v1432 = vmax.f32 %v1344, %v1386
        %v1433 = vmax.f32 %v1345, %v1388
        %v1434 = vmax.f32 %v1346, %v1390
        %v1435 = vmax.f32 %v1347, %v1392
        %v1436 = vmax.f32 %v1348, %v1394
        %v1437 = vmax.f32 %v1349, %v1396
        %v1438 = vmax.f32 %v1350, %v1398
        %v1439 = vmax.f32 %v1351, %v1400
        %v1440 = vmax.f32 %v1352, %v1402
        %v1441 = vmax.f32 %v1353, %v1404
        %v1442 = vmax.f32 %v1354, %v1406
        %v1443 = vmax.f32 %v1355, %v1408
        %v1444 = vmax.f32 %v1356, %v1410
        %v1445 = vmax.f32 %v1357, %v1407
        %v1446 = vmax.f32 %v1358, %v1409
        %vm1465 = vcmask 1040384
        %v1466 = vrot.slane %v1429, 7
        %v1467 = vrot.slane %v1430, 7
        %v1468 = vrot.slane %v1431, 7
        %v1469 = vsel %vm1465, %v1466, %v1468
        %v1470 = vrot.slane %v1432, 7
        %v1471 = vsel %vm1465, %v1467, %v1470
        %v1472 = vrot.slane %v1433, 7
        %v1473 = vsel %vm1465, %v1468, %v1472
        %v1474 = vrot.slane %v1434, 7
        %v1475 = vsel %vm1465, %v1470, %v1474
        %v1476 = vrot.slane %v1435, 7
        %v1477 = vsel %vm1465, %v1472, %v1476
        %v1478 = vrot.slane %v1436, 7
        %v1479 = vsel %vm1465, %v1474, %v1478
        %v1480 = vrot.slane %v1437, 7
        %v1481 = vsel %vm1465, %v1476, %v1480
        %v1482 = vrot.slane %v1438, 7
        %v1483 = vsel %vm1465, %v1478, %v1482
        %v1484 = vrot.slane %v1439, 7
        %v1485 = vsel %vm1465, %v1480, %v1484
        %v1486 = vrot.slane %v1440, 7
        %v1487 = vsel %vm1465, %v1482, %v1486
        %v1488 = vrot.slane %v1441, 7
        %v1489 = vsel %vm1465, %v1484, %v1488
        %v1490 = vrot.slane %v1442, 7
        %v1491 = vsel %vm1465, %v1486, %v1490
        %v1492 = vrot.slane %v1443, 7
        %v1493 = vsel %vm1465, %v1488, %v1492
        %v1494 = vrot.slane %v1444, 7
        %v1495 = vsel %vm1465, %v1490, %v1494
        %v1496 = vrot.slane %v1445, 7
        %v1497 = vsel %vm1465, %v1492, %v1496
        %v1498 = vrot.slane %v1446, 7
        %v1499 = vsel %vm1465, %v1494, %v1498
        %v1518 = vmax.f32 %v1341, %v1466
        %v1519 = vmax.f32 %v1342, %v1467
        %v1520 = vmax.f32 %v1343, %v1469
        %v1521 = vmax.f32 %v1344, %v1471
        %v1522 = vmax.f32 %v1345, %v1473
        %v1523 = vmax.f32 %v1346, %v1475
        %v1524 = vmax.f32 %v1347, %v1477
        %v1525 = vmax.f32 %v1348, %v1479
        %v1526 = vmax.f32 %v1349, %v1481
        %v1527 = vmax.f32 %v1350, %v1483
        %v1528 = vmax.f32 %v1351, %v1485
        %v1529 = vmax.f32 %v1352, %v1487
        %v1530 = vmax.f32 %v1353, %v1489
        %v1531 = vmax.f32 %v1354, %v1491
        %v1532 = vmax.f32 %v1355, %v1493
        %v1533 = vmax.f32 %v1356, %v1495
        %v1534 = vmax.f32 %v1357, %v1497
        %v1535 = vmax.f32 %v1358, %v1499
        %vm1536 = vcmp.gt.f32.partialorder %v1518, 0.0
        %vm1537 = vcmp.gt.f32.partialorder %v1519, 0.0
        %vm1538 = vcmp.gt.f32.partialorder %v1520, 0.0
        %vm1539 = vcmp.gt.f32.partialorder %v1521, 0.0
        %vm1540 = vcmp.gt.f32.partialorder %v1522, 0.0
        %vm1541 = vcmp.gt.f32.partialorder %v1523, 0.0
        %vm1542 = vcmp.gt.f32.partialorder %v1524, 0.0
        %vm1543 = vcmp.gt.f32.partialorder %v1525, 0.0
        %vm1544 = vcmp.gt.f32.partialorder %v1526, 0.0
        %vm1545 = vcmp.gt.f32.partialorder %v1527, 0.0
        %vm1546 = vcmp.gt.f32.partialorder %v1528, 0.0
        %vm1547 = vcmp.gt.f32.partialorder %v1529, 0.0
        %vm1548 = vcmp.gt.f32.partialorder %v1530, 0.0
        %vm1549 = vcmp.gt.f32.partialorder %v1531, 0.0
        %vm1550 = vcmp.gt.f32.partialorder %v1532, 0.0
        %vm1551 = vcmp.gt.f32.partialorder %v1533, 0.0
        %vm1552 = vcmp.gt.f32.partialorder %v1534, 0.0
        %vm1553 = vcmp.gt.f32.partialorder %v1535, 0.0
        %vm1554 = vmand %vm1124, %vm1536
        %vm1555 = vmand %vm1125, %vm1537
        %vm1556 = vmand %vm1126, %vm1538
        %vm1557 = vmand %vm1127, %vm1539
        %vm1558 = vmand %vm1128, %vm1540
        %vm1559 = vmand %vm1129, %vm1541
        %vm1560 = vmand %vm1130, %vm1542
        %vm1561 = vmand %vm1131, %vm1543
        %vm1562 = vmand %vm1132, %vm1544
        %vm1563 = vmand %vm1133, %vm1545
        %vm1564 = vmand %vm1134, %vm1546
        %vm1565 = vmand %vm1135, %vm1547
        %vm1566 = vmand %vm1136, %vm1548
        %vm1567 = vmand %vm1137, %vm1549
        %vm1568 = vmand %vm1138, %vm1550
        %vm1569 = vmand %vm1139, %vm1551
        %vm1570 = vmand %vm1140, %vm1552
        %vm1571 = vmand %vm1141, %vm1553
        %v1572 = vsel %vm1554, 1.0, 0.0
        %v1573 = vsel %vm1555, 1.0, 0.0
        %v1574 = vsel %vm1556, 1.0, 0.0
        %v1575 = vsel %vm1557, 1.0, 0.0
        %v1576 = vsel %vm1558, 1.0, 0.0
        %v1577 = vsel %vm1559, 1.0, 0.0
        %v1578 = vsel %vm1560, 1.0, 0.0
        %v1579 = vsel %vm1561, 1.0, 0.0
        %v1580 = vsel %vm1562, 1.0, 0.0
        %v1581 = vsel %vm1563, 1.0, 0.0
        %v1582 = vsel %vm1564, 1.0, 0.0
        %v1583 = vsel %vm1565, 1.0, 0.0
        %v1584 = vsel %vm1566, 1.0, 0.0
        %v1585 = vsel %vm1567, 1.0, 0.0
        %v1586 = vsel %vm1568, 1.0, 0.0
        %v1587 = vsel %vm1569, 1.0, 0.0
        %v1588 = vsel %vm1570, 1.0, 0.0
        %v1589 = vsel %vm1571, 1.0, 0.0
        %v1590 = vstv %s272
        %vm1591 = vcmp.gt.f32.partialorder %v1105, %v1590
        %vm1592 = vcmp.gt.f32.partialorder %v1106, %v1590
        %vm1593 = vcmp.gt.f32.partialorder %v1107, %v1590
        %vm1594 = vcmp.gt.f32.partialorder %v1108, %v1590
        %vm1595 = vcmp.gt.f32.partialorder %v1109, %v1590
        %vm1596 = vcmp.gt.f32.partialorder %v1110, %v1590
        %vm1597 = vcmp.gt.f32.partialorder %v1111, %v1590
        %vm1598 = vcmp.gt.f32.partialorder %v1112, %v1590
        %vm1599 = vcmp.gt.f32.partialorder %v1113, %v1590
        %vm1600 = vcmp.gt.f32.partialorder %v1114, %v1590
        %vm1601 = vcmp.gt.f32.partialorder %v1115, %v1590
        %vm1602 = vcmp.gt.f32.partialorder %v1116, %v1590
        %vm1603 = vcmp.gt.f32.partialorder %v1117, %v1590
        %vm1604 = vcmp.gt.f32.partialorder %v1118, %v1590
        %vm1605 = vcmp.gt.f32.partialorder %v1119, %v1590
        %vm1606 = vcmp.gt.f32.partialorder %v1120, %v1590
        %vm1607 = vcmp.gt.f32.partialorder %v1121, %v1590
        %vm1608 = vcmp.gt.f32.partialorder %v1122, %v1590
        %v1609 = vsel %vm1591, 1.0, 0.0
        %v1610 = vsel %vm1592, 1.0, 0.0
        %v1611 = vsel %vm1593, 1.0, 0.0
        %v1612 = vsel %vm1594, 1.0, 0.0
        %v1613 = vsel %vm1595, 1.0, 0.0
        %v1614 = vsel %vm1596, 1.0, 0.0
        %v1615 = vsel %vm1597, 1.0, 0.0
        %v1616 = vsel %vm1598, 1.0, 0.0
        %v1617 = vsel %vm1599, 1.0, 0.0
        %v1618 = vsel %vm1600, 1.0, 0.0
        %v1619 = vsel %vm1601, 1.0, 0.0
        %v1620 = vsel %vm1602, 1.0, 0.0
        %v1621 = vsel %vm1603, 1.0, 0.0
        %v1622 = vsel %vm1604, 1.0, 0.0
        %v1623 = vsel %vm1605, 1.0, 0.0
        %v1624 = vsel %vm1606, 1.0, 0.0
        %v1625 = vsel %vm1607, 1.0, 0.0
        %v1626 = vsel %vm1608, 1.0, 0.0
        %1627 = vrot.lane.b32.xlu0 %v1609, 1
        %v1628 = vpop.permute.xlu0 %1627
        %1629 = vrot.lane.b32.xlu0 %v1611, 1
        %v1630 = vpop.permute.xlu0 %1629
        %1631 = vrot.lane.b32.xlu0 %v1613, 1
        %v1632 = vpop.permute.xlu0 %1631
        %1633 = vrot.lane.b32.xlu0 %v1615, 1
        %v1634 = vpop.permute.xlu0 %1633
        %1635 = vrot.lane.b32.xlu0 %v1617, 1
        %v1636 = vpop.permute.xlu0 %1635
        %1637 = vrot.lane.b32.xlu0 %v1619, 1
        %v1638 = vpop.permute.xlu0 %1637
        %1639 = vrot.lane.b32.xlu0 %v1621, 1
        %v1640 = vpop.permute.xlu0 %1639
        %1641 = vrot.lane.b32.xlu0 %v1623, 1
        %v1642 = vpop.permute.xlu0 %1641
        %1643 = vrot.lane.b32.xlu0 %v1625, 1
        %v1644 = vpop.permute.xlu0 %1643
        %1645 = vrot.lane.b32.xlu0 %v1610, 1
        %v1646 = vpop.permute.xlu0 %1645
        %1647 = vrot.lane.b32.xlu0 %v1612, 1
        %v1648 = vpop.permute.xlu0 %1647
        %1649 = vrot.lane.b32.xlu0 %v1614, 1
        %v1650 = vpop.permute.xlu0 %1649
        %1651 = vrot.lane.b32.xlu0 %v1616, 1
        %v1652 = vpop.permute.xlu0 %1651
        %1653 = vrot.lane.b32.xlu0 %v1618, 1
        %v1654 = vpop.permute.xlu0 %1653
        %1655 = vrot.lane.b32.xlu0 %v1620, 1
        %v1656 = vpop.permute.xlu0 %1655
        %1657 = vrot.lane.b32.xlu0 %v1622, 1
        %v1658 = vpop.permute.xlu0 %1657
        %1659 = vrot.lane.b32.xlu0 %v1624, 1
        %v1660 = vpop.permute.xlu0 %1659
        %1661 = vrot.lane.b32.xlu0 %v1626, 1
        %v1662 = vpop.permute.xlu0 %1661
        %v1663 = vsel %vm506, %v1628, %v1646
        %v1664 = vsel %vm506, %v1630, %v1648
        %v1665 = vsel %vm506, %v1632, %v1650
        %v1666 = vsel %vm506, %v1634, %v1652
        %v1667 = vsel %vm506, %v1636, %v1654
        %v1668 = vsel %vm506, %v1638, %v1656
        %v1669 = vsel %vm506, %v1640, %v1658
        %v1670 = vsel %vm506, %v1642, %v1660
        %v1671 = vsel %vm506, %v1644, %v1662
        %v1672 = vsel %vm506, %v1646, %v1628
        %v1673 = vsel %vm506, %v1648, %v1630
        %v1674 = vsel %vm506, %v1650, %v1632
        %v1675 = vsel %vm506, %v1652, %v1634
        %v1676 = vsel %vm506, %v1654, %v1636
        %v1677 = vsel %vm506, %v1656, %v1638
        %v1678 = vsel %vm506, %v1658, %v1640
        %v1679 = vsel %vm506, %v1660, %v1642
        %v1680 = vsel %vm506, %v1662, %v1644
        %v1681 = vsel %vm527, %v1672, 0.0
        %v1682 = vsel %vm528, %v1663, 0.0
        %v1683 = vsel %vm527, %v1673, 0.0
        %v1684 = vsel %vm528, %v1664, 0.0
        %v1685 = vsel %vm527, %v1674, 0.0
        %v1686 = vsel %vm528, %v1665, 0.0
        %v1687 = vsel %vm527, %v1675, 0.0
        %v1688 = vsel %vm528, %v1666, 0.0
        %v1689 = vsel %vm527, %v1676, 0.0
        %v1690 = vsel %vm528, %v1667, 0.0
        %v1691 = vsel %vm527, %v1677, 0.0
        %v1692 = vsel %vm528, %v1668, 0.0
        %v1693 = vsel %vm527, %v1678, 0.0
        %v1694 = vsel %vm528, %v1669, 0.0
        %v1695 = vsel %vm527, %v1679, 0.0
        %v1696 = vsel %vm528, %v1670, 0.0
        %v1697 = vsel %vm527, %v1680, 0.0
        %v1698 = vsel %vm528, %v1671, 0.0
        %1699 = vrot.lane.b32.xlu0 %v1609, 127
        %v1700 = vpop.permute.xlu0 %1699
        %1701 = vrot.lane.b32.xlu0 %v1611, 127
        %v1702 = vpop.permute.xlu0 %1701
        %1703 = vrot.lane.b32.xlu0 %v1613, 127
        %v1704 = vpop.permute.xlu0 %1703
        %1705 = vrot.lane.b32.xlu0 %v1615, 127
        %v1706 = vpop.permute.xlu0 %1705
        %1707 = vrot.lane.b32.xlu0 %v1617, 127
        %v1708 = vpop.permute.xlu0 %1707
        %1709 = vrot.lane.b32.xlu0 %v1619, 127
        %v1710 = vpop.permute.xlu0 %1709
        %1711 = vrot.lane.b32.xlu0 %v1621, 127
        %v1712 = vpop.permute.xlu0 %1711
        %1713 = vrot.lane.b32.xlu0 %v1623, 127
        %v1714 = vpop.permute.xlu0 %1713
        %1715 = vrot.lane.b32.xlu0 %v1625, 127
        %v1716 = vpop.permute.xlu0 %1715
        %1717 = vrot.lane.b32.xlu0 %v1610, 127
        %v1718 = vpop.permute.xlu0 %1717
        %1719 = vrot.lane.b32.xlu0 %v1612, 127
        %v1720 = vpop.permute.xlu0 %1719
        %1721 = vrot.lane.b32.xlu0 %v1614, 127
        %v1722 = vpop.permute.xlu0 %1721
        %1723 = vrot.lane.b32.xlu0 %v1616, 127
        %v1724 = vpop.permute.xlu0 %1723
        %1725 = vrot.lane.b32.xlu0 %v1618, 127
        %v1726 = vpop.permute.xlu0 %1725
        %1727 = vrot.lane.b32.xlu0 %v1620, 127
        %v1728 = vpop.permute.xlu0 %1727
        %1729 = vrot.lane.b32.xlu0 %v1622, 127
        %v1730 = vpop.permute.xlu0 %1729
        %1731 = vrot.lane.b32.xlu0 %v1624, 127
        %v1732 = vpop.permute.xlu0 %1731
        %1733 = vrot.lane.b32.xlu0 %v1626, 127
        %v1734 = vpop.permute.xlu0 %1733
        %v1735 = vsel %vm583, %v1700, %v1718
        %v1736 = vsel %vm583, %v1702, %v1720
        %v1737 = vsel %vm583, %v1704, %v1722
        %v1738 = vsel %vm583, %v1706, %v1724
        %v1739 = vsel %vm583, %v1708, %v1726
        %v1740 = vsel %vm583, %v1710, %v1728
        %v1741 = vsel %vm583, %v1712, %v1730
        %v1742 = vsel %vm583, %v1714, %v1732
        %v1743 = vsel %vm583, %v1716, %v1734
        %v1744 = vsel %vm583, %v1718, %v1700
        %v1745 = vsel %vm583, %v1720, %v1702
        %v1746 = vsel %vm583, %v1722, %v1704
        %v1747 = vsel %vm583, %v1724, %v1706
        %v1748 = vsel %vm583, %v1726, %v1708
        %v1749 = vsel %vm583, %v1728, %v1710
        %v1750 = vsel %vm583, %v1730, %v1712
        %v1751 = vsel %vm583, %v1732, %v1714
        %v1752 = vsel %vm583, %v1734, %v1716
        %v1753 = vsel %vm604, %v1735, 0.0
        %v1754 = vsel %vm605, %v1744, 0.0
        %v1755 = vsel %vm604, %v1736, 0.0
        %v1756 = vsel %vm605, %v1745, 0.0
        %v1757 = vsel %vm604, %v1737, 0.0
        %v1758 = vsel %vm605, %v1746, 0.0
        %v1759 = vsel %vm604, %v1738, 0.0
        %v1760 = vsel %vm605, %v1747, 0.0
        %v1761 = vsel %vm604, %v1739, 0.0
        %v1762 = vsel %vm605, %v1748, 0.0
        %v1763 = vsel %vm604, %v1740, 0.0
        %v1764 = vsel %vm605, %v1749, 0.0
        %v1765 = vsel %vm604, %v1741, 0.0
        %v1766 = vsel %vm605, %v1750, 0.0
        %v1767 = vsel %vm604, %v1742, 0.0
        %v1768 = vsel %vm605, %v1751, 0.0
        %v1769 = vsel %vm604, %v1743, 0.0
        %v1770 = vsel %vm605, %v1752, 0.0
        %v1771 = vmax.f32 %v1681, %v1753
        %v1772 = vmax.f32 %v1682, %v1754
        %v1773 = vmax.f32 %v1683, %v1755
        %v1774 = vmax.f32 %v1684, %v1756
        %v1775 = vmax.f32 %v1685, %v1757
        %v1776 = vmax.f32 %v1686, %v1758
        %v1777 = vmax.f32 %v1687, %v1759
        %v1778 = vmax.f32 %v1688, %v1760
        %v1779 = vmax.f32 %v1689, %v1761
        %v1780 = vmax.f32 %v1690, %v1762
        %v1781 = vmax.f32 %v1691, %v1763
        %v1782 = vmax.f32 %v1692, %v1764
        %v1783 = vmax.f32 %v1693, %v1765
        %v1784 = vmax.f32 %v1694, %v1766
        %v1785 = vmax.f32 %v1695, %v1767
        %v1786 = vmax.f32 %v1696, %v1768
        %v1787 = vmax.f32 %v1697, %v1769
        %v1788 = vmax.f32 %v1698, %v1770
        %v1789 = vmax.f32 %v1609, %v1771
        %v1790 = vmax.f32 %v1610, %v1772
        %v1791 = vmax.f32 %v1611, %v1773
        %v1792 = vmax.f32 %v1612, %v1774
        %v1793 = vmax.f32 %v1613, %v1775
        %v1794 = vmax.f32 %v1614, %v1776
        %v1795 = vmax.f32 %v1615, %v1777
        %v1796 = vmax.f32 %v1616, %v1778
        %v1797 = vmax.f32 %v1617, %v1779
        %v1798 = vmax.f32 %v1618, %v1780
        %v1799 = vmax.f32 %v1619, %v1781
        %v1800 = vmax.f32 %v1620, %v1782
        %v1801 = vmax.f32 %v1621, %v1783
        %v1802 = vmax.f32 %v1622, %v1784
        %v1803 = vmax.f32 %v1623, %v1785
        %v1804 = vmax.f32 %v1624, %v1786
        %v1805 = vmax.f32 %v1625, %v1787
        %v1806 = vmax.f32 %v1626, %v1788
        %v1825 = vrot.slane %v1789, 2
        %v1826 = vrot.slane %v1791, 2
        %v1827 = vsel %vm821, %v1825, %v1826
        %v1828 = vrot.slane %v1790, 2
        %v1829 = vrot.slane %v1792, 2
        %v1830 = vsel %vm821, %v1828, %v1829
        %v1831 = vrot.slane %v1793, 2
        %v1832 = vsel %vm821, %v1826, %v1831
        %v1833 = vrot.slane %v1794, 2
        %v1834 = vsel %vm821, %v1829, %v1833
        %v1835 = vrot.slane %v1795, 2
        %v1836 = vsel %vm821, %v1831, %v1835
        %v1837 = vrot.slane %v1796, 2
        %v1838 = vsel %vm821, %v1833, %v1837
        %v1839 = vrot.slane %v1797, 2
        %v1840 = vsel %vm821, %v1835, %v1839
        %v1841 = vrot.slane %v1798, 2
        %v1842 = vsel %vm821, %v1837, %v1841
        %v1843 = vrot.slane %v1799, 2
        %v1844 = vsel %vm821, %v1839, %v1843
        %v1845 = vrot.slane %v1800, 2
        %v1846 = vsel %vm821, %v1841, %v1845
        %v1847 = vrot.slane %v1801, 2
        %v1848 = vsel %vm821, %v1843, %v1847
        %v1849 = vrot.slane %v1802, 2
        %v1850 = vsel %vm821, %v1845, %v1849
        %v1851 = vrot.slane %v1803, 2
        %v1852 = vsel %vm821, %v1847, %v1851
        %v1853 = vrot.slane %v1804, 2
        %v1854 = vsel %vm821, %v1849, %v1853
        %v1855 = vrot.slane %v1805, 2
        %v1856 = vsel %vm821, %v1851, %v1855
        %v1857 = vrot.slane %v1806, 2
        %v1858 = vsel %vm821, %v1853, %v1857
        %v1877 = vmax.f32 %v1789, %v1827
        %v1878 = vmax.f32 %v1790, %v1830
        %v1879 = vmax.f32 %v1791, %v1832
        %v1880 = vmax.f32 %v1792, %v1834
        %v1881 = vmax.f32 %v1793, %v1836
        %v1882 = vmax.f32 %v1794, %v1838
        %v1883 = vmax.f32 %v1795, %v1840
        %v1884 = vmax.f32 %v1796, %v1842
        %v1885 = vmax.f32 %v1797, %v1844
        %v1886 = vmax.f32 %v1798, %v1846
        %v1887 = vmax.f32 %v1799, %v1848
        %v1888 = vmax.f32 %v1800, %v1850
        %v1889 = vmax.f32 %v1801, %v1852
        %v1890 = vmax.f32 %v1802, %v1854
        %v1891 = vmax.f32 %v1803, %v1856
        %v1892 = vmax.f32 %v1804, %v1858
        %v1893 = vmax.f32 %v1805, %v1855
        %v1894 = vmax.f32 %v1806, %v1857
        %v1913 = vrot.slane %v1877, 7
        %v1914 = vrot.slane %v1878, 7
        %v1915 = vrot.slane %v1879, 7
        %v1916 = vsel %vm1465, %v1913, %v1915
        %v1917 = vrot.slane %v1880, 7
        %v1918 = vsel %vm1465, %v1914, %v1917
        %v1919 = vrot.slane %v1881, 7
        %v1920 = vsel %vm1465, %v1915, %v1919
        %v1921 = vrot.slane %v1882, 7
        %v1922 = vsel %vm1465, %v1917, %v1921
        %v1923 = vrot.slane %v1883, 7
        %v1924 = vsel %vm1465, %v1919, %v1923
        %v1925 = vrot.slane %v1884, 7
        %v1926 = vsel %vm1465, %v1921, %v1925
        %v1927 = vrot.slane %v1885, 7
        %v1928 = vsel %vm1465, %v1923, %v1927
        %v1929 = vrot.slane %v1886, 7
        %v1930 = vsel %vm1465, %v1925, %v1929
        %v1931 = vrot.slane %v1887, 7
        %v1932 = vsel %vm1465, %v1927, %v1931
        %v1933 = vrot.slane %v1888, 7
        %v1934 = vsel %vm1465, %v1929, %v1933
        %v1935 = vrot.slane %v1889, 7
        %v1936 = vsel %vm1465, %v1931, %v1935
        %v1937 = vrot.slane %v1890, 7
        %v1938 = vsel %vm1465, %v1933, %v1937
        %v1939 = vrot.slane %v1891, 7
        %v1940 = vsel %vm1465, %v1935, %v1939
        %v1941 = vrot.slane %v1892, 7
        %v1942 = vsel %vm1465, %v1937, %v1941
        %v1943 = vrot.slane %v1893, 7
        %v1944 = vsel %vm1465, %v1939, %v1943
        %v1945 = vrot.slane %v1894, 7
        %v1946 = vsel %vm1465, %v1941, %v1945
        %v1965 = vmax.f32 %v1789, %v1913
        %v1966 = vmax.f32 %v1790, %v1914
        %v1967 = vmax.f32 %v1791, %v1916
        %v1968 = vmax.f32 %v1792, %v1918
        %v1969 = vmax.f32 %v1793, %v1920
        %v1970 = vmax.f32 %v1794, %v1922
        %v1971 = vmax.f32 %v1795, %v1924
        %v1972 = vmax.f32 %v1796, %v1926
        %v1973 = vmax.f32 %v1797, %v1928
        %v1974 = vmax.f32 %v1798, %v1930
        %v1975 = vmax.f32 %v1799, %v1932
        %v1976 = vmax.f32 %v1800, %v1934
        %v1977 = vmax.f32 %v1801, %v1936
        %v1978 = vmax.f32 %v1802, %v1938
        %v1979 = vmax.f32 %v1803, %v1940
        %v1980 = vmax.f32 %v1804, %v1942
        %v1981 = vmax.f32 %v1805, %v1944
        %v1982 = vmax.f32 %v1806, %v1946
        %vm1983 = vcmp.gt.f32.partialorder %v1965, 0.0
        %vm1984 = vcmp.gt.f32.partialorder %v1966, 0.0
        %vm1985 = vcmp.gt.f32.partialorder %v1967, 0.0
        %vm1986 = vcmp.gt.f32.partialorder %v1968, 0.0
        %vm1987 = vcmp.gt.f32.partialorder %v1969, 0.0
        %vm1988 = vcmp.gt.f32.partialorder %v1970, 0.0
        %vm1989 = vcmp.gt.f32.partialorder %v1971, 0.0
        %vm1990 = vcmp.gt.f32.partialorder %v1972, 0.0
        %vm1991 = vcmp.gt.f32.partialorder %v1973, 0.0
        %vm1992 = vcmp.gt.f32.partialorder %v1974, 0.0
        %vm1993 = vcmp.gt.f32.partialorder %v1975, 0.0
        %vm1994 = vcmp.gt.f32.partialorder %v1976, 0.0
        %vm1995 = vcmp.gt.f32.partialorder %v1977, 0.0
        %vm1996 = vcmp.gt.f32.partialorder %v1978, 0.0
        %vm1997 = vcmp.gt.f32.partialorder %v1979, 0.0
        %vm1998 = vcmp.gt.f32.partialorder %v1980, 0.0
        %vm1999 = vcmp.gt.f32.partialorder %v1981, 0.0
        %vm2000 = vcmp.gt.f32.partialorder %v1982, 0.0
        %vm2001 = vmand %vm1124, %vm1983
        %vm2002 = vmand %vm1125, %vm1984
        %vm2003 = vmand %vm1126, %vm1985
        %vm2004 = vmand %vm1127, %vm1986
        %vm2005 = vmand %vm1128, %vm1987
        %vm2006 = vmand %vm1129, %vm1988
        %vm2007 = vmand %vm1130, %vm1989
        %vm2008 = vmand %vm1131, %vm1990
        %vm2009 = vmand %vm1132, %vm1991
        %vm2010 = vmand %vm1133, %vm1992
        %vm2011 = vmand %vm1134, %vm1993
        %vm2012 = vmand %vm1135, %vm1994
        %vm2013 = vmand %vm1136, %vm1995
        %vm2014 = vmand %vm1137, %vm1996
        %vm2015 = vmand %vm1138, %vm1997
        %vm2016 = vmand %vm1139, %vm1998
        %vm2017 = vmand %vm1140, %vm1999
        %vm2018 = vmand %vm1141, %vm2000
        %v2019 = vsel %vm2001, 1.0, 0.0
        %v2020 = vsel %vm2002, 1.0, 0.0
        %v2021 = vsel %vm2003, 1.0, 0.0
        %v2022 = vsel %vm2004, 1.0, 0.0
        %v2023 = vsel %vm2005, 1.0, 0.0
        %v2024 = vsel %vm2006, 1.0, 0.0
        %v2025 = vsel %vm2007, 1.0, 0.0
        %v2026 = vsel %vm2008, 1.0, 0.0
        %v2027 = vsel %vm2009, 1.0, 0.0
        %v2028 = vsel %vm2010, 1.0, 0.0
        %v2029 = vsel %vm2011, 1.0, 0.0
        %v2030 = vsel %vm2012, 1.0, 0.0
        %v2031 = vsel %vm2013, 1.0, 0.0
        %v2032 = vsel %vm2014, 1.0, 0.0
        %v2033 = vsel %vm2015, 1.0, 0.0
        %v2034 = vsel %vm2016, 1.0, 0.0
        %v2035 = vsel %vm2017, 1.0, 0.0
        %v2036 = vsel %vm2018, 1.0, 0.0
        %vm2037 = vcmp.ne.f32.partialorder %v1572, %v2019
        %vm2038 = vcmp.ne.f32.partialorder %v1573, %v2020
        %vm2039 = vcmp.ne.f32.partialorder %v1574, %v2021
        %vm2040 = vcmp.ne.f32.partialorder %v1575, %v2022
        %vm2041 = vcmp.ne.f32.partialorder %v1576, %v2023
        %vm2042 = vcmp.ne.f32.partialorder %v1577, %v2024
        %vm2043 = vcmp.ne.f32.partialorder %v1578, %v2025
        %vm2044 = vcmp.ne.f32.partialorder %v1579, %v2026
        %vm2045 = vcmp.ne.f32.partialorder %v1580, %v2027
        %vm2046 = vcmp.ne.f32.partialorder %v1581, %v2028
        %vm2047 = vcmp.ne.f32.partialorder %v1582, %v2029
        %vm2048 = vcmp.ne.f32.partialorder %v1583, %v2030
        %vm2049 = vcmp.ne.f32.partialorder %v1584, %v2031
        %vm2050 = vcmp.ne.f32.partialorder %v1585, %v2032
        %vm2051 = vcmp.ne.f32.partialorder %v1586, %v2033
        %vm2052 = vcmp.ne.f32.partialorder %v1587, %v2034
        %vm2053 = vcmp.ne.f32.partialorder %v1588, %v2035
        %vm2054 = vcmp.ne.f32.partialorder %v1589, %v2036
        %v2055 = vsel %vm2037, 1.0, 0.0
        %v2056 = vsel %vm2038, 1.0, 0.0
        %v2057 = vsel %vm2039, 1.0, 0.0
        %v2058 = vsel %vm2040, 1.0, 0.0
        %v2059 = vsel %vm2041, 1.0, 0.0
        %v2060 = vsel %vm2042, 1.0, 0.0
        %v2061 = vsel %vm2043, 1.0, 0.0
        %v2062 = vsel %vm2044, 1.0, 0.0
        %v2063 = vsel %vm2045, 1.0, 0.0
        %v2064 = vsel %vm2046, 1.0, 0.0
        %v2065 = vsel %vm2047, 1.0, 0.0
        %v2066 = vsel %vm2048, 1.0, 0.0
        %v2067 = vsel %vm2049, 1.0, 0.0
        %v2068 = vsel %vm2050, 1.0, 0.0
        %v2069 = vsel %vm2051, 1.0, 0.0
        %v2070 = vsel %vm2052, 1.0, 0.0
        %v2071 = vsel %vm2053, 1.0, 0.0
        %v2072 = vsel %vm2054, 1.0, 0.0
        %v2091 = vrot.slane %v2055, 1
        %v2092 = vrot.slane %v2057, 1
        %v2093 = vsel %vm732, %v2091, %v2092
        %v2094 = vrot.slane %v2056, 1
        %v2095 = vrot.slane %v2058, 1
        %v2096 = vsel %vm732, %v2094, %v2095
        %v2097 = vrot.slane %v2059, 1
        %v2098 = vsel %vm732, %v2092, %v2097
        %v2099 = vrot.slane %v2060, 1
        %v2100 = vsel %vm732, %v2095, %v2099
        %v2101 = vrot.slane %v2061, 1
        %v2102 = vsel %vm732, %v2097, %v2101
        %v2103 = vrot.slane %v2062, 1
        %v2104 = vsel %vm732, %v2099, %v2103
        %v2105 = vrot.slane %v2063, 1
        %v2106 = vsel %vm732, %v2101, %v2105
        %v2107 = vrot.slane %v2064, 1
        %v2108 = vsel %vm732, %v2103, %v2107
        %v2109 = vrot.slane %v2065, 1
        %v2110 = vsel %vm732, %v2105, %v2109
        %v2111 = vrot.slane %v2066, 1
        %v2112 = vsel %vm732, %v2107, %v2111
        %v2113 = vrot.slane %v2067, 1
        %v2114 = vsel %vm732, %v2109, %v2113
        %v2115 = vrot.slane %v2068, 1
        %v2116 = vsel %vm732, %v2111, %v2115
        %v2117 = vrot.slane %v2069, 1
        %v2118 = vsel %vm732, %v2113, %v2117
        %v2119 = vrot.slane %v2070, 1
        %v2120 = vsel %vm732, %v2115, %v2119
        %v2121 = vrot.slane %v2071, 1
        %v2122 = vsel %vm732, %v2117, %v2121
        %v2123 = vrot.slane %v2072, 1
        %v2124 = vsel %vm732, %v2119, %v2123
        %2143 = vrot.lane.b32.xlu0 %v2093, 1
        %v2144 = vpop.permute.xlu0 %2143
        %2145 = vrot.lane.b32.xlu0 %v2098, 1
        %v2146 = vpop.permute.xlu0 %2145
        %2147 = vrot.lane.b32.xlu0 %v2102, 1
        %v2148 = vpop.permute.xlu0 %2147
        %2149 = vrot.lane.b32.xlu0 %v2106, 1
        %v2150 = vpop.permute.xlu0 %2149
        %2151 = vrot.lane.b32.xlu0 %v2110, 1
        %v2152 = vpop.permute.xlu0 %2151
        %2153 = vrot.lane.b32.xlu0 %v2114, 1
        %v2154 = vpop.permute.xlu0 %2153
        %2155 = vrot.lane.b32.xlu0 %v2118, 1
        %v2156 = vpop.permute.xlu0 %2155
        %2157 = vrot.lane.b32.xlu0 %v2122, 1
        %v2158 = vpop.permute.xlu0 %2157
        %2159 = vrot.lane.b32.xlu0 %v2121, 1
        %v2160 = vpop.permute.xlu0 %2159
        %2161 = vrot.lane.b32.xlu0 %v2096, 1
        %v2162 = vpop.permute.xlu0 %2161
        %2163 = vrot.lane.b32.xlu0 %v2100, 1
        %v2164 = vpop.permute.xlu0 %2163
        %2165 = vrot.lane.b32.xlu0 %v2104, 1
        %v2166 = vpop.permute.xlu0 %2165
        %2167 = vrot.lane.b32.xlu0 %v2108, 1
        %v2168 = vpop.permute.xlu0 %2167
        %2169 = vrot.lane.b32.xlu0 %v2112, 1
        %v2170 = vpop.permute.xlu0 %2169
        %2171 = vrot.lane.b32.xlu0 %v2116, 1
        %v2172 = vpop.permute.xlu0 %2171
        %2173 = vrot.lane.b32.xlu0 %v2120, 1
        %v2174 = vpop.permute.xlu0 %2173
        %2175 = vrot.lane.b32.xlu0 %v2124, 1
        %v2176 = vpop.permute.xlu0 %2175
        %2177 = vrot.lane.b32.xlu0 %v2123, 1
        %v2178 = vpop.permute.xlu0 %2177
        %v2179 = vsel %vm506, %v2144, %v2162
        %v2180 = vsel %vm506, %v2146, %v2164
        %v2181 = vsel %vm506, %v2148, %v2166
        %v2182 = vsel %vm506, %v2150, %v2168
        %v2183 = vsel %vm506, %v2152, %v2170
        %v2184 = vsel %vm506, %v2154, %v2172
        %v2185 = vsel %vm506, %v2156, %v2174
        %v2186 = vsel %vm506, %v2158, %v2176
        %v2187 = vsel %vm506, %v2160, %v2178
        %v2188 = vsel %vm506, %v2162, %v2144
        %v2189 = vsel %vm506, %v2164, %v2146
        %v2190 = vsel %vm506, %v2166, %v2148
        %v2191 = vsel %vm506, %v2168, %v2150
        %v2192 = vsel %vm506, %v2170, %v2152
        %v2193 = vsel %vm506, %v2172, %v2154
        %v2194 = vsel %vm506, %v2174, %v2156
        %v2195 = vsel %vm506, %v2176, %v2158
        %v2196 = vsel %vm506, %v2178, %v2160
        %v2197 = vsel %vm527, %v2188, 0.0
        %v2198 = vsel %vm528, %v2179, 0.0
        %v2199 = vsel %vm527, %v2189, 0.0
        %v2200 = vsel %vm528, %v2180, 0.0
        %v2201 = vsel %vm527, %v2190, 0.0
        %v2202 = vsel %vm528, %v2181, 0.0
        %v2203 = vsel %vm527, %v2191, 0.0
        %v2204 = vsel %vm528, %v2182, 0.0
        %v2205 = vsel %vm527, %v2192, 0.0
        %v2206 = vsel %vm528, %v2183, 0.0
        %v2207 = vsel %vm527, %v2193, 0.0
        %v2208 = vsel %vm528, %v2184, 0.0
        %v2209 = vsel %vm527, %v2194, 0.0
        %v2210 = vsel %vm528, %v2185, 0.0
        %v2211 = vsel %vm527, %v2195, 0.0
        %v2212 = vsel %vm528, %v2186, 0.0
        %v2213 = vsel %vm527, %v2196, 0.0
        %v2214 = vsel %vm528, %v2187, 0.0
        %2215 = vrot.lane.b32.xlu0 %v2093, 127
        %v2216 = vpop.permute.xlu0 %2215
        %2217 = vrot.lane.b32.xlu0 %v2098, 127
        %v2218 = vpop.permute.xlu0 %2217
        %2219 = vrot.lane.b32.xlu0 %v2102, 127
        %v2220 = vpop.permute.xlu0 %2219
        %2221 = vrot.lane.b32.xlu0 %v2106, 127
        %v2222 = vpop.permute.xlu0 %2221
        %2223 = vrot.lane.b32.xlu0 %v2110, 127
        %v2224 = vpop.permute.xlu0 %2223
        %2225 = vrot.lane.b32.xlu0 %v2114, 127
        %v2226 = vpop.permute.xlu0 %2225
        %2227 = vrot.lane.b32.xlu0 %v2118, 127
        %v2228 = vpop.permute.xlu0 %2227
        %2229 = vrot.lane.b32.xlu0 %v2122, 127
        %v2230 = vpop.permute.xlu0 %2229
        %2231 = vrot.lane.b32.xlu0 %v2121, 127
        %v2232 = vpop.permute.xlu0 %2231
        %2233 = vrot.lane.b32.xlu0 %v2096, 127
        %v2234 = vpop.permute.xlu0 %2233
        %2235 = vrot.lane.b32.xlu0 %v2100, 127
        %v2236 = vpop.permute.xlu0 %2235
        %2237 = vrot.lane.b32.xlu0 %v2104, 127
        %v2238 = vpop.permute.xlu0 %2237
        %2239 = vrot.lane.b32.xlu0 %v2108, 127
        %v2240 = vpop.permute.xlu0 %2239
        %2241 = vrot.lane.b32.xlu0 %v2112, 127
        %v2242 = vpop.permute.xlu0 %2241
        %2243 = vrot.lane.b32.xlu0 %v2116, 127
        %v2244 = vpop.permute.xlu0 %2243
        %2245 = vrot.lane.b32.xlu0 %v2120, 127
        %v2246 = vpop.permute.xlu0 %2245
        %2247 = vrot.lane.b32.xlu0 %v2124, 127
        %v2248 = vpop.permute.xlu0 %2247
        %2249 = vrot.lane.b32.xlu0 %v2123, 127
        %v2250 = vpop.permute.xlu0 %2249
        %v2251 = vsel %vm583, %v2216, %v2234
        %v2252 = vsel %vm583, %v2218, %v2236
        %v2253 = vsel %vm583, %v2220, %v2238
        %v2254 = vsel %vm583, %v2222, %v2240
        %v2255 = vsel %vm583, %v2224, %v2242
        %v2256 = vsel %vm583, %v2226, %v2244
        %v2257 = vsel %vm583, %v2228, %v2246
        %v2258 = vsel %vm583, %v2230, %v2248
        %v2259 = vsel %vm583, %v2232, %v2250
        %v2260 = vsel %vm583, %v2234, %v2216
        %v2261 = vsel %vm583, %v2236, %v2218
        %v2262 = vsel %vm583, %v2238, %v2220
        %v2263 = vsel %vm583, %v2240, %v2222
        %v2264 = vsel %vm583, %v2242, %v2224
        %v2265 = vsel %vm583, %v2244, %v2226
        %v2266 = vsel %vm583, %v2246, %v2228
        %v2267 = vsel %vm583, %v2248, %v2230
        %v2268 = vsel %vm583, %v2250, %v2232
        %v2269 = vsel %vm604, %v2251, 0.0
        %v2270 = vsel %vm605, %v2260, 0.0
        %v2271 = vsel %vm604, %v2252, 0.0
        %v2272 = vsel %vm605, %v2261, 0.0
        %v2273 = vsel %vm604, %v2253, 0.0
        %v2274 = vsel %vm605, %v2262, 0.0
        %v2275 = vsel %vm604, %v2254, 0.0
        %v2276 = vsel %vm605, %v2263, 0.0
        %v2277 = vsel %vm604, %v2255, 0.0
        %v2278 = vsel %vm605, %v2264, 0.0
        %v2279 = vsel %vm604, %v2256, 0.0
        %v2280 = vsel %vm605, %v2265, 0.0
        %v2281 = vsel %vm604, %v2257, 0.0
        %v2282 = vsel %vm605, %v2266, 0.0
        %v2283 = vsel %vm604, %v2258, 0.0
        %v2284 = vsel %vm605, %v2267, 0.0
        %v2285 = vsel %vm604, %v2259, 0.0
        %v2286 = vsel %vm605, %v2268, 0.0
        %v2287 = vmax.f32 %v2197, %v2269
        %v2288 = vmax.f32 %v2198, %v2270
        %v2289 = vmax.f32 %v2199, %v2271
        %v2290 = vmax.f32 %v2200, %v2272
        %v2291 = vmax.f32 %v2201, %v2273
        %v2292 = vmax.f32 %v2202, %v2274
        %v2293 = vmax.f32 %v2203, %v2275
        %v2294 = vmax.f32 %v2204, %v2276
        %v2295 = vmax.f32 %v2205, %v2277
        %v2296 = vmax.f32 %v2206, %v2278
        %v2297 = vmax.f32 %v2207, %v2279
        %v2298 = vmax.f32 %v2208, %v2280
        %v2299 = vmax.f32 %v2209, %v2281
        %v2300 = vmax.f32 %v2210, %v2282
        %v2301 = vmax.f32 %v2211, %v2283
        %v2302 = vmax.f32 %v2212, %v2284
        %v2303 = vmax.f32 %v2213, %v2285
        %v2304 = vmax.f32 %v2214, %v2286
        %v2323 = vrot.slane %v2287, 7
        %v2324 = vrot.slane %v2288, 7
        %v2325 = vrot.slane %v2289, 7
        %v2326 = vsel %vm1465, %v2323, %v2325
        %v2327 = vrot.slane %v2290, 7
        %v2328 = vsel %vm1465, %v2324, %v2327
        %v2329 = vrot.slane %v2291, 7
        %v2330 = vsel %vm1465, %v2325, %v2329
        %v2331 = vrot.slane %v2292, 7
        %v2332 = vsel %vm1465, %v2327, %v2331
        %v2333 = vrot.slane %v2293, 7
        %v2334 = vsel %vm1465, %v2329, %v2333
        %v2335 = vrot.slane %v2294, 7
        %v2336 = vsel %vm1465, %v2331, %v2335
        %v2337 = vrot.slane %v2295, 7
        %v2338 = vsel %vm1465, %v2333, %v2337
        %v2339 = vrot.slane %v2296, 7
        %v2340 = vsel %vm1465, %v2335, %v2339
        %v2341 = vrot.slane %v2297, 7
        %v2342 = vsel %vm1465, %v2337, %v2341
        %v2343 = vrot.slane %v2298, 7
        %v2344 = vsel %vm1465, %v2339, %v2343
        %v2345 = vrot.slane %v2299, 7
        %v2346 = vsel %vm1465, %v2341, %v2345
        %v2347 = vrot.slane %v2300, 7
        %v2348 = vsel %vm1465, %v2343, %v2347
        %v2349 = vrot.slane %v2301, 7
        %v2350 = vsel %vm1465, %v2345, %v2349
        %v2351 = vrot.slane %v2302, 7
        %v2352 = vsel %vm1465, %v2347, %v2351
        %v2353 = vrot.slane %v2303, 7
        %v2354 = vsel %vm1465, %v2349, %v2353
        %v2355 = vrot.slane %v2304, 7
        %v2356 = vsel %vm1465, %v2351, %v2355
        %v2375 = vmax.f32 %v2055, %v2323
        %v2376 = vmax.f32 %v2056, %v2324
        %v2377 = vmax.f32 %v2057, %v2326
        %v2378 = vmax.f32 %v2058, %v2328
        %v2379 = vmax.f32 %v2059, %v2330
        %v2380 = vmax.f32 %v2060, %v2332
        %v2381 = vmax.f32 %v2061, %v2334
        %v2382 = vmax.f32 %v2062, %v2336
        %v2383 = vmax.f32 %v2063, %v2338
        %v2384 = vmax.f32 %v2064, %v2340
        %v2385 = vmax.f32 %v2065, %v2342
        %v2386 = vmax.f32 %v2066, %v2344
        %v2387 = vmax.f32 %v2067, %v2346
        %v2388 = vmax.f32 %v2068, %v2348
        %v2389 = vmax.f32 %v2069, %v2350
        %v2390 = vmax.f32 %v2070, %v2352
        %v2391 = vmax.f32 %v2071, %v2354
        %v2392 = vmax.f32 %v2072, %v2356
        %2393 = vrot.lane.b32.xlu0 %v2093, 2
        %v2394 = vpop.permute.xlu0 %2393
        %2395 = vrot.lane.b32.xlu0 %v2098, 2
        %v2396 = vpop.permute.xlu0 %2395
        %2397 = vrot.lane.b32.xlu0 %v2102, 2
        %v2398 = vpop.permute.xlu0 %2397
        %2399 = vrot.lane.b32.xlu0 %v2106, 2
        %v2400 = vpop.permute.xlu0 %2399
        %2401 = vrot.lane.b32.xlu0 %v2110, 2
        %v2402 = vpop.permute.xlu0 %2401
        %2403 = vrot.lane.b32.xlu0 %v2114, 2
        %v2404 = vpop.permute.xlu0 %2403
        %2405 = vrot.lane.b32.xlu0 %v2118, 2
        %v2406 = vpop.permute.xlu0 %2405
        %2407 = vrot.lane.b32.xlu0 %v2122, 2
        %v2408 = vpop.permute.xlu0 %2407
        %2409 = vrot.lane.b32.xlu0 %v2121, 2
        %v2410 = vpop.permute.xlu0 %2409
        %2411 = vrot.lane.b32.xlu0 %v2096, 2
        %v2412 = vpop.permute.xlu0 %2411
        %2413 = vrot.lane.b32.xlu0 %v2100, 2
        %v2414 = vpop.permute.xlu0 %2413
        %2415 = vrot.lane.b32.xlu0 %v2104, 2
        %v2416 = vpop.permute.xlu0 %2415
        %2417 = vrot.lane.b32.xlu0 %v2108, 2
        %v2418 = vpop.permute.xlu0 %2417
        %2419 = vrot.lane.b32.xlu0 %v2112, 2
        %v2420 = vpop.permute.xlu0 %2419
        %2421 = vrot.lane.b32.xlu0 %v2116, 2
        %v2422 = vpop.permute.xlu0 %2421
        %2423 = vrot.lane.b32.xlu0 %v2120, 2
        %v2424 = vpop.permute.xlu0 %2423
        %2425 = vrot.lane.b32.xlu0 %v2124, 2
        %v2426 = vpop.permute.xlu0 %2425
        %2427 = vrot.lane.b32.xlu0 %v2123, 2
        %v2428 = vpop.permute.xlu0 %2427
        %vm2429 = vcmp.lt.s32.totalorder %v274, 2
        %v2430 = vsel %vm2429, %v2394, %v2412
        %v2431 = vsel %vm2429, %v2396, %v2414
        %v2432 = vsel %vm2429, %v2398, %v2416
        %v2433 = vsel %vm2429, %v2400, %v2418
        %v2434 = vsel %vm2429, %v2402, %v2420
        %v2435 = vsel %vm2429, %v2404, %v2422
        %v2436 = vsel %vm2429, %v2406, %v2424
        %v2437 = vsel %vm2429, %v2408, %v2426
        %v2438 = vsel %vm2429, %v2410, %v2428
        %v2439 = vsel %vm2429, %v2412, %v2394
        %v2440 = vsel %vm2429, %v2414, %v2396
        %v2441 = vsel %vm2429, %v2416, %v2398
        %v2442 = vsel %vm2429, %v2418, %v2400
        %v2443 = vsel %vm2429, %v2420, %v2402
        %v2444 = vsel %vm2429, %v2422, %v2404
        %v2445 = vsel %vm2429, %v2424, %v2406
        %v2446 = vsel %vm2429, %v2426, %v2408
        %v2447 = vsel %vm2429, %v2428, %v2410
        %v2448 = vsel %vm282, 1, 0
        %v2449 = vsel %vm283, 1, 0
        %vm2450 = vcmp.eq.s32.totalorder %v2448, 1
        %vm2451 = vcmp.eq.s32.totalorder %v2449, 1
        %v2452 = vsel %vm2450, %v2439, 0.0
        %v2453 = vsel %vm2451, %v2430, 0.0
        %v2454 = vsel %vm2450, %v2440, 0.0
        %v2455 = vsel %vm2451, %v2431, 0.0
        %v2456 = vsel %vm2450, %v2441, 0.0
        %v2457 = vsel %vm2451, %v2432, 0.0
        %v2458 = vsel %vm2450, %v2442, 0.0
        %v2459 = vsel %vm2451, %v2433, 0.0
        %v2460 = vsel %vm2450, %v2443, 0.0
        %v2461 = vsel %vm2451, %v2434, 0.0
        %v2462 = vsel %vm2450, %v2444, 0.0
        %v2463 = vsel %vm2451, %v2435, 0.0
        %v2464 = vsel %vm2450, %v2445, 0.0
        %v2465 = vsel %vm2451, %v2436, 0.0
        %v2466 = vsel %vm2450, %v2446, 0.0
        %v2467 = vsel %vm2451, %v2437, 0.0
        %v2468 = vsel %vm2450, %v2447, 0.0
        %v2469 = vsel %vm2451, %v2438, 0.0
        %2470 = vrot.lane.b32.xlu0 %v2093, 126
        %v2471 = vpop.permute.xlu0 %2470
        %2472 = vrot.lane.b32.xlu0 %v2098, 126
        %v2473 = vpop.permute.xlu0 %2472
        %2474 = vrot.lane.b32.xlu0 %v2102, 126
        %v2475 = vpop.permute.xlu0 %2474
        %2476 = vrot.lane.b32.xlu0 %v2106, 126
        %v2477 = vpop.permute.xlu0 %2476
        %2478 = vrot.lane.b32.xlu0 %v2110, 126
        %v2479 = vpop.permute.xlu0 %2478
        %2480 = vrot.lane.b32.xlu0 %v2114, 126
        %v2481 = vpop.permute.xlu0 %2480
        %2482 = vrot.lane.b32.xlu0 %v2118, 126
        %v2483 = vpop.permute.xlu0 %2482
        %2484 = vrot.lane.b32.xlu0 %v2122, 126
        %v2485 = vpop.permute.xlu0 %2484
        %2486 = vrot.lane.b32.xlu0 %v2121, 126
        %v2487 = vpop.permute.xlu0 %2486
        %2488 = vrot.lane.b32.xlu0 %v2096, 126
        %v2489 = vpop.permute.xlu0 %2488
        %2490 = vrot.lane.b32.xlu0 %v2100, 126
        %v2491 = vpop.permute.xlu0 %2490
        %2492 = vrot.lane.b32.xlu0 %v2104, 126
        %v2493 = vpop.permute.xlu0 %2492
        %2494 = vrot.lane.b32.xlu0 %v2108, 126
        %v2495 = vpop.permute.xlu0 %2494
        %2496 = vrot.lane.b32.xlu0 %v2112, 126
        %v2497 = vpop.permute.xlu0 %2496
        %2498 = vrot.lane.b32.xlu0 %v2116, 126
        %v2499 = vpop.permute.xlu0 %2498
        %2500 = vrot.lane.b32.xlu0 %v2120, 126
        %v2501 = vpop.permute.xlu0 %2500
        %2502 = vrot.lane.b32.xlu0 %v2124, 126
        %v2503 = vpop.permute.xlu0 %2502
        %2504 = vrot.lane.b32.xlu0 %v2123, 126
        %v2505 = vpop.permute.xlu0 %2504
        %vm2506 = vcmp.lt.s32.totalorder %v274, 126
        %v2507 = vsel %vm2506, %v2471, %v2489
        %v2508 = vsel %vm2506, %v2473, %v2491
        %v2509 = vsel %vm2506, %v2475, %v2493
        %v2510 = vsel %vm2506, %v2477, %v2495
        %v2511 = vsel %vm2506, %v2479, %v2497
        %v2512 = vsel %vm2506, %v2481, %v2499
        %v2513 = vsel %vm2506, %v2483, %v2501
        %v2514 = vsel %vm2506, %v2485, %v2503
        %v2515 = vsel %vm2506, %v2487, %v2505
        %v2516 = vsel %vm2506, %v2489, %v2471
        %v2517 = vsel %vm2506, %v2491, %v2473
        %v2518 = vsel %vm2506, %v2493, %v2475
        %v2519 = vsel %vm2506, %v2495, %v2477
        %v2520 = vsel %vm2506, %v2497, %v2479
        %v2521 = vsel %vm2506, %v2499, %v2481
        %v2522 = vsel %vm2506, %v2501, %v2483
        %v2523 = vsel %vm2506, %v2503, %v2485
        %v2524 = vsel %vm2506, %v2505, %v2487
        %v2525 = vsel %vm306, 1, 0
        %v2526 = vsel %vm307, 1, 0
        %vm2527 = vcmp.eq.s32.totalorder %v2525, 1
        %vm2528 = vcmp.eq.s32.totalorder %v2526, 1
        %v2529 = vsel %vm2527, %v2507, 0.0
        %v2530 = vsel %vm2528, %v2516, 0.0
        %v2531 = vsel %vm2527, %v2508, 0.0
        %v2532 = vsel %vm2528, %v2517, 0.0
        %v2533 = vsel %vm2527, %v2509, 0.0
        %v2534 = vsel %vm2528, %v2518, 0.0
        %v2535 = vsel %vm2527, %v2510, 0.0
        %v2536 = vsel %vm2528, %v2519, 0.0
        %v2537 = vsel %vm2527, %v2511, 0.0
        %v2538 = vsel %vm2528, %v2520, 0.0
        %v2539 = vsel %vm2527, %v2512, 0.0
        %v2540 = vsel %vm2528, %v2521, 0.0
        %v2541 = vsel %vm2527, %v2513, 0.0
        %v2542 = vsel %vm2528, %v2522, 0.0
        %v2543 = vsel %vm2527, %v2514, 0.0
        %v2544 = vsel %vm2528, %v2523, 0.0
        %v2545 = vsel %vm2527, %v2515, 0.0
        %v2546 = vsel %vm2528, %v2524, 0.0
        %v2547 = vmax.f32 %v2452, %v2529
        %v2548 = vmax.f32 %v2453, %v2530
        %v2549 = vmax.f32 %v2454, %v2531
        %v2550 = vmax.f32 %v2455, %v2532
        %v2551 = vmax.f32 %v2456, %v2533
        %v2552 = vmax.f32 %v2457, %v2534
        %v2553 = vmax.f32 %v2458, %v2535
        %v2554 = vmax.f32 %v2459, %v2536
        %v2555 = vmax.f32 %v2460, %v2537
        %v2556 = vmax.f32 %v2461, %v2538
        %v2557 = vmax.f32 %v2462, %v2539
        %v2558 = vmax.f32 %v2463, %v2540
        %v2559 = vmax.f32 %v2464, %v2541
        %v2560 = vmax.f32 %v2465, %v2542
        %v2561 = vmax.f32 %v2466, %v2543
        %v2562 = vmax.f32 %v2467, %v2544
        %v2563 = vmax.f32 %v2468, %v2545
        %v2564 = vmax.f32 %v2469, %v2546
        %v2583 = vrot.slane %v2547, 7
        %v2584 = vrot.slane %v2548, 7
        %v2585 = vrot.slane %v2549, 7
        %v2586 = vsel %vm1465, %v2583, %v2585
        %v2587 = vrot.slane %v2550, 7
        %v2588 = vsel %vm1465, %v2584, %v2587
        %v2589 = vrot.slane %v2551, 7
        %v2590 = vsel %vm1465, %v2585, %v2589
        %v2591 = vrot.slane %v2552, 7
        %v2592 = vsel %vm1465, %v2587, %v2591
        %v2593 = vrot.slane %v2553, 7
        %v2594 = vsel %vm1465, %v2589, %v2593
        %v2595 = vrot.slane %v2554, 7
        %v2596 = vsel %vm1465, %v2591, %v2595
        %v2597 = vrot.slane %v2555, 7
        %v2598 = vsel %vm1465, %v2593, %v2597
        %v2599 = vrot.slane %v2556, 7
        %v2600 = vsel %vm1465, %v2595, %v2599
        %v2601 = vrot.slane %v2557, 7
        %v2602 = vsel %vm1465, %v2597, %v2601
        %v2603 = vrot.slane %v2558, 7
        %v2604 = vsel %vm1465, %v2599, %v2603
        %v2605 = vrot.slane %v2559, 7
        %v2606 = vsel %vm1465, %v2601, %v2605
        %v2607 = vrot.slane %v2560, 7
        %v2608 = vsel %vm1465, %v2603, %v2607
        %v2609 = vrot.slane %v2561, 7
        %v2610 = vsel %vm1465, %v2605, %v2609
        %v2611 = vrot.slane %v2562, 7
        %v2612 = vsel %vm1465, %v2607, %v2611
        %v2613 = vrot.slane %v2563, 7
        %v2614 = vsel %vm1465, %v2609, %v2613
        %v2615 = vrot.slane %v2564, 7
        %v2616 = vsel %vm1465, %v2611, %v2615
        %v2635 = vmax.f32 %v2375, %v2583
        %v2636 = vmax.f32 %v2376, %v2584
        %v2637 = vmax.f32 %v2377, %v2586
        %v2638 = vmax.f32 %v2378, %v2588
        %v2639 = vmax.f32 %v2379, %v2590
        %v2640 = vmax.f32 %v2380, %v2592
        %v2641 = vmax.f32 %v2381, %v2594
        %v2642 = vmax.f32 %v2382, %v2596
        %v2643 = vmax.f32 %v2383, %v2598
        %v2644 = vmax.f32 %v2384, %v2600
        %v2645 = vmax.f32 %v2385, %v2602
        %v2646 = vmax.f32 %v2386, %v2604
        %v2647 = vmax.f32 %v2387, %v2606
        %v2648 = vmax.f32 %v2388, %v2608
        %v2649 = vmax.f32 %v2389, %v2610
        %v2650 = vmax.f32 %v2390, %v2612
        %v2651 = vmax.f32 %v2391, %v2614
        %v2652 = vmax.f32 %v2392, %v2616
        %v2671 = vrot.slane %v2635, 1
        %v2672 = vrot.slane %v2637, 1
        %v2673 = vsel %vm732, %v2671, %v2672
        %v2674 = vrot.slane %v2636, 1
        %v2675 = vrot.slane %v2638, 1
        %v2676 = vsel %vm732, %v2674, %v2675
        %v2677 = vrot.slane %v2639, 1
        %v2678 = vsel %vm732, %v2672, %v2677
        %v2679 = vrot.slane %v2640, 1
        %v2680 = vsel %vm732, %v2675, %v2679
        %v2681 = vrot.slane %v2641, 1
        %v2682 = vsel %vm732, %v2677, %v2681
        %v2683 = vrot.slane %v2642, 1
        %v2684 = vsel %vm732, %v2679, %v2683
        %v2685 = vrot.slane %v2643, 1
        %v2686 = vsel %vm732, %v2681, %v2685
        %v2687 = vrot.slane %v2644, 1
        %v2688 = vsel %vm732, %v2683, %v2687
        %v2689 = vrot.slane %v2645, 1
        %v2690 = vsel %vm732, %v2685, %v2689
        %v2691 = vrot.slane %v2646, 1
        %v2692 = vsel %vm732, %v2687, %v2691
        %v2693 = vrot.slane %v2647, 1
        %v2694 = vsel %vm732, %v2689, %v2693
        %v2695 = vrot.slane %v2648, 1
        %v2696 = vsel %vm732, %v2691, %v2695
        %v2697 = vrot.slane %v2649, 1
        %v2698 = vsel %vm732, %v2693, %v2697
        %v2699 = vrot.slane %v2650, 1
        %v2700 = vsel %vm732, %v2695, %v2699
        %v2701 = vrot.slane %v2651, 1
        %v2702 = vsel %vm732, %v2697, %v2701
        %v2703 = vrot.slane %v2652, 1
        %v2704 = vsel %vm732, %v2699, %v2703
        %v2723 = vmax.f32 %v2635, %v2673
        %v2724 = vmax.f32 %v2636, %v2676
        %v2725 = vmax.f32 %v2637, %v2678
        %v2726 = vmax.f32 %v2638, %v2680
        %v2727 = vmax.f32 %v2639, %v2682
        %v2728 = vmax.f32 %v2640, %v2684
        %v2729 = vmax.f32 %v2641, %v2686
        %v2730 = vmax.f32 %v2642, %v2688
        %v2731 = vmax.f32 %v2643, %v2690
        %v2732 = vmax.f32 %v2644, %v2692
        %v2733 = vmax.f32 %v2645, %v2694
        %v2734 = vmax.f32 %v2646, %v2696
        %v2735 = vmax.f32 %v2647, %v2698
        %v2736 = vmax.f32 %v2648, %v2700
        %v2737 = vmax.f32 %v2649, %v2702
        %v2738 = vmax.f32 %v2650, %v2704
        %v2739 = vmax.f32 %v2651, %v2701
        %v2740 = vmax.f32 %v2652, %v2703
        %v2741 = vrot.slane %v2635, 2
        %v2742 = vrot.slane %v2637, 2
        %v2743 = vsel %vm821, %v2741, %v2742
        %v2744 = vrot.slane %v2636, 2
        %v2745 = vrot.slane %v2638, 2
        %v2746 = vsel %vm821, %v2744, %v2745
        %v2747 = vrot.slane %v2639, 2
        %v2748 = vsel %vm821, %v2742, %v2747
        %v2749 = vrot.slane %v2640, 2
        %v2750 = vsel %vm821, %v2745, %v2749
        %v2751 = vrot.slane %v2641, 2
        %v2752 = vsel %vm821, %v2747, %v2751
        %v2753 = vrot.slane %v2642, 2
        %v2754 = vsel %vm821, %v2749, %v2753
        %v2755 = vrot.slane %v2643, 2
        %v2756 = vsel %vm821, %v2751, %v2755
        %v2757 = vrot.slane %v2644, 2
        %v2758 = vsel %vm821, %v2753, %v2757
        %v2759 = vrot.slane %v2645, 2
        %v2760 = vsel %vm821, %v2755, %v2759
        %v2761 = vrot.slane %v2646, 2
        %v2762 = vsel %vm821, %v2757, %v2761
        %v2763 = vrot.slane %v2647, 2
        %v2764 = vsel %vm821, %v2759, %v2763
        %v2765 = vrot.slane %v2648, 2
        %v2766 = vsel %vm821, %v2761, %v2765
        %v2767 = vrot.slane %v2649, 2
        %v2768 = vsel %vm821, %v2763, %v2767
        %v2769 = vrot.slane %v2650, 2
        %v2770 = vsel %vm821, %v2765, %v2769
        %v2771 = vrot.slane %v2651, 2
        %v2772 = vsel %vm821, %v2767, %v2771
        %v2773 = vrot.slane %v2652, 2
        %v2774 = vsel %vm821, %v2769, %v2773
        %v2793 = vmax.f32 %v2723, %v2743
        %v2794 = vmax.f32 %v2724, %v2746
        %v2795 = vmax.f32 %v2725, %v2748
        %v2796 = vmax.f32 %v2726, %v2750
        %v2797 = vmax.f32 %v2727, %v2752
        %v2798 = vmax.f32 %v2728, %v2754
        %v2799 = vmax.f32 %v2729, %v2756
        %v2800 = vmax.f32 %v2730, %v2758
        %v2801 = vmax.f32 %v2731, %v2760
        %v2802 = vmax.f32 %v2732, %v2762
        %v2803 = vmax.f32 %v2733, %v2764
        %v2804 = vmax.f32 %v2734, %v2766
        %v2805 = vmax.f32 %v2735, %v2768
        %v2806 = vmax.f32 %v2736, %v2770
        %v2807 = vmax.f32 %v2737, %v2772
        %v2808 = vmax.f32 %v2738, %v2774
        %v2809 = vmax.f32 %v2739, %v2771
        %v2810 = vmax.f32 %v2740, %v2773
        %v2829 = vrot.slane %v2793, 2
        %v2830 = vrot.slane %v2795, 2
        %v2831 = vsel %vm821, %v2829, %v2830
        %v2832 = vrot.slane %v2794, 2
        %v2833 = vrot.slane %v2796, 2
        %v2834 = vsel %vm821, %v2832, %v2833
        %v2835 = vrot.slane %v2797, 2
        %v2836 = vsel %vm821, %v2830, %v2835
        %v2837 = vrot.slane %v2798, 2
        %v2838 = vsel %vm821, %v2833, %v2837
        %v2839 = vrot.slane %v2799, 2
        %v2840 = vsel %vm821, %v2835, %v2839
        %v2841 = vrot.slane %v2800, 2
        %v2842 = vsel %vm821, %v2837, %v2841
        %v2843 = vrot.slane %v2801, 2
        %v2844 = vsel %vm821, %v2839, %v2843
        %v2845 = vrot.slane %v2802, 2
        %v2846 = vsel %vm821, %v2841, %v2845
        %v2847 = vrot.slane %v2803, 2
        %v2848 = vsel %vm821, %v2843, %v2847
        %v2849 = vrot.slane %v2804, 2
        %v2850 = vsel %vm821, %v2845, %v2849
        %v2851 = vrot.slane %v2805, 2
        %v2852 = vsel %vm821, %v2847, %v2851
        %v2853 = vrot.slane %v2806, 2
        %v2854 = vsel %vm821, %v2849, %v2853
        %v2855 = vrot.slane %v2807, 2
        %v2856 = vsel %vm821, %v2851, %v2855
        %v2857 = vrot.slane %v2808, 2
        %v2858 = vsel %vm821, %v2853, %v2857
        %v2859 = vrot.slane %v2809, 2
        %v2860 = vsel %vm821, %v2855, %v2859
        %v2861 = vrot.slane %v2810, 2
        %v2862 = vsel %vm821, %v2857, %v2861
        %v2881 = vmax.f32 %v2723, %v2831
        %v2882 = vmax.f32 %v2724, %v2834
        %v2883 = vmax.f32 %v2725, %v2836
        %v2884 = vmax.f32 %v2726, %v2838
        %v2885 = vmax.f32 %v2727, %v2840
        %v2886 = vmax.f32 %v2728, %v2842
        %v2887 = vmax.f32 %v2729, %v2844
        %v2888 = vmax.f32 %v2730, %v2846
        %v2889 = vmax.f32 %v2731, %v2848
        %v2890 = vmax.f32 %v2732, %v2850
        %v2891 = vmax.f32 %v2733, %v2852
        %v2892 = vmax.f32 %v2734, %v2854
        %v2893 = vmax.f32 %v2735, %v2856
        %v2894 = vmax.f32 %v2736, %v2858
        %v2895 = vmax.f32 %v2737, %v2860
        %v2896 = vmax.f32 %v2738, %v2862
        %v2897 = vmax.f32 %v2739, %v2859
        %v2898 = vmax.f32 %v2740, %v2861
        %vm2899 = vcmp.eq.f32.partialorder %v2881, 0.0
        %vm2900 = vcmp.eq.f32.partialorder %v2882, 0.0
        %vm2901 = vcmp.eq.f32.partialorder %v2883, 0.0
        %vm2902 = vcmp.eq.f32.partialorder %v2884, 0.0
        %vm2903 = vcmp.eq.f32.partialorder %v2885, 0.0
        %vm2904 = vcmp.eq.f32.partialorder %v2886, 0.0
        %vm2905 = vcmp.eq.f32.partialorder %v2887, 0.0
        %vm2906 = vcmp.eq.f32.partialorder %v2888, 0.0
        %vm2907 = vcmp.eq.f32.partialorder %v2889, 0.0
        %vm2908 = vcmp.eq.f32.partialorder %v2890, 0.0
        %vm2909 = vcmp.eq.f32.partialorder %v2891, 0.0
        %vm2910 = vcmp.eq.f32.partialorder %v2892, 0.0
        %vm2911 = vcmp.eq.f32.partialorder %v2893, 0.0
        %vm2912 = vcmp.eq.f32.partialorder %v2894, 0.0
        %vm2913 = vcmp.eq.f32.partialorder %v2895, 0.0
        %vm2914 = vcmp.eq.f32.partialorder %v2896, 0.0
        %vm2915 = vcmp.eq.f32.partialorder %v2897, 0.0
        %vm2916 = vcmp.eq.f32.partialorder %v2898, 0.0
        %vm2917 = vmpackc.low %vm2900, %vm2899
        %vm2918 = vmpackc.even %vm2917, %vm2917
        %vm2919 = vmpackc.low %vm2902, %vm2901
        %vm2920 = vmpackc.even %vm2919, %vm2919
        %vm2921 = vmpackc.low %vm2904, %vm2903
        %vm2922 = vmpackc.even %vm2921, %vm2921
        %vm2923 = vmpackc.low %vm2906, %vm2905
        %vm2924 = vmpackc.even %vm2923, %vm2923
        %vm2925 = vmpackc.low %vm2908, %vm2907
        %vm2926 = vmpackc.even %vm2925, %vm2925
        %vm2927 = vmpackc.low %vm2910, %vm2909
        %vm2928 = vmpackc.even %vm2927, %vm2927
        %vm2929 = vmpackc.low %vm2912, %vm2911
        %vm2930 = vmpackc.even %vm2929, %vm2929
        %vm2931 = vmpackc.low %vm2914, %vm2913
        %vm2932 = vmpackc.even %vm2931, %vm2931
        %vm2933 = vmpackc.low %vm2916, %vm2915
        %vm2934 = vmpackc.even %vm2933, %vm2933
        %v2935 = vsel %vm2918, 16843009, 0
        %v2936 = vsel %vm2920, 16843009, 0
        %v2937 = vsel %vm2922, 16843009, 0
        %v2938 = vsel %vm2924, 16843009, 0
        %v2939 = vsel %vm2926, 16843009, 0
        %v2940 = vsel %vm2928, 16843009, 0
        %v2941 = vsel %vm2930, 16843009, 0
        %v2942 = vsel %vm2932, 16843009, 0
        %v2943 = vsel %vm2934, 16843009, 0
        %v2944 = vunpack.c.0.s8 %v2935
        %v2945 = vunpack.c.1.s8 %v2935
        %v2946 = vunpack.c.0.s8 %v2936
        %v2947 = vunpack.c.1.s8 %v2936
        %v2948 = vunpack.c.0.s8 %v2937
        %v2949 = vunpack.c.1.s8 %v2937
        %v2950 = vunpack.c.0.s8 %v2938
        %v2951 = vunpack.c.1.s8 %v2938
        %v2952 = vunpack.c.0.s8 %v2939
        %v2953 = vunpack.c.1.s8 %v2939
        %v2954 = vunpack.c.0.s8 %v2940
        %v2955 = vunpack.c.1.s8 %v2940
        %v2956 = vunpack.c.0.s8 %v2941
        %v2957 = vunpack.c.1.s8 %v2941
        %v2958 = vunpack.c.0.s8 %v2942
        %v2959 = vunpack.c.1.s8 %v2942
        %v2960 = vunpack.c.0.s8 %v2943
        %v2961 = vunpack.c.1.s8 %v2943
        %v2962 = vpack.c.b16 %v2946, %v2944
        %v2963 = vpack.c.b16 %v2950, %v2948
        %v2964 = vpack.c.b8 %v2963, %v2962
        %v2965 = vpack.c.b16 %v2947, %v2945
        %v2966 = vpack.c.b16 %v2951, %v2949
        %v2967 = vpack.c.b8 %v2966, %v2965
        %v2968 = vpack.c.b16 %v2954, %v2952
        %v2969 = vpack.c.b16 %v2958, %v2956
        %v2970 = vpack.c.b8 %v2969, %v2968
        %v2971 = vpack.c.b16 %v2955, %v2953
        %v2972 = vpack.c.b16 %v2959, %v2957
        %v2973 = vpack.c.b8 %v2972, %v2971
        %v2974 = vpack.c.b16 %v2960, %v2960
        %v2975 = vpack.c.b8 %v2974, %v2974
        %v2976 = vpack.c.b16 %v2961, %v2961
        %v2977 = vpack.c.b8 %v2976, %v2976
        %vm2978 = vsmask.f32 7680
        %v2980 = vshrl.u32 %v2964, 8
        %v2982 = vshll.u32 %v2964, 24
        %v2984 = vrot.slane %v2982, 1
        %v2985 = vor.u32 %v2980, %v2984
        %v2987 = vshll.u32 %v2970, 24
        %v2989 = vrot.slane %v2987, 1
        %v2990 = vsel %vm2978, %v2985, %v2989
        %v2992 = vshrl.u32 %v2967, 8
        %v2994 = vshll.u32 %v2967, 24
        %v2996 = vrot.slane %v2994, 1
        %v2997 = vor.u32 %v2992, %v2996
        %v2999 = vshll.u32 %v2973, 24
        %v3001 = vrot.slane %v2999, 1
        %v3002 = vsel %vm2978, %v2997, %v3001
        %v3003 = vshrl.u32 %v2970, 8
        %v3005 = vor.u32 %v3003, %v2989
        %v3007 = vshll.u32 %v2975, 24
        %v3009 = vrot.slane %v3007, 1
        %v3010 = vsel %vm2978, %v3005, %v3009
        %v3011 = vshrl.u32 %v2973, 8
        %v3013 = vor.u32 %v3011, %v3001
        %v3015 = vshll.u32 %v2977, 24
        %v3017 = vrot.slane %v3015, 1
        %v3018 = vsel %vm2978, %v3013, %v3017
        %vm3019 = vnez %v2990
        %vm3020 = vnez %v3002
        %vm3021 = vnez %v3010
        %vm3022 = vnez %v3018
        %v3023 = vsel %vm3019, 16843009, 0
        %v3024 = vsel %vm3020, 16843009, 0
        %v3025 = vsel %vm3021, 16843009, 0
        %v3026 = vsel %vm3022, 16843009, 0
        %3027 = vst [vmem:[%s167] sm:$0xff] %v3023
        %3028 = vst [vmem:[%s167 + $0x8] sm:$0xff] %v3024
        %3029 = vst [vmem:[%s167 + $0x10] sm:$0xff] %v3025
        %3030 = vst [vmem:[%s167 + $0x18] sm:$0xff] %v3026
        %v3049 = vrot.slane %v1572, 1
        %v3050 = vrot.slane %v1574, 1
        %v3051 = vsel %vm732, %v3049, %v3050
        %v3052 = vrot.slane %v1573, 1
        %v3053 = vrot.slane %v1575, 1
        %v3054 = vsel %vm732, %v3052, %v3053
        %v3055 = vrot.slane %v1576, 1
        %v3056 = vsel %vm732, %v3050, %v3055
        %v3057 = vrot.slane %v1577, 1
        %v3058 = vsel %vm732, %v3053, %v3057
        %v3059 = vrot.slane %v1578, 1
        %v3060 = vsel %vm732, %v3055, %v3059
        %v3061 = vrot.slane %v1579, 1
        %v3062 = vsel %vm732, %v3057, %v3061
        %v3063 = vrot.slane %v1580, 1
        %v3064 = vsel %vm732, %v3059, %v3063
        %v3065 = vrot.slane %v1581, 1
        %v3066 = vsel %vm732, %v3061, %v3065
        %v3067 = vrot.slane %v1582, 1
        %v3068 = vsel %vm732, %v3063, %v3067
        %v3069 = vrot.slane %v1583, 1
        %v3070 = vsel %vm732, %v3065, %v3069
        %v3071 = vrot.slane %v1584, 1
        %v3072 = vsel %vm732, %v3067, %v3071
        %v3073 = vrot.slane %v1585, 1
        %v3074 = vsel %vm732, %v3069, %v3073
        %v3075 = vrot.slane %v1586, 1
        %v3076 = vsel %vm732, %v3071, %v3075
        %v3077 = vrot.slane %v1587, 1
        %v3078 = vsel %vm732, %v3073, %v3077
        %v3079 = vrot.slane %v1588, 1
        %v3080 = vsel %vm732, %v3075, %v3079
        %v3081 = vrot.slane %v1589, 1
        %v3082 = vsel %vm732, %v3077, %v3081
        %3101 = vrot.lane.b32.xlu0 %v3051, 1
        %v3102 = vpop.permute.xlu0 %3101
        %3103 = vrot.lane.b32.xlu0 %v3056, 1
        %v3104 = vpop.permute.xlu0 %3103
        %3105 = vrot.lane.b32.xlu0 %v3060, 1
        %v3106 = vpop.permute.xlu0 %3105
        %3107 = vrot.lane.b32.xlu0 %v3064, 1
        %v3108 = vpop.permute.xlu0 %3107
        %3109 = vrot.lane.b32.xlu0 %v3068, 1
        %v3110 = vpop.permute.xlu0 %3109
        %3111 = vrot.lane.b32.xlu0 %v3072, 1
        %v3112 = vpop.permute.xlu0 %3111
        %3113 = vrot.lane.b32.xlu0 %v3076, 1
        %v3114 = vpop.permute.xlu0 %3113
        %3115 = vrot.lane.b32.xlu0 %v3080, 1
        %v3116 = vpop.permute.xlu0 %3115
        %3117 = vrot.lane.b32.xlu0 %v3079, 1
        %v3118 = vpop.permute.xlu0 %3117
        %3119 = vrot.lane.b32.xlu0 %v3054, 1
        %v3120 = vpop.permute.xlu0 %3119
        %3121 = vrot.lane.b32.xlu0 %v3058, 1
        %v3122 = vpop.permute.xlu0 %3121
        %3123 = vrot.lane.b32.xlu0 %v3062, 1
        %v3124 = vpop.permute.xlu0 %3123
        %3125 = vrot.lane.b32.xlu0 %v3066, 1
        %v3126 = vpop.permute.xlu0 %3125
        %3127 = vrot.lane.b32.xlu0 %v3070, 1
        %v3128 = vpop.permute.xlu0 %3127
        %3129 = vrot.lane.b32.xlu0 %v3074, 1
        %v3130 = vpop.permute.xlu0 %3129
        %3131 = vrot.lane.b32.xlu0 %v3078, 1
        %v3132 = vpop.permute.xlu0 %3131
        %3133 = vrot.lane.b32.xlu0 %v3082, 1
        %v3134 = vpop.permute.xlu0 %3133
        %3135 = vrot.lane.b32.xlu0 %v3081, 1
        %v3136 = vpop.permute.xlu0 %3135
        %v3137 = vsel %vm506, %v3102, %v3120
        %v3138 = vsel %vm506, %v3104, %v3122
        %v3139 = vsel %vm506, %v3106, %v3124
        %v3140 = vsel %vm506, %v3108, %v3126
        %v3141 = vsel %vm506, %v3110, %v3128
        %v3142 = vsel %vm506, %v3112, %v3130
        %v3143 = vsel %vm506, %v3114, %v3132
        %v3144 = vsel %vm506, %v3116, %v3134
        %v3145 = vsel %vm506, %v3118, %v3136
        %v3146 = vsel %vm506, %v3120, %v3102
        %v3147 = vsel %vm506, %v3122, %v3104
        %v3148 = vsel %vm506, %v3124, %v3106
        %v3149 = vsel %vm506, %v3126, %v3108
        %v3150 = vsel %vm506, %v3128, %v3110
        %v3151 = vsel %vm506, %v3130, %v3112
        %v3152 = vsel %vm506, %v3132, %v3114
        %v3153 = vsel %vm506, %v3134, %v3116
        %v3154 = vsel %vm506, %v3136, %v3118
        %v3155 = vsel %vm527, %v3146, 0.0
        %v3156 = vsel %vm528, %v3137, 0.0
        %v3157 = vsel %vm527, %v3147, 0.0
        %v3158 = vsel %vm528, %v3138, 0.0
        %v3159 = vsel %vm527, %v3148, 0.0
        %v3160 = vsel %vm528, %v3139, 0.0
        %v3161 = vsel %vm527, %v3149, 0.0
        %v3162 = vsel %vm528, %v3140, 0.0
        %v3163 = vsel %vm527, %v3150, 0.0
        %v3164 = vsel %vm528, %v3141, 0.0
        %v3165 = vsel %vm527, %v3151, 0.0
        %v3166 = vsel %vm528, %v3142, 0.0
        %v3167 = vsel %vm527, %v3152, 0.0
        %v3168 = vsel %vm528, %v3143, 0.0
        %v3169 = vsel %vm527, %v3153, 0.0
        %v3170 = vsel %vm528, %v3144, 0.0
        %v3171 = vsel %vm527, %v3154, 0.0
        %v3172 = vsel %vm528, %v3145, 0.0
        %3173 = vrot.lane.b32.xlu0 %v3051, 127
        %v3174 = vpop.permute.xlu0 %3173
        %3175 = vrot.lane.b32.xlu0 %v3056, 127
        %v3176 = vpop.permute.xlu0 %3175
        %3177 = vrot.lane.b32.xlu0 %v3060, 127
        %v3178 = vpop.permute.xlu0 %3177
        %3179 = vrot.lane.b32.xlu0 %v3064, 127
        %v3180 = vpop.permute.xlu0 %3179
        %3181 = vrot.lane.b32.xlu0 %v3068, 127
        %v3182 = vpop.permute.xlu0 %3181
        %3183 = vrot.lane.b32.xlu0 %v3072, 127
        %v3184 = vpop.permute.xlu0 %3183
        %3185 = vrot.lane.b32.xlu0 %v3076, 127
        %v3186 = vpop.permute.xlu0 %3185
        %3187 = vrot.lane.b32.xlu0 %v3080, 127
        %v3188 = vpop.permute.xlu0 %3187
        %3189 = vrot.lane.b32.xlu0 %v3079, 127
        %v3190 = vpop.permute.xlu0 %3189
        %3191 = vrot.lane.b32.xlu0 %v3054, 127
        %v3192 = vpop.permute.xlu0 %3191
        %3193 = vrot.lane.b32.xlu0 %v3058, 127
        %v3194 = vpop.permute.xlu0 %3193
        %3195 = vrot.lane.b32.xlu0 %v3062, 127
        %v3196 = vpop.permute.xlu0 %3195
        %3197 = vrot.lane.b32.xlu0 %v3066, 127
        %v3198 = vpop.permute.xlu0 %3197
        %3199 = vrot.lane.b32.xlu0 %v3070, 127
        %v3200 = vpop.permute.xlu0 %3199
        %3201 = vrot.lane.b32.xlu0 %v3074, 127
        %v3202 = vpop.permute.xlu0 %3201
        %3203 = vrot.lane.b32.xlu0 %v3078, 127
        %v3204 = vpop.permute.xlu0 %3203
        %3205 = vrot.lane.b32.xlu0 %v3082, 127
        %v3206 = vpop.permute.xlu0 %3205
        %3207 = vrot.lane.b32.xlu0 %v3081, 127
        %v3208 = vpop.permute.xlu0 %3207
        %v3209 = vsel %vm583, %v3174, %v3192
        %v3210 = vsel %vm583, %v3176, %v3194
        %v3211 = vsel %vm583, %v3178, %v3196
        %v3212 = vsel %vm583, %v3180, %v3198
        %v3213 = vsel %vm583, %v3182, %v3200
        %v3214 = vsel %vm583, %v3184, %v3202
        %v3215 = vsel %vm583, %v3186, %v3204
        %v3216 = vsel %vm583, %v3188, %v3206
        %v3217 = vsel %vm583, %v3190, %v3208
        %v3218 = vsel %vm583, %v3192, %v3174
        %v3219 = vsel %vm583, %v3194, %v3176
        %v3220 = vsel %vm583, %v3196, %v3178
        %v3221 = vsel %vm583, %v3198, %v3180
        %v3222 = vsel %vm583, %v3200, %v3182
        %v3223 = vsel %vm583, %v3202, %v3184
        %v3224 = vsel %vm583, %v3204, %v3186
        %v3225 = vsel %vm583, %v3206, %v3188
        %v3226 = vsel %vm583, %v3208, %v3190
        %v3227 = vsel %vm604, %v3209, 0.0
        %v3228 = vsel %vm605, %v3218, 0.0
        %v3229 = vsel %vm604, %v3210, 0.0
        %v3230 = vsel %vm605, %v3219, 0.0
        %v3231 = vsel %vm604, %v3211, 0.0
        %v3232 = vsel %vm605, %v3220, 0.0
        %v3233 = vsel %vm604, %v3212, 0.0
        %v3234 = vsel %vm605, %v3221, 0.0
        %v3235 = vsel %vm604, %v3213, 0.0
        %v3236 = vsel %vm605, %v3222, 0.0
        %v3237 = vsel %vm604, %v3214, 0.0
        %v3238 = vsel %vm605, %v3223, 0.0
        %v3239 = vsel %vm604, %v3215, 0.0
        %v3240 = vsel %vm605, %v3224, 0.0
        %v3241 = vsel %vm604, %v3216, 0.0
        %v3242 = vsel %vm605, %v3225, 0.0
        %v3243 = vsel %vm604, %v3217, 0.0
        %v3244 = vsel %vm605, %v3226, 0.0
        %v3245 = vmax.f32 %v3155, %v3227
        %v3246 = vmax.f32 %v3156, %v3228
        %v3247 = vmax.f32 %v3157, %v3229
        %v3248 = vmax.f32 %v3158, %v3230
        %v3249 = vmax.f32 %v3159, %v3231
        %v3250 = vmax.f32 %v3160, %v3232
        %v3251 = vmax.f32 %v3161, %v3233
        %v3252 = vmax.f32 %v3162, %v3234
        %v3253 = vmax.f32 %v3163, %v3235
        %v3254 = vmax.f32 %v3164, %v3236
        %v3255 = vmax.f32 %v3165, %v3237
        %v3256 = vmax.f32 %v3166, %v3238
        %v3257 = vmax.f32 %v3167, %v3239
        %v3258 = vmax.f32 %v3168, %v3240
        %v3259 = vmax.f32 %v3169, %v3241
        %v3260 = vmax.f32 %v3170, %v3242
        %v3261 = vmax.f32 %v3171, %v3243
        %v3262 = vmax.f32 %v3172, %v3244
        %v3281 = vrot.slane %v3245, 7
        %v3282 = vrot.slane %v3246, 7
        %v3283 = vrot.slane %v3247, 7
        %v3284 = vsel %vm1465, %v3281, %v3283
        %v3285 = vrot.slane %v3248, 7
        %v3286 = vsel %vm1465, %v3282, %v3285
        %v3287 = vrot.slane %v3249, 7
        %v3288 = vsel %vm1465, %v3283, %v3287
        %v3289 = vrot.slane %v3250, 7
        %v3290 = vsel %vm1465, %v3285, %v3289
        %v3291 = vrot.slane %v3251, 7
        %v3292 = vsel %vm1465, %v3287, %v3291
        %v3293 = vrot.slane %v3252, 7
        %v3294 = vsel %vm1465, %v3289, %v3293
        %v3295 = vrot.slane %v3253, 7
        %v3296 = vsel %vm1465, %v3291, %v3295
        %v3297 = vrot.slane %v3254, 7
        %v3298 = vsel %vm1465, %v3293, %v3297
        %v3299 = vrot.slane %v3255, 7
        %v3300 = vsel %vm1465, %v3295, %v3299
        %v3301 = vrot.slane %v3256, 7
        %v3302 = vsel %vm1465, %v3297, %v3301
        %v3303 = vrot.slane %v3257, 7
        %v3304 = vsel %vm1465, %v3299, %v3303
        %v3305 = vrot.slane %v3258, 7
        %v3306 = vsel %vm1465, %v3301, %v3305
        %v3307 = vrot.slane %v3259, 7
        %v3308 = vsel %vm1465, %v3303, %v3307
        %v3309 = vrot.slane %v3260, 7
        %v3310 = vsel %vm1465, %v3305, %v3309
        %v3311 = vrot.slane %v3261, 7
        %v3312 = vsel %vm1465, %v3307, %v3311
        %v3313 = vrot.slane %v3262, 7
        %v3314 = vsel %vm1465, %v3309, %v3313
        %v3333 = vmax.f32 %v1572, %v3281
        %v3334 = vmax.f32 %v1573, %v3282
        %v3335 = vmax.f32 %v1574, %v3284
        %v3336 = vmax.f32 %v1575, %v3286
        %v3337 = vmax.f32 %v1576, %v3288
        %v3338 = vmax.f32 %v1577, %v3290
        %v3339 = vmax.f32 %v1578, %v3292
        %v3340 = vmax.f32 %v1579, %v3294
        %v3341 = vmax.f32 %v1580, %v3296
        %v3342 = vmax.f32 %v1581, %v3298
        %v3343 = vmax.f32 %v1582, %v3300
        %v3344 = vmax.f32 %v1583, %v3302
        %v3345 = vmax.f32 %v1584, %v3304
        %v3346 = vmax.f32 %v1585, %v3306
        %v3347 = vmax.f32 %v1586, %v3308
        %v3348 = vmax.f32 %v1587, %v3310
        %v3349 = vmax.f32 %v1588, %v3312
        %v3350 = vmax.f32 %v1589, %v3314
        %3351 = vrot.lane.b32.xlu0 %v3051, 2
        %v3352 = vpop.permute.xlu0 %3351
        %3353 = vrot.lane.b32.xlu0 %v3056, 2
        %v3354 = vpop.permute.xlu0 %3353
        %3355 = vrot.lane.b32.xlu0 %v3060, 2
        %v3356 = vpop.permute.xlu0 %3355
        %3357 = vrot.lane.b32.xlu0 %v3064, 2
        %v3358 = vpop.permute.xlu0 %3357
        %3359 = vrot.lane.b32.xlu0 %v3068, 2
        %v3360 = vpop.permute.xlu0 %3359
        %3361 = vrot.lane.b32.xlu0 %v3072, 2
        %v3362 = vpop.permute.xlu0 %3361
        %3363 = vrot.lane.b32.xlu0 %v3076, 2
        %v3364 = vpop.permute.xlu0 %3363
        %3365 = vrot.lane.b32.xlu0 %v3080, 2
        %v3366 = vpop.permute.xlu0 %3365
        %3367 = vrot.lane.b32.xlu0 %v3079, 2
        %v3368 = vpop.permute.xlu0 %3367
        %3369 = vrot.lane.b32.xlu0 %v3054, 2
        %v3370 = vpop.permute.xlu0 %3369
        %3371 = vrot.lane.b32.xlu0 %v3058, 2
        %v3372 = vpop.permute.xlu0 %3371
        %3373 = vrot.lane.b32.xlu0 %v3062, 2
        %v3374 = vpop.permute.xlu0 %3373
        %3375 = vrot.lane.b32.xlu0 %v3066, 2
        %v3376 = vpop.permute.xlu0 %3375
        %3377 = vrot.lane.b32.xlu0 %v3070, 2
        %v3378 = vpop.permute.xlu0 %3377
        %3379 = vrot.lane.b32.xlu0 %v3074, 2
        %v3380 = vpop.permute.xlu0 %3379
        %3381 = vrot.lane.b32.xlu0 %v3078, 2
        %v3382 = vpop.permute.xlu0 %3381
        %3383 = vrot.lane.b32.xlu0 %v3082, 2
        %v3384 = vpop.permute.xlu0 %3383
        %3385 = vrot.lane.b32.xlu0 %v3081, 2
        %v3386 = vpop.permute.xlu0 %3385
        %v3387 = vsel %vm2429, %v3352, %v3370
        %v3388 = vsel %vm2429, %v3354, %v3372
        %v3389 = vsel %vm2429, %v3356, %v3374
        %v3390 = vsel %vm2429, %v3358, %v3376
        %v3391 = vsel %vm2429, %v3360, %v3378
        %v3392 = vsel %vm2429, %v3362, %v3380
        %v3393 = vsel %vm2429, %v3364, %v3382
        %v3394 = vsel %vm2429, %v3366, %v3384
        %v3395 = vsel %vm2429, %v3368, %v3386
        %v3396 = vsel %vm2429, %v3370, %v3352
        %v3397 = vsel %vm2429, %v3372, %v3354
        %v3398 = vsel %vm2429, %v3374, %v3356
        %v3399 = vsel %vm2429, %v3376, %v3358
        %v3400 = vsel %vm2429, %v3378, %v3360
        %v3401 = vsel %vm2429, %v3380, %v3362
        %v3402 = vsel %vm2429, %v3382, %v3364
        %v3403 = vsel %vm2429, %v3384, %v3366
        %v3404 = vsel %vm2429, %v3386, %v3368
        %v3405 = vsel %vm2450, %v3396, 0.0
        %v3406 = vsel %vm2451, %v3387, 0.0
        %v3407 = vsel %vm2450, %v3397, 0.0
        %v3408 = vsel %vm2451, %v3388, 0.0
        %v3409 = vsel %vm2450, %v3398, 0.0
        %v3410 = vsel %vm2451, %v3389, 0.0
        %v3411 = vsel %vm2450, %v3399, 0.0
        %v3412 = vsel %vm2451, %v3390, 0.0
        %v3413 = vsel %vm2450, %v3400, 0.0
        %v3414 = vsel %vm2451, %v3391, 0.0
        %v3415 = vsel %vm2450, %v3401, 0.0
        %v3416 = vsel %vm2451, %v3392, 0.0
        %v3417 = vsel %vm2450, %v3402, 0.0
        %v3418 = vsel %vm2451, %v3393, 0.0
        %v3419 = vsel %vm2450, %v3403, 0.0
        %v3420 = vsel %vm2451, %v3394, 0.0
        %v3421 = vsel %vm2450, %v3404, 0.0
        %v3422 = vsel %vm2451, %v3395, 0.0
        %3423 = vrot.lane.b32.xlu0 %v3051, 126
        %v3424 = vpop.permute.xlu0 %3423
        %3425 = vrot.lane.b32.xlu0 %v3056, 126
        %v3426 = vpop.permute.xlu0 %3425
        %3427 = vrot.lane.b32.xlu0 %v3060, 126
        %v3428 = vpop.permute.xlu0 %3427
        %3429 = vrot.lane.b32.xlu0 %v3064, 126
        %v3430 = vpop.permute.xlu0 %3429
        %3431 = vrot.lane.b32.xlu0 %v3068, 126
        %v3432 = vpop.permute.xlu0 %3431
        %3433 = vrot.lane.b32.xlu0 %v3072, 126
        %v3434 = vpop.permute.xlu0 %3433
        %3435 = vrot.lane.b32.xlu0 %v3076, 126
        %v3436 = vpop.permute.xlu0 %3435
        %3437 = vrot.lane.b32.xlu0 %v3080, 126
        %v3438 = vpop.permute.xlu0 %3437
        %3439 = vrot.lane.b32.xlu0 %v3079, 126
        %v3440 = vpop.permute.xlu0 %3439
        %3441 = vrot.lane.b32.xlu0 %v3054, 126
        %v3442 = vpop.permute.xlu0 %3441
        %3443 = vrot.lane.b32.xlu0 %v3058, 126
        %v3444 = vpop.permute.xlu0 %3443
        %3445 = vrot.lane.b32.xlu0 %v3062, 126
        %v3446 = vpop.permute.xlu0 %3445
        %3447 = vrot.lane.b32.xlu0 %v3066, 126
        %v3448 = vpop.permute.xlu0 %3447
        %3449 = vrot.lane.b32.xlu0 %v3070, 126
        %v3450 = vpop.permute.xlu0 %3449
        %3451 = vrot.lane.b32.xlu0 %v3074, 126
        %v3452 = vpop.permute.xlu0 %3451
        %3453 = vrot.lane.b32.xlu0 %v3078, 126
        %v3454 = vpop.permute.xlu0 %3453
        %3455 = vrot.lane.b32.xlu0 %v3082, 126
        %v3456 = vpop.permute.xlu0 %3455
        %3457 = vrot.lane.b32.xlu0 %v3081, 126
        %v3458 = vpop.permute.xlu0 %3457
        %v3459 = vsel %vm2506, %v3424, %v3442
        %v3460 = vsel %vm2506, %v3426, %v3444
        %v3461 = vsel %vm2506, %v3428, %v3446
        %v3462 = vsel %vm2506, %v3430, %v3448
        %v3463 = vsel %vm2506, %v3432, %v3450
        %v3464 = vsel %vm2506, %v3434, %v3452
        %v3465 = vsel %vm2506, %v3436, %v3454
        %v3466 = vsel %vm2506, %v3438, %v3456
        %v3467 = vsel %vm2506, %v3440, %v3458
        %v3468 = vsel %vm2506, %v3442, %v3424
        %v3469 = vsel %vm2506, %v3444, %v3426
        %v3470 = vsel %vm2506, %v3446, %v3428
        %v3471 = vsel %vm2506, %v3448, %v3430
        %v3472 = vsel %vm2506, %v3450, %v3432
        %v3473 = vsel %vm2506, %v3452, %v3434
        %v3474 = vsel %vm2506, %v3454, %v3436
        %v3475 = vsel %vm2506, %v3456, %v3438
        %v3476 = vsel %vm2506, %v3458, %v3440
        %v3477 = vsel %vm2527, %v3459, 0.0
        %v3478 = vsel %vm2528, %v3468, 0.0
        %v3479 = vsel %vm2527, %v3460, 0.0
        %v3480 = vsel %vm2528, %v3469, 0.0
        %v3481 = vsel %vm2527, %v3461, 0.0
        %v3482 = vsel %vm2528, %v3470, 0.0
        %v3483 = vsel %vm2527, %v3462, 0.0
        %v3484 = vsel %vm2528, %v3471, 0.0
        %v3485 = vsel %vm2527, %v3463, 0.0
        %v3486 = vsel %vm2528, %v3472, 0.0
        %v3487 = vsel %vm2527, %v3464, 0.0
        %v3488 = vsel %vm2528, %v3473, 0.0
        %v3489 = vsel %vm2527, %v3465, 0.0
        %v3490 = vsel %vm2528, %v3474, 0.0
        %v3491 = vsel %vm2527, %v3466, 0.0
        %v3492 = vsel %vm2528, %v3475, 0.0
        %v3493 = vsel %vm2527, %v3467, 0.0
        %v3494 = vsel %vm2528, %v3476, 0.0
        %v3495 = vmax.f32 %v3405, %v3477
        %v3496 = vmax.f32 %v3406, %v3478
        %v3497 = vmax.f32 %v3407, %v3479
        %v3498 = vmax.f32 %v3408, %v3480
        %v3499 = vmax.f32 %v3409, %v3481
        %v3500 = vmax.f32 %v3410, %v3482
        %v3501 = vmax.f32 %v3411, %v3483
        %v3502 = vmax.f32 %v3412, %v3484
        %v3503 = vmax.f32 %v3413, %v3485
        %v3504 = vmax.f32 %v3414, %v3486
        %v3505 = vmax.f32 %v3415, %v3487
        %v3506 = vmax.f32 %v3416, %v3488
        %v3507 = vmax.f32 %v3417, %v3489
        %v3508 = vmax.f32 %v3418, %v3490
        %v3509 = vmax.f32 %v3419, %v3491
        %v3510 = vmax.f32 %v3420, %v3492
        %v3511 = vmax.f32 %v3421, %v3493
        %v3512 = vmax.f32 %v3422, %v3494
        %v3531 = vrot.slane %v3495, 7
        %v3532 = vrot.slane %v3496, 7
        %v3533 = vrot.slane %v3497, 7
        %v3534 = vsel %vm1465, %v3531, %v3533
        %v3535 = vrot.slane %v3498, 7
        %v3536 = vsel %vm1465, %v3532, %v3535
        %v3537 = vrot.slane %v3499, 7
        %v3538 = vsel %vm1465, %v3533, %v3537
        %v3539 = vrot.slane %v3500, 7
        %v3540 = vsel %vm1465, %v3535, %v3539
        %v3541 = vrot.slane %v3501, 7
        %v3542 = vsel %vm1465, %v3537, %v3541
        %v3543 = vrot.slane %v3502, 7
        %v3544 = vsel %vm1465, %v3539, %v3543
        %v3545 = vrot.slane %v3503, 7
        %v3546 = vsel %vm1465, %v3541, %v3545
        %v3547 = vrot.slane %v3504, 7
        %v3548 = vsel %vm1465, %v3543, %v3547
        %v3549 = vrot.slane %v3505, 7
        %v3550 = vsel %vm1465, %v3545, %v3549
        %v3551 = vrot.slane %v3506, 7
        %v3552 = vsel %vm1465, %v3547, %v3551
        %v3553 = vrot.slane %v3507, 7
        %v3554 = vsel %vm1465, %v3549, %v3553
        %v3555 = vrot.slane %v3508, 7
        %v3556 = vsel %vm1465, %v3551, %v3555
        %v3557 = vrot.slane %v3509, 7
        %v3558 = vsel %vm1465, %v3553, %v3557
        %v3559 = vrot.slane %v3510, 7
        %v3560 = vsel %vm1465, %v3555, %v3559
        %v3561 = vrot.slane %v3511, 7
        %v3562 = vsel %vm1465, %v3557, %v3561
        %v3563 = vrot.slane %v3512, 7
        %v3564 = vsel %vm1465, %v3559, %v3563
        %v3583 = vmax.f32 %v3333, %v3531
        %v3584 = vmax.f32 %v3334, %v3532
        %v3585 = vmax.f32 %v3335, %v3534
        %v3586 = vmax.f32 %v3336, %v3536
        %v3587 = vmax.f32 %v3337, %v3538
        %v3588 = vmax.f32 %v3338, %v3540
        %v3589 = vmax.f32 %v3339, %v3542
        %v3590 = vmax.f32 %v3340, %v3544
        %v3591 = vmax.f32 %v3341, %v3546
        %v3592 = vmax.f32 %v3342, %v3548
        %v3593 = vmax.f32 %v3343, %v3550
        %v3594 = vmax.f32 %v3344, %v3552
        %v3595 = vmax.f32 %v3345, %v3554
        %v3596 = vmax.f32 %v3346, %v3556
        %v3597 = vmax.f32 %v3347, %v3558
        %v3598 = vmax.f32 %v3348, %v3560
        %v3599 = vmax.f32 %v3349, %v3562
        %v3600 = vmax.f32 %v3350, %v3564
        %v3619 = vrot.slane %v3583, 1
        %v3620 = vrot.slane %v3585, 1
        %v3621 = vsel %vm732, %v3619, %v3620
        %v3622 = vrot.slane %v3584, 1
        %v3623 = vrot.slane %v3586, 1
        %v3624 = vsel %vm732, %v3622, %v3623
        %v3625 = vrot.slane %v3587, 1
        %v3626 = vsel %vm732, %v3620, %v3625
        %v3627 = vrot.slane %v3588, 1
        %v3628 = vsel %vm732, %v3623, %v3627
        %v3629 = vrot.slane %v3589, 1
        %v3630 = vsel %vm732, %v3625, %v3629
        %v3631 = vrot.slane %v3590, 1
        %v3632 = vsel %vm732, %v3627, %v3631
        %v3633 = vrot.slane %v3591, 1
        %v3634 = vsel %vm732, %v3629, %v3633
        %v3635 = vrot.slane %v3592, 1
        %v3636 = vsel %vm732, %v3631, %v3635
        %v3637 = vrot.slane %v3593, 1
        %v3638 = vsel %vm732, %v3633, %v3637
        %v3639 = vrot.slane %v3594, 1
        %v3640 = vsel %vm732, %v3635, %v3639
        %v3641 = vrot.slane %v3595, 1
        %v3642 = vsel %vm732, %v3637, %v3641
        %v3643 = vrot.slane %v3596, 1
        %v3644 = vsel %vm732, %v3639, %v3643
        %v3645 = vrot.slane %v3597, 1
        %v3646 = vsel %vm732, %v3641, %v3645
        %v3647 = vrot.slane %v3598, 1
        %v3648 = vsel %vm732, %v3643, %v3647
        %v3649 = vrot.slane %v3599, 1
        %v3650 = vsel %vm732, %v3645, %v3649
        %v3651 = vrot.slane %v3600, 1
        %v3652 = vsel %vm732, %v3647, %v3651
        %v3671 = vmax.f32 %v3583, %v3621
        %v3672 = vmax.f32 %v3584, %v3624
        %v3673 = vmax.f32 %v3585, %v3626
        %v3674 = vmax.f32 %v3586, %v3628
        %v3675 = vmax.f32 %v3587, %v3630
        %v3676 = vmax.f32 %v3588, %v3632
        %v3677 = vmax.f32 %v3589, %v3634
        %v3678 = vmax.f32 %v3590, %v3636
        %v3679 = vmax.f32 %v3591, %v3638
        %v3680 = vmax.f32 %v3592, %v3640
        %v3681 = vmax.f32 %v3593, %v3642
        %v3682 = vmax.f32 %v3594, %v3644
        %v3683 = vmax.f32 %v3595, %v3646
        %v3684 = vmax.f32 %v3596, %v3648
        %v3685 = vmax.f32 %v3597, %v3650
        %v3686 = vmax.f32 %v3598, %v3652
        %v3687 = vmax.f32 %v3599, %v3649
        %v3688 = vmax.f32 %v3600, %v3651
        %v3689 = vrot.slane %v3583, 2
        %v3690 = vrot.slane %v3585, 2
        %v3691 = vsel %vm821, %v3689, %v3690
        %v3692 = vrot.slane %v3584, 2
        %v3693 = vrot.slane %v3586, 2
        %v3694 = vsel %vm821, %v3692, %v3693
        %v3695 = vrot.slane %v3587, 2
        %v3696 = vsel %vm821, %v3690, %v3695
        %v3697 = vrot.slane %v3588, 2
        %v3698 = vsel %vm821, %v3693, %v3697
        %v3699 = vrot.slane %v3589, 2
        %v3700 = vsel %vm821, %v3695, %v3699
        %v3701 = vrot.slane %v3590, 2
        %v3702 = vsel %vm821, %v3697, %v3701
        %v3703 = vrot.slane %v3591, 2
        %v3704 = vsel %vm821, %v3699, %v3703
        %v3705 = vrot.slane %v3592, 2
        %v3706 = vsel %vm821, %v3701, %v3705
        %v3707 = vrot.slane %v3593, 2
        %v3708 = vsel %vm821, %v3703, %v3707
        %v3709 = vrot.slane %v3594, 2
        %v3710 = vsel %vm821, %v3705, %v3709
        %v3711 = vrot.slane %v3595, 2
        %v3712 = vsel %vm821, %v3707, %v3711
        %v3713 = vrot.slane %v3596, 2
        %v3714 = vsel %vm821, %v3709, %v3713
        %v3715 = vrot.slane %v3597, 2
        %v3716 = vsel %vm821, %v3711, %v3715
        %v3717 = vrot.slane %v3598, 2
        %v3718 = vsel %vm821, %v3713, %v3717
        %v3719 = vrot.slane %v3599, 2
        %v3720 = vsel %vm821, %v3715, %v3719
        %v3721 = vrot.slane %v3600, 2
        %v3722 = vsel %vm821, %v3717, %v3721
        %v3741 = vmax.f32 %v3671, %v3691
        %v3742 = vmax.f32 %v3672, %v3694
        %v3743 = vmax.f32 %v3673, %v3696
        %v3744 = vmax.f32 %v3674, %v3698
        %v3745 = vmax.f32 %v3675, %v3700
        %v3746 = vmax.f32 %v3676, %v3702
        %v3747 = vmax.f32 %v3677, %v3704
        %v3748 = vmax.f32 %v3678, %v3706
        %v3749 = vmax.f32 %v3679, %v3708
        %v3750 = vmax.f32 %v3680, %v3710
        %v3751 = vmax.f32 %v3681, %v3712
        %v3752 = vmax.f32 %v3682, %v3714
        %v3753 = vmax.f32 %v3683, %v3716
        %v3754 = vmax.f32 %v3684, %v3718
        %v3755 = vmax.f32 %v3685, %v3720
        %v3756 = vmax.f32 %v3686, %v3722
        %v3757 = vmax.f32 %v3687, %v3719
        %v3758 = vmax.f32 %v3688, %v3721
        %v3777 = vrot.slane %v3741, 2
        %v3778 = vrot.slane %v3743, 2
        %v3779 = vsel %vm821, %v3777, %v3778
        %v3780 = vrot.slane %v3742, 2
        %v3781 = vrot.slane %v3744, 2
        %v3782 = vsel %vm821, %v3780, %v3781
        %v3783 = vrot.slane %v3745, 2
        %v3784 = vsel %vm821, %v3778, %v3783
        %v3785 = vrot.slane %v3746, 2
        %v3786 = vsel %vm821, %v3781, %v3785
        %v3787 = vrot.slane %v3747, 2
        %v3788 = vsel %vm821, %v3783, %v3787
        %v3789 = vrot.slane %v3748, 2
        %v3790 = vsel %vm821, %v3785, %v3789
        %v3791 = vrot.slane %v3749, 2
        %v3792 = vsel %vm821, %v3787, %v3791
        %v3793 = vrot.slane %v3750, 2
        %v3794 = vsel %vm821, %v3789, %v3793
        %v3795 = vrot.slane %v3751, 2
        %v3796 = vsel %vm821, %v3791, %v3795
        %v3797 = vrot.slane %v3752, 2
        %v3798 = vsel %vm821, %v3793, %v3797
        %v3799 = vrot.slane %v3753, 2
        %v3800 = vsel %vm821, %v3795, %v3799
        %v3801 = vrot.slane %v3754, 2
        %v3802 = vsel %vm821, %v3797, %v3801
        %v3803 = vrot.slane %v3755, 2
        %v3804 = vsel %vm821, %v3799, %v3803
        %v3805 = vrot.slane %v3756, 2
        %v3806 = vsel %vm821, %v3801, %v3805
        %v3807 = vrot.slane %v3757, 2
        %v3808 = vsel %vm821, %v3803, %v3807
        %v3809 = vrot.slane %v3758, 2
        %v3810 = vsel %vm821, %v3805, %v3809
        %v3829 = vmax.f32 %v3671, %v3779
        %v3830 = vmax.f32 %v3672, %v3782
        %v3831 = vmax.f32 %v3673, %v3784
        %v3832 = vmax.f32 %v3674, %v3786
        %v3833 = vmax.f32 %v3675, %v3788
        %v3834 = vmax.f32 %v3676, %v3790
        %v3835 = vmax.f32 %v3677, %v3792
        %v3836 = vmax.f32 %v3678, %v3794
        %v3837 = vmax.f32 %v3679, %v3796
        %v3838 = vmax.f32 %v3680, %v3798
        %v3839 = vmax.f32 %v3681, %v3800
        %v3840 = vmax.f32 %v3682, %v3802
        %v3841 = vmax.f32 %v3683, %v3804
        %v3842 = vmax.f32 %v3684, %v3806
        %v3843 = vmax.f32 %v3685, %v3808
        %v3844 = vmax.f32 %v3686, %v3810
        %v3845 = vmax.f32 %v3687, %v3807
        %v3846 = vmax.f32 %v3688, %v3809
        %vm3847 = vcmp.eq.f32.partialorder %v3829, 0.0
        %vm3848 = vcmp.eq.f32.partialorder %v3830, 0.0
        %vm3849 = vcmp.eq.f32.partialorder %v3831, 0.0
        %vm3850 = vcmp.eq.f32.partialorder %v3832, 0.0
        %vm3851 = vcmp.eq.f32.partialorder %v3833, 0.0
        %vm3852 = vcmp.eq.f32.partialorder %v3834, 0.0
        %vm3853 = vcmp.eq.f32.partialorder %v3835, 0.0
        %vm3854 = vcmp.eq.f32.partialorder %v3836, 0.0
        %vm3855 = vcmp.eq.f32.partialorder %v3837, 0.0
        %vm3856 = vcmp.eq.f32.partialorder %v3838, 0.0
        %vm3857 = vcmp.eq.f32.partialorder %v3839, 0.0
        %vm3858 = vcmp.eq.f32.partialorder %v3840, 0.0
        %vm3859 = vcmp.eq.f32.partialorder %v3841, 0.0
        %vm3860 = vcmp.eq.f32.partialorder %v3842, 0.0
        %vm3861 = vcmp.eq.f32.partialorder %v3843, 0.0
        %vm3862 = vcmp.eq.f32.partialorder %v3844, 0.0
        %vm3863 = vcmp.eq.f32.partialorder %v3845, 0.0
        %vm3864 = vcmp.eq.f32.partialorder %v3846, 0.0
        %vm3865 = vmpackc.low %vm3848, %vm3847
        %vm3866 = vmpackc.even %vm3865, %vm3865
        %vm3867 = vmpackc.low %vm3850, %vm3849
        %vm3868 = vmpackc.even %vm3867, %vm3867
        %vm3869 = vmpackc.low %vm3852, %vm3851
        %vm3870 = vmpackc.even %vm3869, %vm3869
        %vm3871 = vmpackc.low %vm3854, %vm3853
        %vm3872 = vmpackc.even %vm3871, %vm3871
        %vm3873 = vmpackc.low %vm3856, %vm3855
        %vm3874 = vmpackc.even %vm3873, %vm3873
        %vm3875 = vmpackc.low %vm3858, %vm3857
        %vm3876 = vmpackc.even %vm3875, %vm3875
        %vm3877 = vmpackc.low %vm3860, %vm3859
        %vm3878 = vmpackc.even %vm3877, %vm3877
        %vm3879 = vmpackc.low %vm3862, %vm3861
        %vm3880 = vmpackc.even %vm3879, %vm3879
        %vm3881 = vmpackc.low %vm3864, %vm3863
        %vm3882 = vmpackc.even %vm3881, %vm3881
        %v3883 = vsel %vm3866, 16843009, 0
        %v3884 = vsel %vm3868, 16843009, 0
        %v3885 = vsel %vm3870, 16843009, 0
        %v3886 = vsel %vm3872, 16843009, 0
        %v3887 = vsel %vm3874, 16843009, 0
        %v3888 = vsel %vm3876, 16843009, 0
        %v3889 = vsel %vm3878, 16843009, 0
        %v3890 = vsel %vm3880, 16843009, 0
        %v3891 = vsel %vm3882, 16843009, 0
        %v3892 = vunpack.c.0.s8 %v3883
        %v3893 = vunpack.c.1.s8 %v3883
        %v3894 = vunpack.c.0.s8 %v3884
        %v3895 = vunpack.c.1.s8 %v3884
        %v3896 = vunpack.c.0.s8 %v3885
        %v3897 = vunpack.c.1.s8 %v3885
        %v3898 = vunpack.c.0.s8 %v3886
        %v3899 = vunpack.c.1.s8 %v3886
        %v3900 = vunpack.c.0.s8 %v3887
        %v3901 = vunpack.c.1.s8 %v3887
        %v3902 = vunpack.c.0.s8 %v3888
        %v3903 = vunpack.c.1.s8 %v3888
        %v3904 = vunpack.c.0.s8 %v3889
        %v3905 = vunpack.c.1.s8 %v3889
        %v3906 = vunpack.c.0.s8 %v3890
        %v3907 = vunpack.c.1.s8 %v3890
        %v3908 = vunpack.c.0.s8 %v3891
        %v3909 = vunpack.c.1.s8 %v3891
        %v3910 = vpack.c.b16 %v3894, %v3892
        %v3911 = vpack.c.b16 %v3898, %v3896
        %v3912 = vpack.c.b8 %v3911, %v3910
        %v3913 = vpack.c.b16 %v3895, %v3893
        %v3914 = vpack.c.b16 %v3899, %v3897
        %v3915 = vpack.c.b8 %v3914, %v3913
        %v3916 = vpack.c.b16 %v3902, %v3900
        %v3917 = vpack.c.b16 %v3906, %v3904
        %v3918 = vpack.c.b8 %v3917, %v3916
        %v3919 = vpack.c.b16 %v3903, %v3901
        %v3920 = vpack.c.b16 %v3907, %v3905
        %v3921 = vpack.c.b8 %v3920, %v3919
        %v3922 = vpack.c.b16 %v3908, %v3908
        %v3923 = vpack.c.b8 %v3922, %v3922
        %v3924 = vpack.c.b16 %v3909, %v3909
        %v3925 = vpack.c.b8 %v3924, %v3924
        %v3927 = vshrl.u32 %v3912, 8
        %v3929 = vshll.u32 %v3912, 24
        %v3931 = vrot.slane %v3929, 1
        %v3932 = vor.u32 %v3927, %v3931
        %v3934 = vshll.u32 %v3918, 24
        %v3936 = vrot.slane %v3934, 1
        %v3937 = vsel %vm2978, %v3932, %v3936
        %v3939 = vshrl.u32 %v3915, 8
        %v3941 = vshll.u32 %v3915, 24
        %v3943 = vrot.slane %v3941, 1
        %v3944 = vor.u32 %v3939, %v3943
        %v3946 = vshll.u32 %v3921, 24
        %v3948 = vrot.slane %v3946, 1
        %v3949 = vsel %vm2978, %v3944, %v3948
        %v3950 = vshrl.u32 %v3918, 8
        %v3952 = vor.u32 %v3950, %v3936
        %v3954 = vshll.u32 %v3923, 24
        %v3956 = vrot.slane %v3954, 1
        %v3957 = vsel %vm2978, %v3952, %v3956
        %v3958 = vshrl.u32 %v3921, 8
        %v3960 = vor.u32 %v3958, %v3948
        %v3962 = vshll.u32 %v3925, 24
        %v3964 = vrot.slane %v3962, 1
        %v3965 = vsel %vm2978, %v3960, %v3964
        %vm3966 = vnez %v3937
        %vm3967 = vnez %v3949
        %vm3968 = vnez %v3957
        %vm3969 = vnez %v3965
        %v3970 = vsel %vm3966, 16843009, 0
        %v3971 = vsel %vm3967, 16843009, 0
        %v3972 = vsel %vm3968, 16843009, 0
        %v3973 = vsel %vm3969, 16843009, 0
        %3974 = vst [vmem:[%s174] sm:$0xff] %v3970
        %3975 = vst [vmem:[%s174 + $0x8] sm:$0xff] %v3971
        %3976 = vst [vmem:[%s174 + $0x10] sm:$0xff] %v3972
        %3977 = vst [vmem:[%s174 + $0x18] sm:$0xff] %v3973
        %v3996 = vrot.slane %v2019, 1
        %v3997 = vrot.slane %v2021, 1
        %v3998 = vsel %vm732, %v3996, %v3997
        %v3999 = vrot.slane %v2020, 1
        %v4000 = vrot.slane %v2022, 1
        %v4001 = vsel %vm732, %v3999, %v4000
        %v4002 = vrot.slane %v2023, 1
        %v4003 = vsel %vm732, %v3997, %v4002
        %v4004 = vrot.slane %v2024, 1
        %v4005 = vsel %vm732, %v4000, %v4004
        %v4006 = vrot.slane %v2025, 1
        %v4007 = vsel %vm732, %v4002, %v4006
        %v4008 = vrot.slane %v2026, 1
        %v4009 = vsel %vm732, %v4004, %v4008
        %v4010 = vrot.slane %v2027, 1
        %v4011 = vsel %vm732, %v4006, %v4010
        %v4012 = vrot.slane %v2028, 1
        %v4013 = vsel %vm732, %v4008, %v4012
        %v4014 = vrot.slane %v2029, 1
        %v4015 = vsel %vm732, %v4010, %v4014
        %v4016 = vrot.slane %v2030, 1
        %v4017 = vsel %vm732, %v4012, %v4016
        %v4018 = vrot.slane %v2031, 1
        %v4019 = vsel %vm732, %v4014, %v4018
        %v4020 = vrot.slane %v2032, 1
        %v4021 = vsel %vm732, %v4016, %v4020
        %v4022 = vrot.slane %v2033, 1
        %v4023 = vsel %vm732, %v4018, %v4022
        %v4024 = vrot.slane %v2034, 1
        %v4025 = vsel %vm732, %v4020, %v4024
        %v4026 = vrot.slane %v2035, 1
        %v4027 = vsel %vm732, %v4022, %v4026
        %v4028 = vrot.slane %v2036, 1
        %v4029 = vsel %vm732, %v4024, %v4028
        %4048 = vrot.lane.b32.xlu0 %v3998, 1
        %v4049 = vpop.permute.xlu0 %4048
        %4050 = vrot.lane.b32.xlu0 %v4003, 1
        %v4051 = vpop.permute.xlu0 %4050
        %4052 = vrot.lane.b32.xlu0 %v4007, 1
        %v4053 = vpop.permute.xlu0 %4052
        %4054 = vrot.lane.b32.xlu0 %v4011, 1
        %v4055 = vpop.permute.xlu0 %4054
        %4056 = vrot.lane.b32.xlu0 %v4015, 1
        %v4057 = vpop.permute.xlu0 %4056
        %4058 = vrot.lane.b32.xlu0 %v4019, 1
        %v4059 = vpop.permute.xlu0 %4058
        %4060 = vrot.lane.b32.xlu0 %v4023, 1
        %v4061 = vpop.permute.xlu0 %4060
        %4062 = vrot.lane.b32.xlu0 %v4027, 1
        %v4063 = vpop.permute.xlu0 %4062
        %4064 = vrot.lane.b32.xlu0 %v4026, 1
        %v4065 = vpop.permute.xlu0 %4064
        %4066 = vrot.lane.b32.xlu0 %v4001, 1
        %v4067 = vpop.permute.xlu0 %4066
        %4068 = vrot.lane.b32.xlu0 %v4005, 1
        %v4069 = vpop.permute.xlu0 %4068
        %4070 = vrot.lane.b32.xlu0 %v4009, 1
        %v4071 = vpop.permute.xlu0 %4070
        %4072 = vrot.lane.b32.xlu0 %v4013, 1
        %v4073 = vpop.permute.xlu0 %4072
        %4074 = vrot.lane.b32.xlu0 %v4017, 1
        %v4075 = vpop.permute.xlu0 %4074
        %4076 = vrot.lane.b32.xlu0 %v4021, 1
        %v4077 = vpop.permute.xlu0 %4076
        %4078 = vrot.lane.b32.xlu0 %v4025, 1
        %v4079 = vpop.permute.xlu0 %4078
        %4080 = vrot.lane.b32.xlu0 %v4029, 1
        %v4081 = vpop.permute.xlu0 %4080
        %4082 = vrot.lane.b32.xlu0 %v4028, 1
        %v4083 = vpop.permute.xlu0 %4082
        %v4084 = vsel %vm506, %v4049, %v4067
        %v4085 = vsel %vm506, %v4051, %v4069
        %v4086 = vsel %vm506, %v4053, %v4071
        %v4087 = vsel %vm506, %v4055, %v4073
        %v4088 = vsel %vm506, %v4057, %v4075
        %v4089 = vsel %vm506, %v4059, %v4077
        %v4090 = vsel %vm506, %v4061, %v4079
        %v4091 = vsel %vm506, %v4063, %v4081
        %v4092 = vsel %vm506, %v4065, %v4083
        %v4093 = vsel %vm506, %v4067, %v4049
        %v4094 = vsel %vm506, %v4069, %v4051
        %v4095 = vsel %vm506, %v4071, %v4053
        %v4096 = vsel %vm506, %v4073, %v4055
        %v4097 = vsel %vm506, %v4075, %v4057
        %v4098 = vsel %vm506, %v4077, %v4059
        %v4099 = vsel %vm506, %v4079, %v4061
        %v4100 = vsel %vm506, %v4081, %v4063
        %v4101 = vsel %vm506, %v4083, %v4065
        %v4102 = vsel %vm527, %v4093, 0.0
        %v4103 = vsel %vm528, %v4084, 0.0
        %v4104 = vsel %vm527, %v4094, 0.0
        %v4105 = vsel %vm528, %v4085, 0.0
        %v4106 = vsel %vm527, %v4095, 0.0
        %v4107 = vsel %vm528, %v4086, 0.0
        %v4108 = vsel %vm527, %v4096, 0.0
        %v4109 = vsel %vm528, %v4087, 0.0
        %v4110 = vsel %vm527, %v4097, 0.0
        %v4111 = vsel %vm528, %v4088, 0.0
        %v4112 = vsel %vm527, %v4098, 0.0
        %v4113 = vsel %vm528, %v4089, 0.0
        %v4114 = vsel %vm527, %v4099, 0.0
        %v4115 = vsel %vm528, %v4090, 0.0
        %v4116 = vsel %vm527, %v4100, 0.0
        %v4117 = vsel %vm528, %v4091, 0.0
        %v4118 = vsel %vm527, %v4101, 0.0
        %v4119 = vsel %vm528, %v4092, 0.0
        %4120 = vrot.lane.b32.xlu0 %v3998, 127
        %v4121 = vpop.permute.xlu0 %4120
        %4122 = vrot.lane.b32.xlu0 %v4003, 127
        %v4123 = vpop.permute.xlu0 %4122
        %4124 = vrot.lane.b32.xlu0 %v4007, 127
        %v4125 = vpop.permute.xlu0 %4124
        %4126 = vrot.lane.b32.xlu0 %v4011, 127
        %v4127 = vpop.permute.xlu0 %4126
        %4128 = vrot.lane.b32.xlu0 %v4015, 127
        %v4129 = vpop.permute.xlu0 %4128
        %4130 = vrot.lane.b32.xlu0 %v4019, 127
        %v4131 = vpop.permute.xlu0 %4130
        %4132 = vrot.lane.b32.xlu0 %v4023, 127
        %v4133 = vpop.permute.xlu0 %4132
        %4134 = vrot.lane.b32.xlu0 %v4027, 127
        %v4135 = vpop.permute.xlu0 %4134
        %4136 = vrot.lane.b32.xlu0 %v4026, 127
        %v4137 = vpop.permute.xlu0 %4136
        %4138 = vrot.lane.b32.xlu0 %v4001, 127
        %v4139 = vpop.permute.xlu0 %4138
        %4140 = vrot.lane.b32.xlu0 %v4005, 127
        %v4141 = vpop.permute.xlu0 %4140
        %4142 = vrot.lane.b32.xlu0 %v4009, 127
        %v4143 = vpop.permute.xlu0 %4142
        %4144 = vrot.lane.b32.xlu0 %v4013, 127
        %v4145 = vpop.permute.xlu0 %4144
        %4146 = vrot.lane.b32.xlu0 %v4017, 127
        %v4147 = vpop.permute.xlu0 %4146
        %4148 = vrot.lane.b32.xlu0 %v4021, 127
        %v4149 = vpop.permute.xlu0 %4148
        %4150 = vrot.lane.b32.xlu0 %v4025, 127
        %v4151 = vpop.permute.xlu0 %4150
        %4152 = vrot.lane.b32.xlu0 %v4029, 127
        %v4153 = vpop.permute.xlu0 %4152
        %4154 = vrot.lane.b32.xlu0 %v4028, 127
        %v4155 = vpop.permute.xlu0 %4154
        %v4156 = vsel %vm583, %v4121, %v4139
        %v4157 = vsel %vm583, %v4123, %v4141
        %v4158 = vsel %vm583, %v4125, %v4143
        %v4159 = vsel %vm583, %v4127, %v4145
        %v4160 = vsel %vm583, %v4129, %v4147
        %v4161 = vsel %vm583, %v4131, %v4149
        %v4162 = vsel %vm583, %v4133, %v4151
        %v4163 = vsel %vm583, %v4135, %v4153
        %v4164 = vsel %vm583, %v4137, %v4155
        %v4165 = vsel %vm583, %v4139, %v4121
        %v4166 = vsel %vm583, %v4141, %v4123
        %v4167 = vsel %vm583, %v4143, %v4125
        %v4168 = vsel %vm583, %v4145, %v4127
        %v4169 = vsel %vm583, %v4147, %v4129
        %v4170 = vsel %vm583, %v4149, %v4131
        %v4171 = vsel %vm583, %v4151, %v4133
        %v4172 = vsel %vm583, %v4153, %v4135
        %v4173 = vsel %vm583, %v4155, %v4137
        %v4174 = vsel %vm604, %v4156, 0.0
        %v4175 = vsel %vm605, %v4165, 0.0
        %v4176 = vsel %vm604, %v4157, 0.0
        %v4177 = vsel %vm605, %v4166, 0.0
        %v4178 = vsel %vm604, %v4158, 0.0
        %v4179 = vsel %vm605, %v4167, 0.0
        %v4180 = vsel %vm604, %v4159, 0.0
        %v4181 = vsel %vm605, %v4168, 0.0
        %v4182 = vsel %vm604, %v4160, 0.0
        %v4183 = vsel %vm605, %v4169, 0.0
        %v4184 = vsel %vm604, %v4161, 0.0
        %v4185 = vsel %vm605, %v4170, 0.0
        %v4186 = vsel %vm604, %v4162, 0.0
        %v4187 = vsel %vm605, %v4171, 0.0
        %v4188 = vsel %vm604, %v4163, 0.0
        %v4189 = vsel %vm605, %v4172, 0.0
        %v4190 = vsel %vm604, %v4164, 0.0
        %v4191 = vsel %vm605, %v4173, 0.0
        %v4192 = vmax.f32 %v4102, %v4174
        %v4193 = vmax.f32 %v4103, %v4175
        %v4194 = vmax.f32 %v4104, %v4176
        %v4195 = vmax.f32 %v4105, %v4177
        %v4196 = vmax.f32 %v4106, %v4178
        %v4197 = vmax.f32 %v4107, %v4179
        %v4198 = vmax.f32 %v4108, %v4180
        %v4199 = vmax.f32 %v4109, %v4181
        %v4200 = vmax.f32 %v4110, %v4182
        %v4201 = vmax.f32 %v4111, %v4183
        %v4202 = vmax.f32 %v4112, %v4184
        %v4203 = vmax.f32 %v4113, %v4185
        %v4204 = vmax.f32 %v4114, %v4186
        %v4205 = vmax.f32 %v4115, %v4187
        %v4206 = vmax.f32 %v4116, %v4188
        %v4207 = vmax.f32 %v4117, %v4189
        %v4208 = vmax.f32 %v4118, %v4190
        %v4209 = vmax.f32 %v4119, %v4191
        %v4228 = vrot.slane %v4192, 7
        %v4229 = vrot.slane %v4193, 7
        %v4230 = vrot.slane %v4194, 7
        %v4231 = vsel %vm1465, %v4228, %v4230
        %v4232 = vrot.slane %v4195, 7
        %v4233 = vsel %vm1465, %v4229, %v4232
        %v4234 = vrot.slane %v4196, 7
        %v4235 = vsel %vm1465, %v4230, %v4234
        %v4236 = vrot.slane %v4197, 7
        %v4237 = vsel %vm1465, %v4232, %v4236
        %v4238 = vrot.slane %v4198, 7
        %v4239 = vsel %vm1465, %v4234, %v4238
        %v4240 = vrot.slane %v4199, 7
        %v4241 = vsel %vm1465, %v4236, %v4240
        %v4242 = vrot.slane %v4200, 7
        %v4243 = vsel %vm1465, %v4238, %v4242
        %v4244 = vrot.slane %v4201, 7
        %v4245 = vsel %vm1465, %v4240, %v4244
        %v4246 = vrot.slane %v4202, 7
        %v4247 = vsel %vm1465, %v4242, %v4246
        %v4248 = vrot.slane %v4203, 7
        %v4249 = vsel %vm1465, %v4244, %v4248
        %v4250 = vrot.slane %v4204, 7
        %v4251 = vsel %vm1465, %v4246, %v4250
        %v4252 = vrot.slane %v4205, 7
        %v4253 = vsel %vm1465, %v4248, %v4252
        %v4254 = vrot.slane %v4206, 7
        %v4255 = vsel %vm1465, %v4250, %v4254
        %v4256 = vrot.slane %v4207, 7
        %v4257 = vsel %vm1465, %v4252, %v4256
        %v4258 = vrot.slane %v4208, 7
        %v4259 = vsel %vm1465, %v4254, %v4258
        %v4260 = vrot.slane %v4209, 7
        %v4261 = vsel %vm1465, %v4256, %v4260
        %v4280 = vmax.f32 %v2019, %v4228
        %v4281 = vmax.f32 %v2020, %v4229
        %v4282 = vmax.f32 %v2021, %v4231
        %v4283 = vmax.f32 %v2022, %v4233
        %v4284 = vmax.f32 %v2023, %v4235
        %v4285 = vmax.f32 %v2024, %v4237
        %v4286 = vmax.f32 %v2025, %v4239
        %v4287 = vmax.f32 %v2026, %v4241
        %v4288 = vmax.f32 %v2027, %v4243
        %v4289 = vmax.f32 %v2028, %v4245
        %v4290 = vmax.f32 %v2029, %v4247
        %v4291 = vmax.f32 %v2030, %v4249
        %v4292 = vmax.f32 %v2031, %v4251
        %v4293 = vmax.f32 %v2032, %v4253
        %v4294 = vmax.f32 %v2033, %v4255
        %v4295 = vmax.f32 %v2034, %v4257
        %v4296 = vmax.f32 %v2035, %v4259
        %v4297 = vmax.f32 %v2036, %v4261
        %4298 = vrot.lane.b32.xlu0 %v3998, 2
        %v4299 = vpop.permute.xlu0 %4298
        %4300 = vrot.lane.b32.xlu0 %v4003, 2
        %v4301 = vpop.permute.xlu0 %4300
        %4302 = vrot.lane.b32.xlu0 %v4007, 2
        %v4303 = vpop.permute.xlu0 %4302
        %4304 = vrot.lane.b32.xlu0 %v4011, 2
        %v4305 = vpop.permute.xlu0 %4304
        %4306 = vrot.lane.b32.xlu0 %v4015, 2
        %v4307 = vpop.permute.xlu0 %4306
        %4308 = vrot.lane.b32.xlu0 %v4019, 2
        %v4309 = vpop.permute.xlu0 %4308
        %4310 = vrot.lane.b32.xlu0 %v4023, 2
        %v4311 = vpop.permute.xlu0 %4310
        %4312 = vrot.lane.b32.xlu0 %v4027, 2
        %v4313 = vpop.permute.xlu0 %4312
        %4314 = vrot.lane.b32.xlu0 %v4026, 2
        %v4315 = vpop.permute.xlu0 %4314
        %4316 = vrot.lane.b32.xlu0 %v4001, 2
        %v4317 = vpop.permute.xlu0 %4316
        %4318 = vrot.lane.b32.xlu0 %v4005, 2
        %v4319 = vpop.permute.xlu0 %4318
        %4320 = vrot.lane.b32.xlu0 %v4009, 2
        %v4321 = vpop.permute.xlu0 %4320
        %4322 = vrot.lane.b32.xlu0 %v4013, 2
        %v4323 = vpop.permute.xlu0 %4322
        %4324 = vrot.lane.b32.xlu0 %v4017, 2
        %v4325 = vpop.permute.xlu0 %4324
        %4326 = vrot.lane.b32.xlu0 %v4021, 2
        %v4327 = vpop.permute.xlu0 %4326
        %4328 = vrot.lane.b32.xlu0 %v4025, 2
        %v4329 = vpop.permute.xlu0 %4328
        %4330 = vrot.lane.b32.xlu0 %v4029, 2
        %v4331 = vpop.permute.xlu0 %4330
        %4332 = vrot.lane.b32.xlu0 %v4028, 2
        %v4333 = vpop.permute.xlu0 %4332
        %v4334 = vsel %vm2429, %v4299, %v4317
        %v4335 = vsel %vm2429, %v4301, %v4319
        %v4336 = vsel %vm2429, %v4303, %v4321
        %v4337 = vsel %vm2429, %v4305, %v4323
        %v4338 = vsel %vm2429, %v4307, %v4325
        %v4339 = vsel %vm2429, %v4309, %v4327
        %v4340 = vsel %vm2429, %v4311, %v4329
        %v4341 = vsel %vm2429, %v4313, %v4331
        %v4342 = vsel %vm2429, %v4315, %v4333
        %v4343 = vsel %vm2429, %v4317, %v4299
        %v4344 = vsel %vm2429, %v4319, %v4301
        %v4345 = vsel %vm2429, %v4321, %v4303
        %v4346 = vsel %vm2429, %v4323, %v4305
        %v4347 = vsel %vm2429, %v4325, %v4307
        %v4348 = vsel %vm2429, %v4327, %v4309
        %v4349 = vsel %vm2429, %v4329, %v4311
        %v4350 = vsel %vm2429, %v4331, %v4313
        %v4351 = vsel %vm2429, %v4333, %v4315
        %v4352 = vsel %vm2450, %v4343, 0.0
        %v4353 = vsel %vm2451, %v4334, 0.0
        %v4354 = vsel %vm2450, %v4344, 0.0
        %v4355 = vsel %vm2451, %v4335, 0.0
        %v4356 = vsel %vm2450, %v4345, 0.0
        %v4357 = vsel %vm2451, %v4336, 0.0
        %v4358 = vsel %vm2450, %v4346, 0.0
        %v4359 = vsel %vm2451, %v4337, 0.0
        %v4360 = vsel %vm2450, %v4347, 0.0
        %v4361 = vsel %vm2451, %v4338, 0.0
        %v4362 = vsel %vm2450, %v4348, 0.0
        %v4363 = vsel %vm2451, %v4339, 0.0
        %v4364 = vsel %vm2450, %v4349, 0.0
        %v4365 = vsel %vm2451, %v4340, 0.0
        %v4366 = vsel %vm2450, %v4350, 0.0
        %v4367 = vsel %vm2451, %v4341, 0.0
        %v4368 = vsel %vm2450, %v4351, 0.0
        %v4369 = vsel %vm2451, %v4342, 0.0
        %4370 = vrot.lane.b32.xlu0 %v3998, 126
        %v4371 = vpop.permute.xlu0 %4370
        %4372 = vrot.lane.b32.xlu0 %v4003, 126
        %v4373 = vpop.permute.xlu0 %4372
        %4374 = vrot.lane.b32.xlu0 %v4007, 126
        %v4375 = vpop.permute.xlu0 %4374
        %4376 = vrot.lane.b32.xlu0 %v4011, 126
        %v4377 = vpop.permute.xlu0 %4376
        %4378 = vrot.lane.b32.xlu0 %v4015, 126
        %v4379 = vpop.permute.xlu0 %4378
        %4380 = vrot.lane.b32.xlu0 %v4019, 126
        %v4381 = vpop.permute.xlu0 %4380
        %4382 = vrot.lane.b32.xlu0 %v4023, 126
        %v4383 = vpop.permute.xlu0 %4382
        %4384 = vrot.lane.b32.xlu0 %v4027, 126
        %v4385 = vpop.permute.xlu0 %4384
        %4386 = vrot.lane.b32.xlu0 %v4026, 126
        %v4387 = vpop.permute.xlu0 %4386
        %4388 = vrot.lane.b32.xlu0 %v4001, 126
        %v4389 = vpop.permute.xlu0 %4388
        %4390 = vrot.lane.b32.xlu0 %v4005, 126
        %v4391 = vpop.permute.xlu0 %4390
        %4392 = vrot.lane.b32.xlu0 %v4009, 126
        %v4393 = vpop.permute.xlu0 %4392
        %4394 = vrot.lane.b32.xlu0 %v4013, 126
        %v4395 = vpop.permute.xlu0 %4394
        %4396 = vrot.lane.b32.xlu0 %v4017, 126
        %v4397 = vpop.permute.xlu0 %4396
        %4398 = vrot.lane.b32.xlu0 %v4021, 126
        %v4399 = vpop.permute.xlu0 %4398
        %4400 = vrot.lane.b32.xlu0 %v4025, 126
        %v4401 = vpop.permute.xlu0 %4400
        %4402 = vrot.lane.b32.xlu0 %v4029, 126
        %v4403 = vpop.permute.xlu0 %4402
        %4404 = vrot.lane.b32.xlu0 %v4028, 126
        %v4405 = vpop.permute.xlu0 %4404
        %v4406 = vsel %vm2506, %v4371, %v4389
        %v4407 = vsel %vm2506, %v4373, %v4391
        %v4408 = vsel %vm2506, %v4375, %v4393
        %v4409 = vsel %vm2506, %v4377, %v4395
        %v4410 = vsel %vm2506, %v4379, %v4397
        %v4411 = vsel %vm2506, %v4381, %v4399
        %v4412 = vsel %vm2506, %v4383, %v4401
        %v4413 = vsel %vm2506, %v4385, %v4403
        %v4414 = vsel %vm2506, %v4387, %v4405
        %v4415 = vsel %vm2506, %v4389, %v4371
        %v4416 = vsel %vm2506, %v4391, %v4373
        %v4417 = vsel %vm2506, %v4393, %v4375
        %v4418 = vsel %vm2506, %v4395, %v4377
        %v4419 = vsel %vm2506, %v4397, %v4379
        %v4420 = vsel %vm2506, %v4399, %v4381
        %v4421 = vsel %vm2506, %v4401, %v4383
        %v4422 = vsel %vm2506, %v4403, %v4385
        %v4423 = vsel %vm2506, %v4405, %v4387
        %v4424 = vsel %vm2527, %v4406, 0.0
        %v4425 = vsel %vm2528, %v4415, 0.0
        %v4426 = vsel %vm2527, %v4407, 0.0
        %v4427 = vsel %vm2528, %v4416, 0.0
        %v4428 = vsel %vm2527, %v4408, 0.0
        %v4429 = vsel %vm2528, %v4417, 0.0
        %v4430 = vsel %vm2527, %v4409, 0.0
        %v4431 = vsel %vm2528, %v4418, 0.0
        %v4432 = vsel %vm2527, %v4410, 0.0
        %v4433 = vsel %vm2528, %v4419, 0.0
        %v4434 = vsel %vm2527, %v4411, 0.0
        %v4435 = vsel %vm2528, %v4420, 0.0
        %v4436 = vsel %vm2527, %v4412, 0.0
        %v4437 = vsel %vm2528, %v4421, 0.0
        %v4438 = vsel %vm2527, %v4413, 0.0
        %v4439 = vsel %vm2528, %v4422, 0.0
        %v4440 = vsel %vm2527, %v4414, 0.0
        %v4441 = vsel %vm2528, %v4423, 0.0
        %v4442 = vmax.f32 %v4352, %v4424
        %v4443 = vmax.f32 %v4353, %v4425
        %v4444 = vmax.f32 %v4354, %v4426
        %v4445 = vmax.f32 %v4355, %v4427
        %v4446 = vmax.f32 %v4356, %v4428
        %v4447 = vmax.f32 %v4357, %v4429
        %v4448 = vmax.f32 %v4358, %v4430
        %v4449 = vmax.f32 %v4359, %v4431
        %v4450 = vmax.f32 %v4360, %v4432
        %v4451 = vmax.f32 %v4361, %v4433
        %v4452 = vmax.f32 %v4362, %v4434
        %v4453 = vmax.f32 %v4363, %v4435
        %v4454 = vmax.f32 %v4364, %v4436
        %v4455 = vmax.f32 %v4365, %v4437
        %v4456 = vmax.f32 %v4366, %v4438
        %v4457 = vmax.f32 %v4367, %v4439
        %v4458 = vmax.f32 %v4368, %v4440
        %v4459 = vmax.f32 %v4369, %v4441
        %v4478 = vrot.slane %v4442, 7
        %v4479 = vrot.slane %v4443, 7
        %v4480 = vrot.slane %v4444, 7
        %v4481 = vsel %vm1465, %v4478, %v4480
        %v4482 = vrot.slane %v4445, 7
        %v4483 = vsel %vm1465, %v4479, %v4482
        %v4484 = vrot.slane %v4446, 7
        %v4485 = vsel %vm1465, %v4480, %v4484
        %v4486 = vrot.slane %v4447, 7
        %v4487 = vsel %vm1465, %v4482, %v4486
        %v4488 = vrot.slane %v4448, 7
        %v4489 = vsel %vm1465, %v4484, %v4488
        %v4490 = vrot.slane %v4449, 7
        %v4491 = vsel %vm1465, %v4486, %v4490
        %v4492 = vrot.slane %v4450, 7
        %v4493 = vsel %vm1465, %v4488, %v4492
        %v4494 = vrot.slane %v4451, 7
        %v4495 = vsel %vm1465, %v4490, %v4494
        %v4496 = vrot.slane %v4452, 7
        %v4497 = vsel %vm1465, %v4492, %v4496
        %v4498 = vrot.slane %v4453, 7
        %v4499 = vsel %vm1465, %v4494, %v4498
        %v4500 = vrot.slane %v4454, 7
        %v4501 = vsel %vm1465, %v4496, %v4500
        %v4502 = vrot.slane %v4455, 7
        %v4503 = vsel %vm1465, %v4498, %v4502
        %v4504 = vrot.slane %v4456, 7
        %v4505 = vsel %vm1465, %v4500, %v4504
        %v4506 = vrot.slane %v4457, 7
        %v4507 = vsel %vm1465, %v4502, %v4506
        %v4508 = vrot.slane %v4458, 7
        %v4509 = vsel %vm1465, %v4504, %v4508
        %v4510 = vrot.slane %v4459, 7
        %v4511 = vsel %vm1465, %v4506, %v4510
        %v4530 = vmax.f32 %v4280, %v4478
        %v4531 = vmax.f32 %v4281, %v4479
        %v4532 = vmax.f32 %v4282, %v4481
        %v4533 = vmax.f32 %v4283, %v4483
        %v4534 = vmax.f32 %v4284, %v4485
        %v4535 = vmax.f32 %v4285, %v4487
        %v4536 = vmax.f32 %v4286, %v4489
        %v4537 = vmax.f32 %v4287, %v4491
        %v4538 = vmax.f32 %v4288, %v4493
        %v4539 = vmax.f32 %v4289, %v4495
        %v4540 = vmax.f32 %v4290, %v4497
        %v4541 = vmax.f32 %v4291, %v4499
        %v4542 = vmax.f32 %v4292, %v4501
        %v4543 = vmax.f32 %v4293, %v4503
        %v4544 = vmax.f32 %v4294, %v4505
        %v4545 = vmax.f32 %v4295, %v4507
        %v4546 = vmax.f32 %v4296, %v4509
        %v4547 = vmax.f32 %v4297, %v4511
        %v4566 = vrot.slane %v4530, 1
        %v4567 = vrot.slane %v4532, 1
        %v4568 = vsel %vm732, %v4566, %v4567
        %v4569 = vrot.slane %v4531, 1
        %v4570 = vrot.slane %v4533, 1
        %v4571 = vsel %vm732, %v4569, %v4570
        %v4572 = vrot.slane %v4534, 1
        %v4573 = vsel %vm732, %v4567, %v4572
        %v4574 = vrot.slane %v4535, 1
        %v4575 = vsel %vm732, %v4570, %v4574
        %v4576 = vrot.slane %v4536, 1
        %v4577 = vsel %vm732, %v4572, %v4576
        %v4578 = vrot.slane %v4537, 1
        %v4579 = vsel %vm732, %v4574, %v4578
        %v4580 = vrot.slane %v4538, 1
        %v4581 = vsel %vm732, %v4576, %v4580
        %v4582 = vrot.slane %v4539, 1
        %v4583 = vsel %vm732, %v4578, %v4582
        %v4584 = vrot.slane %v4540, 1
        %v4585 = vsel %vm732, %v4580, %v4584
        %v4586 = vrot.slane %v4541, 1
        %v4587 = vsel %vm732, %v4582, %v4586
        %v4588 = vrot.slane %v4542, 1
        %v4589 = vsel %vm732, %v4584, %v4588
        %v4590 = vrot.slane %v4543, 1
        %v4591 = vsel %vm732, %v4586, %v4590
        %v4592 = vrot.slane %v4544, 1
        %v4593 = vsel %vm732, %v4588, %v4592
        %v4594 = vrot.slane %v4545, 1
        %v4595 = vsel %vm732, %v4590, %v4594
        %v4596 = vrot.slane %v4546, 1
        %v4597 = vsel %vm732, %v4592, %v4596
        %v4598 = vrot.slane %v4547, 1
        %v4599 = vsel %vm732, %v4594, %v4598
        %v4618 = vmax.f32 %v4530, %v4568
        %v4619 = vmax.f32 %v4531, %v4571
        %v4620 = vmax.f32 %v4532, %v4573
        %v4621 = vmax.f32 %v4533, %v4575
        %v4622 = vmax.f32 %v4534, %v4577
        %v4623 = vmax.f32 %v4535, %v4579
        %v4624 = vmax.f32 %v4536, %v4581
        %v4625 = vmax.f32 %v4537, %v4583
        %v4626 = vmax.f32 %v4538, %v4585
        %v4627 = vmax.f32 %v4539, %v4587
        %v4628 = vmax.f32 %v4540, %v4589
        %v4629 = vmax.f32 %v4541, %v4591
        %v4630 = vmax.f32 %v4542, %v4593
        %v4631 = vmax.f32 %v4543, %v4595
        %v4632 = vmax.f32 %v4544, %v4597
        %v4633 = vmax.f32 %v4545, %v4599
        %v4634 = vmax.f32 %v4546, %v4596
        %v4635 = vmax.f32 %v4547, %v4598
        %v4636 = vrot.slane %v4530, 2
        %v4637 = vrot.slane %v4532, 2
        %v4638 = vsel %vm821, %v4636, %v4637
        %v4639 = vrot.slane %v4531, 2
        %v4640 = vrot.slane %v4533, 2
        %v4641 = vsel %vm821, %v4639, %v4640
        %v4642 = vrot.slane %v4534, 2
        %v4643 = vsel %vm821, %v4637, %v4642
        %v4644 = vrot.slane %v4535, 2
        %v4645 = vsel %vm821, %v4640, %v4644
        %v4646 = vrot.slane %v4536, 2
        %v4647 = vsel %vm821, %v4642, %v4646
        %v4648 = vrot.slane %v4537, 2
        %v4649 = vsel %vm821, %v4644, %v4648
        %v4650 = vrot.slane %v4538, 2
        %v4651 = vsel %vm821, %v4646, %v4650
        %v4652 = vrot.slane %v4539, 2
        %v4653 = vsel %vm821, %v4648, %v4652
        %v4654 = vrot.slane %v4540, 2
        %v4655 = vsel %vm821, %v4650, %v4654
        %v4656 = vrot.slane %v4541, 2
        %v4657 = vsel %vm821, %v4652, %v4656
        %v4658 = vrot.slane %v4542, 2
        %v4659 = vsel %vm821, %v4654, %v4658
        %v4660 = vrot.slane %v4543, 2
        %v4661 = vsel %vm821, %v4656, %v4660
        %v4662 = vrot.slane %v4544, 2
        %v4663 = vsel %vm821, %v4658, %v4662
        %v4664 = vrot.slane %v4545, 2
        %v4665 = vsel %vm821, %v4660, %v4664
        %v4666 = vrot.slane %v4546, 2
        %v4667 = vsel %vm821, %v4662, %v4666
        %v4668 = vrot.slane %v4547, 2
        %v4669 = vsel %vm821, %v4664, %v4668
        %v4688 = vmax.f32 %v4618, %v4638
        %v4689 = vmax.f32 %v4619, %v4641
        %v4690 = vmax.f32 %v4620, %v4643
        %v4691 = vmax.f32 %v4621, %v4645
        %v4692 = vmax.f32 %v4622, %v4647
        %v4693 = vmax.f32 %v4623, %v4649
        %v4694 = vmax.f32 %v4624, %v4651
        %v4695 = vmax.f32 %v4625, %v4653
        %v4696 = vmax.f32 %v4626, %v4655
        %v4697 = vmax.f32 %v4627, %v4657
        %v4698 = vmax.f32 %v4628, %v4659
        %v4699 = vmax.f32 %v4629, %v4661
        %v4700 = vmax.f32 %v4630, %v4663
        %v4701 = vmax.f32 %v4631, %v4665
        %v4702 = vmax.f32 %v4632, %v4667
        %v4703 = vmax.f32 %v4633, %v4669
        %v4704 = vmax.f32 %v4634, %v4666
        %v4705 = vmax.f32 %v4635, %v4668
        %v4724 = vrot.slane %v4688, 2
        %v4725 = vrot.slane %v4690, 2
        %v4726 = vsel %vm821, %v4724, %v4725
        %v4727 = vrot.slane %v4689, 2
        %v4728 = vrot.slane %v4691, 2
        %v4729 = vsel %vm821, %v4727, %v4728
        %v4730 = vrot.slane %v4692, 2
        %v4731 = vsel %vm821, %v4725, %v4730
        %v4732 = vrot.slane %v4693, 2
        %v4733 = vsel %vm821, %v4728, %v4732
        %v4734 = vrot.slane %v4694, 2
        %v4735 = vsel %vm821, %v4730, %v4734
        %v4736 = vrot.slane %v4695, 2
        %v4737 = vsel %vm821, %v4732, %v4736
        %v4738 = vrot.slane %v4696, 2
        %v4739 = vsel %vm821, %v4734, %v4738
        %v4740 = vrot.slane %v4697, 2
        %v4741 = vsel %vm821, %v4736, %v4740
        %v4742 = vrot.slane %v4698, 2
        %v4743 = vsel %vm821, %v4738, %v4742
        %v4744 = vrot.slane %v4699, 2
        %v4745 = vsel %vm821, %v4740, %v4744
        %v4746 = vrot.slane %v4700, 2
        %v4747 = vsel %vm821, %v4742, %v4746
        %v4748 = vrot.slane %v4701, 2
        %v4749 = vsel %vm821, %v4744, %v4748
        %v4750 = vrot.slane %v4702, 2
        %v4751 = vsel %vm821, %v4746, %v4750
        %v4752 = vrot.slane %v4703, 2
        %v4753 = vsel %vm821, %v4748, %v4752
        %v4754 = vrot.slane %v4704, 2
        %v4755 = vsel %vm821, %v4750, %v4754
        %v4756 = vrot.slane %v4705, 2
        %v4757 = vsel %vm821, %v4752, %v4756
        %v4776 = vmax.f32 %v4618, %v4726
        %v4777 = vmax.f32 %v4619, %v4729
        %v4778 = vmax.f32 %v4620, %v4731
        %v4779 = vmax.f32 %v4621, %v4733
        %v4780 = vmax.f32 %v4622, %v4735
        %v4781 = vmax.f32 %v4623, %v4737
        %v4782 = vmax.f32 %v4624, %v4739
        %v4783 = vmax.f32 %v4625, %v4741
        %v4784 = vmax.f32 %v4626, %v4743
        %v4785 = vmax.f32 %v4627, %v4745
        %v4786 = vmax.f32 %v4628, %v4747
        %v4787 = vmax.f32 %v4629, %v4749
        %v4788 = vmax.f32 %v4630, %v4751
        %v4789 = vmax.f32 %v4631, %v4753
        %v4790 = vmax.f32 %v4632, %v4755
        %v4791 = vmax.f32 %v4633, %v4757
        %v4792 = vmax.f32 %v4634, %v4754
        %v4793 = vmax.f32 %v4635, %v4756
        %vm4794 = vcmp.eq.f32.partialorder %v4776, 0.0
        %vm4795 = vcmp.eq.f32.partialorder %v4777, 0.0
        %vm4796 = vcmp.eq.f32.partialorder %v4778, 0.0
        %vm4797 = vcmp.eq.f32.partialorder %v4779, 0.0
        %vm4798 = vcmp.eq.f32.partialorder %v4780, 0.0
        %vm4799 = vcmp.eq.f32.partialorder %v4781, 0.0
        %vm4800 = vcmp.eq.f32.partialorder %v4782, 0.0
        %vm4801 = vcmp.eq.f32.partialorder %v4783, 0.0
        %vm4802 = vcmp.eq.f32.partialorder %v4784, 0.0
        %vm4803 = vcmp.eq.f32.partialorder %v4785, 0.0
        %vm4804 = vcmp.eq.f32.partialorder %v4786, 0.0
        %vm4805 = vcmp.eq.f32.partialorder %v4787, 0.0
        %vm4806 = vcmp.eq.f32.partialorder %v4788, 0.0
        %vm4807 = vcmp.eq.f32.partialorder %v4789, 0.0
        %vm4808 = vcmp.eq.f32.partialorder %v4790, 0.0
        %vm4809 = vcmp.eq.f32.partialorder %v4791, 0.0
        %vm4810 = vcmp.eq.f32.partialorder %v4792, 0.0
        %vm4811 = vcmp.eq.f32.partialorder %v4793, 0.0
        %vm4812 = vmpackc.low %vm4795, %vm4794
        %vm4813 = vmpackc.even %vm4812, %vm4812
        %vm4814 = vmpackc.low %vm4797, %vm4796
        %vm4815 = vmpackc.even %vm4814, %vm4814
        %vm4816 = vmpackc.low %vm4799, %vm4798
        %vm4817 = vmpackc.even %vm4816, %vm4816
        %vm4818 = vmpackc.low %vm4801, %vm4800
        %vm4819 = vmpackc.even %vm4818, %vm4818
        %vm4820 = vmpackc.low %vm4803, %vm4802
        %vm4821 = vmpackc.even %vm4820, %vm4820
        %vm4822 = vmpackc.low %vm4805, %vm4804
        %vm4823 = vmpackc.even %vm4822, %vm4822
        %vm4824 = vmpackc.low %vm4807, %vm4806
        %vm4825 = vmpackc.even %vm4824, %vm4824
        %vm4826 = vmpackc.low %vm4809, %vm4808
        %vm4827 = vmpackc.even %vm4826, %vm4826
        %vm4828 = vmpackc.low %vm4811, %vm4810
        %vm4829 = vmpackc.even %vm4828, %vm4828
        %v4830 = vsel %vm4813, 16843009, 0
        %v4831 = vsel %vm4815, 16843009, 0
        %v4832 = vsel %vm4817, 16843009, 0
        %v4833 = vsel %vm4819, 16843009, 0
        %v4834 = vsel %vm4821, 16843009, 0
        %v4835 = vsel %vm4823, 16843009, 0
        %v4836 = vsel %vm4825, 16843009, 0
        %v4837 = vsel %vm4827, 16843009, 0
        %v4838 = vsel %vm4829, 16843009, 0
        %v4839 = vunpack.c.0.s8 %v4830
        %v4840 = vunpack.c.1.s8 %v4830
        %v4841 = vunpack.c.0.s8 %v4831
        %v4842 = vunpack.c.1.s8 %v4831
        %v4843 = vunpack.c.0.s8 %v4832
        %v4844 = vunpack.c.1.s8 %v4832
        %v4845 = vunpack.c.0.s8 %v4833
        %v4846 = vunpack.c.1.s8 %v4833
        %v4847 = vunpack.c.0.s8 %v4834
        %v4848 = vunpack.c.1.s8 %v4834
        %v4849 = vunpack.c.0.s8 %v4835
        %v4850 = vunpack.c.1.s8 %v4835
        %v4851 = vunpack.c.0.s8 %v4836
        %v4852 = vunpack.c.1.s8 %v4836
        %v4853 = vunpack.c.0.s8 %v4837
        %v4854 = vunpack.c.1.s8 %v4837
        %v4855 = vunpack.c.0.s8 %v4838
        %v4856 = vunpack.c.1.s8 %v4838
        %v4857 = vpack.c.b16 %v4841, %v4839
        %v4858 = vpack.c.b16 %v4845, %v4843
        %v4859 = vpack.c.b8 %v4858, %v4857
        %v4860 = vpack.c.b16 %v4842, %v4840
        %v4861 = vpack.c.b16 %v4846, %v4844
        %v4862 = vpack.c.b8 %v4861, %v4860
        %v4863 = vpack.c.b16 %v4849, %v4847
        %v4864 = vpack.c.b16 %v4853, %v4851
        %v4865 = vpack.c.b8 %v4864, %v4863
        %v4866 = vpack.c.b16 %v4850, %v4848
        %v4867 = vpack.c.b16 %v4854, %v4852
        %v4868 = vpack.c.b8 %v4867, %v4866
        %v4869 = vpack.c.b16 %v4855, %v4855
        %v4870 = vpack.c.b8 %v4869, %v4869
        %v4871 = vpack.c.b16 %v4856, %v4856
        %v4872 = vpack.c.b8 %v4871, %v4871
        %v4874 = vshrl.u32 %v4859, 8
        %v4876 = vshll.u32 %v4859, 24
        %v4878 = vrot.slane %v4876, 1
        %v4879 = vor.u32 %v4874, %v4878
        %v4881 = vshll.u32 %v4865, 24
        %v4883 = vrot.slane %v4881, 1
        %v4884 = vsel %vm2978, %v4879, %v4883
        %v4886 = vshrl.u32 %v4862, 8
        %v4888 = vshll.u32 %v4862, 24
        %v4890 = vrot.slane %v4888, 1
        %v4891 = vor.u32 %v4886, %v4890
        %v4893 = vshll.u32 %v4868, 24
        %v4895 = vrot.slane %v4893, 1
        %v4896 = vsel %vm2978, %v4891, %v4895
        %v4897 = vshrl.u32 %v4865, 8
        %v4899 = vor.u32 %v4897, %v4883
        %v4901 = vshll.u32 %v4870, 24
        %v4903 = vrot.slane %v4901, 1
        %v4904 = vsel %vm2978, %v4899, %v4903
        %v4905 = vshrl.u32 %v4868, 8
        %v4907 = vor.u32 %v4905, %v4895
        %v4909 = vshll.u32 %v4872, 24
        %v4911 = vrot.slane %v4909, 1
        %v4912 = vsel %vm2978, %v4907, %v4911
        %vm4913 = vnez %v4884
        %vm4914 = vnez %v4896
        %vm4915 = vnez %v4904
        %vm4916 = vnez %v4912
        %v4917 = vsel %vm4913, 16843009, 0
        %v4918 = vsel %vm4914, 16843009, 0
        %v4919 = vsel %vm4915, 16843009, 0
        %v4920 = vsel %vm4916, 16843009, 0
        %4921 = vst [vmem:[%s181] sm:$0xff] %v4917
        %4922 = vst [vmem:[%s181 + $0x8] sm:$0xff] %v4918
        %4923 = vst [vmem:[%s181 + $0x10] sm:$0xff] %v4919
        %4924 = vst [vmem:[%s181 + $0x18] sm:$0xff] %v4920
        %s4925 = sand.u32 %s52, 1
        %s4926 = scalar_lea.sflag [#allocation5], %s4925
        %s4927 = sand.u32 %s52, 1
        %s4928 = smul.addr %s4927, 32
        %s4929 = scalar_lea.vmem [#allocation7], %s4928
        %s4930 = sand.u32 %s23, 1
        %s4931 = scalar_lea.sflag [#allocation9], %s4930
        %s4932 = sand.u32 %s78, 1
        %s4933 = smul.addr %s4932, 32
        %s4934 = scalar_lea.vmem [#allocation8], %s4933
        %s4935 = sand.u32 %s23, 1
        %s4936 = scalar_lea.sflag [#allocation9], %s4935
        %s4937 = sand.u32 %s104, 1
        %s4938 = smul.addr %s4937, 32
        %s4939 = scalar_lea.vmem [#allocation10], %s4938
        // Predicated region
        $region63: #{edge_detection.3} parent=23 // pred_check
          %p4940 = pneg %p62
        $region64: #{edge_detection.3} parent=23 // pred_check_branch
          %4942 = sbr.rel (%p4940) target = $region66
        $region65: #{edge_detection.3} parent=23 // pred_region
          %s4943 = smul.u32 2, %s23
          %s4945 = ssub.s32 512, 512
          %4946 = vsyncadd %s4926, %s4945
          %s4947 = smul.addr %s4943, 2
          %s4948 = smul.addr %s4947, 128
          %s4949 = scalar_lea.hbm %s2, %s4948
          %s4950 = sshll.u32 %s4929, 4
          %s4951 = int_to_ptr.vmem [resolvable:$true] %s4950
          %4956 = dma.vmem_to_hbm [thread:$0]  %s4951, 512, %s4949, %s4926, 256, 256, 16
        $region66: #{edge_detection.3} parent=23 // pred_fallthru
          _
        // Predicated region
        $region67: #{edge_detection.3} parent=23 // pred_check
          %p4957 = pneg %p88
        $region68: #{edge_detection.3} parent=23 // pred_check_branch
          %4959 = sbr.rel (%p4957) target = $region70
        $region69: #{edge_detection.3} parent=23 // pred_region
          %s4960 = smul.u32 2, %s23
          %s4962 = ssub.s32 512, 512
          %4963 = vsyncadd %s4931, %s4962
          %s4964 = smul.addr %s4960, 2
          %s4965 = smul.addr %s4964, 128
          %s4966 = scalar_lea.hbm %s3, %s4965
          %s4967 = sshll.u32 %s4934, 4
          %s4968 = int_to_ptr.vmem [resolvable:$true] %s4967
          %4973 = dma.vmem_to_hbm [thread:$0]  %s4968, 512, %s4966, %s4931, 256, 256, 16
        $region70: #{edge_detection.3} parent=23 // pred_fallthru
          _
        // Predicated region
        $region71: #{edge_detection.3} parent=23 // pred_check
          %p4974 = pneg %p114
        $region72: #{edge_detection.3} parent=23 // pred_check_branch
          %4976 = sbr.rel (%p4974) target = $region74
        $region73: #{edge_detection.3} parent=23 // pred_region
          %s4977 = smul.u32 2, %s23
          %s4979 = ssub.s32 512, 512
          %4980 = vsyncadd %s4936, %s4979
          %s4981 = smul.addr %s4977, 2
          %s4982 = smul.addr %s4981, 128
          %s4983 = scalar_lea.hbm %s4, %s4982
          %s4984 = sshll.u32 %s4939, 4
          %s4985 = int_to_ptr.vmem [resolvable:$true] %s4984
          %4990 = dma.vmem_to_hbm [thread:$0]  %s4985, 512, %s4983, %s4936, 256, 256, 16
        $region74: #{edge_detection.3} parent=23 // pred_fallthru
          _
      $region24: #{edge_detection.3} parent=5 // pred_fallthru
        _
      %p4991 = scmp.le.s32.totalorder 2, %s18
      // Predicated region
      $region75: #{edge_detection.3} parent=5 // pred_check
        %p4992 = pneg %p4991
      $region76: #{edge_detection.3} parent=5 // pred_check_branch
        %4994 = sbr.rel (%p4992) target = $region78
      $region77: #{edge_detection.3} parent=5 // pred_region
        %s4995 = ssub.s32 %s18, 2
        // Predicated region
        $region79: #{edge_detection.3} parent=77 // pred_check
          %p4996 = pneg %p68
        $region80: #{edge_detection.3} parent=77 // pred_check_branch
          %4998 = sbr.rel (%p4996) target = $region82
        $region81: #{edge_detection.3} parent=77 // pred_region
          %s4999 = sand.u32 %s53, 1
          %s5000 = scalar_lea.sflag [#allocation5], %s4999
          %s5001 = sand.u32 %s53, 1
          %s5002 = smul.addr %s5001, 32
          %s5003 = scalar_lea.vmem [#allocation7], %s5002
          %5004 = dma.done %s5000, 512
        $region82: #{edge_detection.3} parent=77 // pred_fallthru
          _
        // Predicated region
        $region83: #{edge_detection.3} parent=77 // pred_check
          %p5005 = pneg %p94
        $region84: #{edge_detection.3} parent=77 // pred_check_branch
          %5007 = sbr.rel (%p5005) target = $region86
        $region85: #{edge_detection.3} parent=77 // pred_region
          %s5008 = sand.u32 %s24, 1
          %s5009 = scalar_lea.sflag [#allocation9], %s5008
          %s5010 = sand.u32 %s79, 1
          %s5011 = smul.addr %s5010, 32
          %s5012 = scalar_lea.vmem [#allocation8], %s5011
          %5013 = dma.done %s5009, 512
        $region86: #{edge_detection.3} parent=77 // pred_fallthru
          _
        // Predicated region
        $region87: #{edge_detection.3} parent=77 // pred_check
          %p5014 = pneg %p120
        $region88: #{edge_detection.3} parent=77 // pred_check_branch
          %5016 = sbr.rel (%p5014) target = $region90
        $region89: #{edge_detection.3} parent=77 // pred_region
          %s5017 = sand.u32 %s24, 1
          %s5018 = scalar_lea.sflag [#allocation9], %s5017
          %s5019 = sand.u32 %s105, 1
          %s5020 = smul.addr %s5019, 32
          %s5021 = scalar_lea.vmem [#allocation10], %s5020
          %5022 = dma.done %s5018, 512
        $region90: #{edge_detection.3} parent=77 // pred_fallthru
          _
      $region78: #{edge_detection.3} parent=5 // pred_fallthru
        _
    $region6: #{edge_detection.3} parent=1 // loop_footer
      %s22 = sadd.s32 1, %s18
    $region7: #{edge_detection.3} parent=1 // loop_footer_branch
      %17 = sbr.rel target = $region3
    $region8: #{edge_detection.3} parent=1 // loop_exit
      _
    %5023 = vsyncpa [#allocation5], 1
    %s5024 = scalar_lea.sflag [#allocation5], 1
    %5025 = vsyncpa %s5024, 1
    %5026 = vsyncpa [#allocation9], 1
    %s5027 = scalar_lea.sflag [#allocation9], 1
    %5028 = vsyncpa %s5027, 1
    %5029 = vsyncpa [#allocation6], 1
    %s5030 = scalar_lea.sflag [#allocation6], 1
    %5031 = vsyncpa %s5030, 1
  %5032 = vsyncmov [#allocation3]
  %s5033 = vpop.sfrf %5032
  %p5034 = scmp.eq.s32.totalorder %s5033, 0
  %p5035 = pneg %p5034
  %5037 = shalt.err (%p5035)

</llo_original>
